<compile_context>
chip_gen: v5e
topology: v5e:2x2
jax: 0.10.0
libtpu: 0.0.40
codegen_flags: <defaults>
</compile_context>

<pallas_src>
import math

import jax
import jax.numpy as jnp
from jax import lax
from jax.experimental import pallas as pl
from jax.experimental.pallas import tpu as pltpu


# ------------------------------- model dims ---------------------------------

VOCAB = 64
D_MODEL = 32
N_HEADS = 4
D_KV = 8
INNER = N_HEADS * D_KV
D_FF = 64
NUM_BUCKETS = 32
NEG_INF = -1e9


# --------------------------- in-kernel helpers -------------------------------

def _rms(x, w):
    """T5 LayerNorm (RMS, no mean subtraction, no bias). x [T, D], w [1, D]."""
    var = jnp.mean(x * x, axis=-1, keepdims=True)
    return x * lax.rsqrt(var + 1e-6) * w


def _proj_heads(x, w3):
    """Batched head projection: x [T, D] x w3 [G, D, Dk] -> [G, T, Dk].

    G is the number of head-groups (H for Q-only, 2H for fused KV, 3H for fused
    QKV).  Single broadcast + one batched dot_general — no per-head lane slices.
    """
    g, t, d = w3.shape[0], x.shape[0], x.shape[1]
    xb = jnp.broadcast_to(x[None, :, :], (g, t, d))
    return lax.dot_general(xb, w3, (((2,), (1,)), ((0,), (0,))),
                           preferred_element_type=jnp.float32)


def _attend(q3, k3, v3, wo3, bias):
    """Multi-head attention, heads batched, fully in VMEM.

    q3 [H, Tq, Dk], k3/v3 [H, Tk, Dk], wo3 [H, Dk, D],
    bias additive & broadcastable to [H, Tq, Tk].  Returns [Tq, D].
    T5 attention has no 1/sqrt(d) scaling (folded into weight init).
    NOTE: fully-masked rows (all keys at NEG_INF) degrade to a uniform softmax
    rather than zeros; harmless here (those query rows are masked downstream).
    """
    s = lax.dot_general(q3, k3, (((2,), (2,)), ((0,), (0,))),
                        preferred_element_type=jnp.float32) + bias     # [H,Tq,Tk]
    m = jnp.max(s, axis=-1, keepdims=True)
    e = jnp.exp(s - m)
    p = e * pl.reciprocal(jnp.sum(e, axis=-1, keepdims=True), approx=True)
    ctx = lax.dot_general(p, v3, (((2,), (1,)), ((0,), (0,))),
                          preferred_element_type=jnp.float32)          # [H,Tq,Dk]
    out = lax.dot_general(ctx, wo3, (((2,), (1,)), ((0,), (0,))),
                          preferred_element_type=jnp.float32)          # [H,Tq,D]
    return jnp.sum(out, axis=0)                                        # [Tq,D]


# --------------------- fused encoder+decoder+LM-head kernel ------------------

def _fld_t5_kernel(
        # per-batch inputs
        enc_emb_ref, enc_mask_ref, dec_emb_ref, lab_ref,
        # shared (grid-invariant) inputs
        posb_e_ref, posb_d_ref, emb_ref,
        # encoder weights
        e_ln1, e_wqkv3, e_wo3, e_ln2, e_wi, e_wff, e_lnf,
        # decoder weights
        d_ln1, d_sa_wqkv3, d_sa_wo3, d_ln2, d_ca_wq3, d_ca_wkv3, d_ca_wo3,
        d_ln3, d_wi, d_wff, d_lnf,
        # outputs
        logits_ref, nll_ref):
    H = N_HEADS
    mask = enc_mask_ref[0]                       # [1, Te] additive padding mask

    # ------------------------------ encoder layer ---------------------------
    h = enc_emb_ref[0]                           # [Te, D] residual stream (VMEM)
    bias_e = posb_e_ref[...] + mask              # [H, Te, Te] computed once

    xn = _rms(h, e_ln1[...])
    qkv3 = _proj_heads(xn, e_wqkv3[...])         # [3H, Te, Dk]
    h = h + _attend(qkv3[:H], qkv3[H:2 * H], qkv3[2 * H:], e_wo3[...], bias_e)

    xn = _rms(h, e_ln2[...])
    ff = jnp.maximum(jnp.dot(xn, e_wi[...], preferred_element_type=jnp.float32), 0.0)
    h = h + jnp.dot(ff, e_wff[...], preferred_element_type=jnp.float32)

    eo = _rms(h, e_lnf[...])                     # [Te, D] stays VMEM-resident

    # ------------------------------ decoder layer ---------------------------
    hd = dec_emb_ref[0]                          # [Td, D]

    # causal self-attention (causal mask already folded into posb_d in wrapper)
    xn = _rms(hd, d_ln1[...])
    qkv3 = _proj_heads(xn, d_sa_wqkv3[...])      # [3H, Td, Dk]
    hd = hd + _attend(qkv3[:H], qkv3[H:2 * H], qkv3[2 * H:], d_sa_wo3[...],
                      posb_d_ref[...])

    # cross-attention over encoder output (encoder padding mask, no pos bias)
    xn = _rms(hd, d_ln2[...])
    q3 = _proj_heads(xn, d_ca_wq3[...])          # [H, Td, Dk]
    kv3 = _proj_heads(eo, d_ca_wkv3[...])        # [2H, Te, Dk]
    hd = hd + _attend(q3, kv3[:H], kv3[H:], d_ca_wo3[...], mask)

    # FFN (ReLU fused)
    xn = _rms(hd, d_ln3[...])
    ff = jnp.maximum(jnp.dot(xn, d_wi[...], preferred_element_type=jnp.float32), 0.0)
    hd = hd + jnp.dot(ff, d_wff[...], preferred_element_type=jnp.float32)

    ho = _rms(hd, d_lnf[...])                    # [Td, D]

    # ----------------------- LM head + per-token NLL ------------------------
    # tied embedding, contraction on last dims of both operands (no .T),
    # T5's d_model**-0.5 output rescaling folded in.
    logits = lax.dot_general(ho, emb_ref[...], (((1,), (1,)), ((), ())),
                             preferred_element_type=jnp.float32) * (D_MODEL ** -0.5)

    m = jnp.max(logits, axis=-1, keepdims=True)
    e = jnp.exp(logits - m)
    lse = jnp.log(jnp.sum(e, axis=-1, keepdims=True)) + m

    lab = lab_ref[0]                             # [Td, 1] int32 (-100 = ignore)
    ids = lax.broadcasted_iota(jnp.int32, logits.shape, 1)
    tgt = jnp.sum(jnp.where(ids == lab, logits, 0.0), axis=-1, keepdims=True)
    valid = lab != -100

    logits_ref[0] = logits
    nll_ref[0] = jnp.where(valid, lse - tgt, 0.0)


def _fused_call(B, Te, Td):
    D, H, Dk, FF, V = D_MODEL, N_HEADS, D_KV, D_FF, VOCAB

    def batch_spec(shape):
        nd = len(shape)
        return pl.BlockSpec((1,) + shape, lambda b, _n=nd: (b,) + (0,) * _n)

    def shared_spec(shape):
        nd = len(shape)
        return pl.BlockSpec(shape, lambda b, _n=nd: (0,) * _n)

    in_specs = [
        batch_spec((Te, D)),            # enc embeddings
        batch_spec((1, Te)),            # enc additive padding mask
        batch_spec((Td, D)),            # dec embeddings (shifted-right labels)
        batch_spec((Td, 1)),            # labels (int32)
        shared_spec((H, Te, Te)),       # encoder position bias
        shared_spec((H, Td, Td)),       # decoder position bias (+ causal)
        shared_spec((V, D)),            # tied embedding (LM head)
        # encoder weights
        shared_spec((1, D)), shared_spec((3 * H, D, Dk)), shared_spec((H, Dk, D)),
        shared_spec((1, D)), shared_spec((D, FF)), shared_spec((FF, D)),
        shared_spec((1, D)),
        # decoder weights
        shared_spec((1, D)), shared_spec((3 * H, D, Dk)), shared_spec((H, Dk, D)),
        shared_spec((1, D)), shared_spec((H, D, Dk)), shared_spec((2 * H, D, Dk)),
        shared_spec((H, Dk, D)),
        shared_spec((1, D)), shared_spec((D, FF)), shared_spec((FF, D)),
        shared_spec((1, D)),
    ]
    out_specs = (batch_spec((Td, V)), batch_spec((Td, 1)))
    out_shape = (jax.ShapeDtypeStruct((B, Td, V), jnp.float32),
                 jax.ShapeDtypeStruct((B, Td, 1), jnp.float32))

    # advisory cost estimate so XLA schedules glue ops (gathers, shift-right)
    # around the custom call instead of serializing on it.
    flops_b = (
        2 * (3 * H) * Te * D * Dk + 2 * H * Te * Te * Dk * 2 + 2 * H * Te * Dk * D
        + 4 * Te * D * FF
        + 2 * (3 * H) * Td * D * Dk + 2 * H * Td * Td * Dk * 2 + 2 * H * Td * Dk * D
        + 2 * H * Td * D * Dk + 2 * (2 * H) * Te * D * Dk
        + 2 * H * Td * Te * Dk * 2 + 2 * H * Td * Dk * D
        + 4 * Td * D * FF
        + 2 * Td * D * V
    )
    transc_b = H * (Te * Te + Td * Td + Td * Te) + Td * V + 6 * (Te + Td)
    bytes_acc = 4 * (
        B * (Te * D + Te + Td * D + Td + Td * V + Td)
        + H * (Te * Te + Td * Td) + V * D
        + 2 * (3 * H * D * Dk) + 3 * (H * Dk * D) + H * D * Dk + 2 * H * D * Dk
        + 4 * D * FF + 8 * D
    )

    return pl.pallas_call(
        _fld_t5_kernel,
        out_shape=out_shape,
        grid=(B,),
        in_specs=in_specs,
        out_specs=out_specs,
        compiler_params=pltpu.CompilerParams(
            dimension_semantics=("parallel",),
            vmem_limit_bytes=32 * 1024 * 1024),
        cost_estimate=pl.CostEstimate(flops=B * flops_b,
                                      transcendentals=B * transc_b,
                                      bytes_accessed=bytes_acc),
    )


# ------------------------ T5 glue (plain JAX, no hot path) --------------------

def _relative_position_bucket(relative_position, bidirectional,
                              num_buckets=32, max_distance=128):
    relative_buckets = jnp.zeros_like(relative_position)
    if bidirectional:
        num_buckets //= 2
        relative_buckets = relative_buckets + (
            (relative_position > 0).astype(jnp.int32) * num_buckets)
        relative_position = jnp.abs(relative_position)
    else:
        relative_position = -jnp.minimum(relative_position, 0)
    max_exact = num_buckets // 2
    is_small = relative_position < max_exact
    rp = jnp.maximum(relative_position, 1).astype(jnp.float32)
    val_if_large = max_exact + (
        jnp.log(rp / max_exact) / math.log(max_distance / max_exact)
        * (num_buckets - max_exact)).astype(jnp.int32)
    val_if_large = jnp.minimum(val_if_large, num_buckets - 1)
    relative_buckets = relative_buckets + jnp.where(
        is_small, relative_position, val_if_large)
    return relative_buckets


def compute_position_bias(rel_bias_table, q_len, k_len, bidirectional,
                          num_buckets=32, max_distance=128):
    """Returns un-broadcast bias [H, q_len, k_len] (no batch dim materialized)."""
    context_position = jnp.arange(q_len, dtype=jnp.int32)[:, None]
    memory_position = jnp.arange(k_len, dtype=jnp.int32)[None, :]
    relative_position = memory_position - context_position
    buckets = _relative_position_bucket(relative_position, bidirectional,
                                        num_buckets, max_distance)
    values = rel_bias_table[buckets]                 # [q, k, H]
    return jnp.transpose(values, (2, 0, 1))          # [H, q, k]


# ------------------------------ Parameters -----------------------------------

def init_params(key):
    ks = iter(jax.random.split(key, 16))

    def nrm(shape, scale=0.05):
        return scale * jax.random.normal(next(ks), shape, dtype=jnp.float32)

    ones_d = lambda: jnp.ones((1, D_MODEL), jnp.float32)
    return {
        "emb": nrm((VOCAB, D_MODEL), 1.0),
        "enc": {
            "ln1": ones_d(),
            "qkv3": nrm((3 * N_HEADS, D_MODEL, D_KV)),   # per-head fused Q/K/V
            "o3": nrm((N_HEADS, D_KV, D_MODEL)),
            "rel_bias": nrm((NUM_BUCKETS, N_HEADS)),
            "ln2": ones_d(),
            "wi": nrm((D_MODEL, D_FF)),
            "wo": nrm((D_FF, D_MODEL)),
            "ln_f": ones_d(),
        },
        "dec": {
            "ln1": ones_d(),
            "sa_qkv3": nrm((3 * N_HEADS, D_MODEL, D_KV)),
            "sa_o3": nrm((N_HEADS, D_KV, D_MODEL)),
            "rel_bias": nrm((NUM_BUCKETS, N_HEADS)),
            "ln2": ones_d(),
            "ca_q3": nrm((N_HEADS, D_MODEL, D_KV)),
            "ca_kv3": nrm((2 * N_HEADS, D_MODEL, D_KV)),
            "ca_o3": nrm((N_HEADS, D_KV, D_MODEL)),
            "ln3": ones_d(),
            "wi": nrm((D_MODEL, D_FF)),
            "wo": nrm((D_FF, D_MODEL)),
            "ln_f": ones_d(),
        },
    }


# -------------------------------- Forward ------------------------------------

def fld_forward(params, input_ids, attention_mask, labels):
    """Mimics FLDAllAtOnceProver.forward(x, y): returns {'loss', 'logits'}."""
    emb = params["emb"]
    B, Te = input_ids.shape
    Td = labels.shape[1]
    enc_p, dec_p = params["enc"], params["dec"]

    # --- glue: embeddings, masks, position bias, shift-right decoder input ---
    enc_emb = jnp.take(emb, input_ids, axis=0)                              # [B,Te,D]
    enc_mask_add = ((1.0 - attention_mask.astype(jnp.float32))
                    * NEG_INF)[:, None, :]                                  # [B,1,Te]
    pos_bias_e = compute_position_bias(enc_p["rel_bias"], Te, Te,
                                       bidirectional=True)                  # [H,Te,Te]

    # T5 shift-right: start token 0, -100 replaced by pad token 0
    dec_in = jnp.concatenate(
        [jnp.zeros((B, 1), labels.dtype), labels[:, :-1]], axis=1)
    dec_in = jnp.where(dec_in == -100, 0, dec_in)
    dec_emb = jnp.take(emb, dec_in, axis=0)                                 # [B,Td,D]

    # decoder bias: batch-invariant causal mask folded in ONCE, in the wrapper
    pos_bias_d = compute_position_bias(dec_p["rel_bias"], Td, Td,
                                       bidirectional=False)                 # [H,Td,Td]
    row = jnp.arange(Td, dtype=jnp.int32)[:, None]
    col = jnp.arange(Td, dtype=jnp.int32)[None, :]
    pos_bias_dc = pos_bias_d + jnp.where(col <= row, 0.0, NEG_INF)[None]

    labels_3d = labels.astype(jnp.int32)[:, :, None]                        # [B,Td,1]

    # --- ONE fused pallas_call: encoder + decoder + LM head + per-token NLL ---
    logits, nll = _fused_call(B, Te, Td)(
        enc_emb, enc_mask_add, dec_emb, labels_3d,
        pos_bias_e, pos_bias_dc, emb,
        enc_p["ln1"], enc_p["qkv3"], enc_p["o3"], enc_p["ln2"],
        enc_p["wi"], enc_p["wo"], enc_p["ln_f"],
        dec_p["ln1"], dec_p["sa_qkv3"], dec_p["sa_o3"], dec_p["ln2"],
        dec_p["ca_q3"], dec_p["ca_kv3"], dec_p["ca_o3"],
        dec_p["ln3"], dec_p["wi"], dec_p["wo"], dec_p["ln_f"])

    valid = (labels != -100).astype(jnp.float32)
    loss = jnp.sum(nll[..., 0]) / jnp.maximum(jnp.sum(valid), 1.0)

    return {"loss": loss, "logits": logits}


# TODO(synk): .predict() (beam search / sampling + tokenizer decode) has no
# clean Pallas equivalent and is intentionally not implemented.


if __name__ == "__main__":
    key = jax.random.PRNGKey(0)
    pkey, ikey, lkey = jax.random.split(key, 3)

    params = init_params(pkey)

    B, Te, Td = 2, 8, 8
    input_ids = jax.random.randint(ikey, (B, Te), 1, VOCAB, dtype=jnp.int32)
    attention_mask = jnp.ones((B, Te), jnp.int32).at[1, 6:].set(0)  # some padding
    labels = jax.random.randint(lkey, (B, Td), 1, VOCAB, dtype=jnp.int32)
    labels = labels.at[1, 7].set(-100)                              # ignored token

    fwd = jax.jit(fld_forward)
    out = fwd(params, input_ids, attention_mask, labels)
    jax.block_until_ready(out)

    assert out["logits"].shape == (B, Td, VOCAB)
    assert out["loss"].shape == ()
    assert bool(jnp.isfinite(out["loss"]))
    print("KERNEL_OK")
</pallas_src>

<mosaic_0001>
module attributes {stable_mosaic.version = 11 : i64} {
  func.func @_fld_t5_kernel(%arg0: i32, %arg1: memref<1x8x32xf32, #tpu.memory_space<vmem>>, %arg2: memref<1x1x8xf32, #tpu.memory_space<vmem>>, %arg3: memref<1x8x32xf32, #tpu.memory_space<vmem>>, %arg4: memref<1x8x1xi32, #tpu.memory_space<vmem>>, %arg5: memref<4x8x8xf32, #tpu.memory_space<vmem>>, %arg6: memref<4x8x8xf32, #tpu.memory_space<vmem>>, %arg7: memref<64x32xf32, #tpu.memory_space<vmem>>, %arg8: memref<1x32xf32, #tpu.memory_space<vmem>>, %arg9: memref<12x32x8xf32, #tpu.memory_space<vmem>>, %arg10: memref<4x8x32xf32, #tpu.memory_space<vmem>>, %arg11: memref<1x32xf32, #tpu.memory_space<vmem>>, %arg12: memref<32x64xf32, #tpu.memory_space<vmem>>, %arg13: memref<64x32xf32, #tpu.memory_space<vmem>>, %arg14: memref<1x32xf32, #tpu.memory_space<vmem>>, %arg15: memref<1x32xf32, #tpu.memory_space<vmem>>, %arg16: memref<12x32x8xf32, #tpu.memory_space<vmem>>, %arg17: memref<4x8x32xf32, #tpu.memory_space<vmem>>, %arg18: memref<1x32xf32, #tpu.memory_space<vmem>>, %arg19: memref<4x32x8xf32, #tpu.memory_space<vmem>>, %arg20: memref<8x32x8xf32, #tpu.memory_space<vmem>>, %arg21: memref<4x8x32xf32, #tpu.memory_space<vmem>>, %arg22: memref<1x32xf32, #tpu.memory_space<vmem>>, %arg23: memref<32x64xf32, #tpu.memory_space<vmem>>, %arg24: memref<64x32xf32, #tpu.memory_space<vmem>>, %arg25: memref<1x32xf32, #tpu.memory_space<vmem>>, %arg26: memref<1x8x64xf32, #tpu.memory_space<vmem>>, %arg27: memref<1x8x1xf32, #tpu.memory_space<vmem>>) attributes {dimension_semantics = [#tpu.dimension_semantics<parallel>], iteration_bounds = array<i64: 2>, scalar_prefetch = 0 : i64, scratch_operands = 0 : i64, tpu.core_type = #tpu.core_type<tc>, window_params = [{transform_indices = @transform_0, window_bounds = array<i64: 1, 8, 32>}, {transform_indices = @transform_1, window_bounds = array<i64: 1, 1, 8>}, {transform_indices = @transform_2, window_bounds = array<i64: 1, 8, 32>}, {transform_indices = @transform_3, window_bounds = array<i64: 1, 8, 1>}, {pipeline_mode = #tpu.pipeline_mode<synchronous>, transform_indices = @transform_4, window_bounds = array<i64: 4, 8, 8>}, {pipeline_mode = #tpu.pipeline_mode<synchronous>, transform_indices = @transform_5, window_bounds = array<i64: 4, 8, 8>}, {pipeline_mode = #tpu.pipeline_mode<synchronous>, transform_indices = @transform_6, window_bounds = array<i64: 64, 32>}, {pipeline_mode = #tpu.pipeline_mode<synchronous>, transform_indices = @transform_7, window_bounds = array<i64: 1, 32>}, {pipeline_mode = #tpu.pipeline_mode<synchronous>, transform_indices = @transform_8, window_bounds = array<i64: 12, 32, 8>}, {pipeline_mode = #tpu.pipeline_mode<synchronous>, transform_indices = @transform_9, window_bounds = array<i64: 4, 8, 32>}, {pipeline_mode = #tpu.pipeline_mode<synchronous>, transform_indices = @transform_10, window_bounds = array<i64: 1, 32>}, {pipeline_mode = #tpu.pipeline_mode<synchronous>, transform_indices = @transform_11, window_bounds = array<i64: 32, 64>}, {pipeline_mode = #tpu.pipeline_mode<synchronous>, transform_indices = @transform_12, window_bounds = array<i64: 64, 32>}, {pipeline_mode = #tpu.pipeline_mode<synchronous>, transform_indices = @transform_13, window_bounds = array<i64: 1, 32>}, {pipeline_mode = #tpu.pipeline_mode<synchronous>, transform_indices = @transform_14, window_bounds = array<i64: 1, 32>}, {pipeline_mode = #tpu.pipeline_mode<synchronous>, transform_indices = @transform_15, window_bounds = array<i64: 12, 32, 8>}, {pipeline_mode = #tpu.pipeline_mode<synchronous>, transform_indices = @transform_16, window_bounds = array<i64: 4, 8, 32>}, {pipeline_mode = #tpu.pipeline_mode<synchronous>, transform_indices = @transform_17, window_bounds = array<i64: 1, 32>}, {pipeline_mode = #tpu.pipeline_mode<synchronous>, transform_indices = @transform_18, window_bounds = array<i64: 4, 32, 8>}, {pipeline_mode = #tpu.pipeline_mode<synchronous>, transform_indices = @transform_19, window_bounds = array<i64: 8, 32, 8>}, {pipeline_mode = #tpu.pipeline_mode<synchronous>, transform_indices = @transform_20, window_bounds = array<i64: 4, 8, 32>}, {pipeline_mode = #tpu.pipeline_mode<synchronous>, transform_indices = @transform_21, window_bounds = array<i64: 1, 32>}, {pipeline_mode = #tpu.pipeline_mode<synchronous>, transform_indices = @transform_22, window_bounds = array<i64: 32, 64>}, {pipeline_mode = #tpu.pipeline_mode<synchronous>, transform_indices = @transform_23, window_bounds = array<i64: 64, 32>}, {pipeline_mode = #tpu.pipeline_mode<synchronous>, transform_indices = @transform_24, window_bounds = array<i64: 1, 32>}, {transform_indices = @transform_25, window_bounds = array<i64: 1, 8, 64>}, {transform_indices = @transform_26, window_bounds = array<i64: 1, 8, 1>}]} {
    %c0 = arith.constant 0 : index
    %c0_0 = arith.constant 0 : index
    %c0_1 = arith.constant 0 : index
    %0 = vector.load %arg2[%c0, %c0_0, %c0_1] : memref<1x1x8xf32, #tpu.memory_space<vmem>>, vector<1x1x8xf32>
    %1 = vector.shape_cast %0 : vector<1x1x8xf32> to vector<1x8xf32>
    %c0_2 = arith.constant 0 : index
    %c0_3 = arith.constant 0 : index
    %c0_4 = arith.constant 0 : index
    %2 = vector.load %arg1[%c0_2, %c0_3, %c0_4] : memref<1x8x32xf32, #tpu.memory_space<vmem>>, vector<1x8x32xf32>
    %3 = vector.shape_cast %2 : vector<1x8x32xf32> to vector<8x32xf32>
    %c0_5 = arith.constant 0 : index
    %c0_6 = arith.constant 0 : index
    %c0_7 = arith.constant 0 : index
    %4 = vector.load %arg5[%c0_5, %c0_6, %c0_7] : memref<4x8x8xf32, #tpu.memory_space<vmem>>, vector<4x8x8xf32>
    %5 = vector.shape_cast %1 : vector<1x8xf32> to vector<1x1x8xf32>
    %6 = vector.broadcast %5 : vector<1x1x8xf32> to vector<4x8x8xf32>
    %7 = arith.addf %4, %6 : vector<4x8x8xf32>
    %c0_8 = arith.constant 0 : index
    %c0_9 = arith.constant 0 : index
    %8 = vector.load %arg8[%c0_8, %c0_9] : memref<1x32xf32, #tpu.memory_space<vmem>>, vector<1x32xf32>
    %9 = arith.mulf %3, %3 : vector<8x32xf32>
    %cst = arith.constant dense<0.000000e+00> : vector<8xf32>
    %10 = vector.multi_reduction <add>, %9, %cst [1] : vector<8x32xf32> to vector<8xf32>
    %11 = vector.shape_cast %10 : vector<8xf32> to vector<8x1xf32>
    %cst_10 = arith.constant 3.200000e+01 : f32
    %12 = vector.broadcast %cst_10 : f32 to vector<8x1xf32>
    %13 = arith.divf %11, %12 : vector<8x1xf32>
    %cst_11 = arith.constant 9.99999997E-7 : f32
    %14 = vector.broadcast %cst_11 : f32 to vector<8x1xf32>
    %15 = arith.addf %13, %14 : vector<8x1xf32>
    %16 = math.rsqrt %15 : vector<8x1xf32>
    %17 = vector.broadcast %16 : vector<8x1xf32> to vector<8x32xf32>
    %18 = arith.mulf %3, %17 : vector<8x32xf32>
    %19 = vector.broadcast %8 : vector<1x32xf32> to vector<8x32xf32>
    %20 = arith.mulf %18, %19 : vector<8x32xf32>
    %c0_12 = arith.constant 0 : index
    %c0_13 = arith.constant 0 : index
    %c0_14 = arith.constant 0 : index
    %21 = vector.load %arg9[%c0_12, %c0_13, %c0_14] : memref<12x32x8xf32, #tpu.memory_space<vmem>>, vector<12x32x8xf32>
    %22 = vector.shape_cast %20 : vector<8x32xf32> to vector<1x8x32xf32>
    %23 = vector.shape_cast %22 : vector<1x8x32xf32> to vector<1x8x32xf32>
    %24 = vector.broadcast %23 : vector<1x8x32xf32> to vector<12x8x32xf32>
    %cst_15 = arith.constant dense<0.000000e+00> : vector<12x8x8xf32>
    %25 = tpu.matmul %24, %21, %cst_15 {dimension_numbers = #tpu.dot_dimension_numbers<[2], [1], [1], [2], [0, 0, 0, 1, 1, 2], [0], [0]>} : vector<12x8x32xf32>, vector<12x32x8xf32>, vector<12x8x8xf32> -> vector<12x8x8xf32>
    %26 = vector.extract_strided_slice %25 {offsets = [0, 0, 0], sizes = [4, 8, 8], strides = [1, 1, 1]} : vector<12x8x8xf32> to vector<4x8x8xf32>
    %27 = vector.extract_strided_slice %25 {offsets = [4, 0, 0], sizes = [4, 8, 8], strides = [1, 1, 1]} : vector<12x8x8xf32> to vector<4x8x8xf32>
    %28 = vector.extract_strided_slice %25 {offsets = [8, 0, 0], sizes = [4, 8, 8], strides = [1, 1, 1]} : vector<12x8x8xf32> to vector<4x8x8xf32>
    %c0_16 = arith.constant 0 : index
    %c0_17 = arith.constant 0 : index
    %c0_18 = arith.constant 0 : index
    %29 = vector.load %arg10[%c0_16, %c0_17, %c0_18] : memref<4x8x32xf32, #tpu.memory_space<vmem>>, vector<4x8x32xf32>
    %cst_19 = arith.constant dense<0.000000e+00> : vector<4x8x8xf32>
    %30 = tpu.matmul %26, %27, %cst_19 {dimension_numbers = #tpu.dot_dimension_numbers<[2], [2], [1], [1], [0, 0, 0, 1, 1, 1], [0], [0]>} : vector<4x8x8xf32>, vector<4x8x8xf32>, vector<4x8x8xf32> -> vector<4x8x8xf32>
    %31 = arith.addf %30, %7 : vector<4x8x8xf32>
    %cst_20 = arith.constant dense<0xFF800000> : vector<4x8xf32>
    %32 = vector.multi_reduction <maximumf>, %31, %cst_20 [2] : vector<4x8x8xf32> to vector<4x8xf32>
    %33 = vector.shape_cast %32 : vector<4x8xf32> to vector<4x8x1xf32>
    %34 = vector.broadcast %33 : vector<4x8x1xf32> to vector<4x8x8xf32>
    %35 = arith.subf %31, %34 : vector<4x8x8xf32>
    %36 = math.exp %35 : vector<4x8x8xf32>
    %cst_21 = arith.constant dense<0.000000e+00> : vector<4x8xf32>
    %37 = vector.multi_reduction <add>, %36, %cst_21 [2] : vector<4x8x8xf32> to vector<4x8xf32>
    %38 = vector.shape_cast %37 : vector<4x8xf32> to vector<4x8x1xf32>
    %39 = tpu.reciprocal %38 {approx = true} : vector<4x8x1xf32> -> vector<4x8x1xf32>
    %40 = vector.broadcast %39 : vector<4x8x1xf32> to vector<4x8x8xf32>
    %41 = arith.mulf %36, %40 : vector<4x8x8xf32>
    %cst_22 = arith.constant dense<0.000000e+00> : vector<4x8x8xf32>
    %42 = tpu.matmul %41, %28, %cst_22 {dimension_numbers = #tpu.dot_dimension_numbers<[2], [1], [1], [2], [0, 0, 0, 1, 1, 2], [0], [0]>} : vector<4x8x8xf32>, vector<4x8x8xf32>, vector<4x8x8xf32> -> vector<4x8x8xf32>
    %cst_23 = arith.constant dense<0.000000e+00> : vector<4x8x32xf32>
    %43 = tpu.matmul %42, %29, %cst_23 {dimension_numbers = #tpu.dot_dimension_numbers<[2], [1], [1], [2], [0, 0, 0, 1, 1, 2], [0], [0]>} : vector<4x8x8xf32>, vector<4x8x32xf32>, vector<4x8x32xf32> -> vector<4x8x32xf32>
    %cst_24 = arith.constant dense<0.000000e+00> : vector<8x32xf32>
    %44 = vector.multi_reduction <add>, %43, %cst_24 [0] : vector<4x8x32xf32> to vector<8x32xf32>
    %45 = arith.addf %3, %44 : vector<8x32xf32>
    %c0_25 = arith.constant 0 : index
    %c0_26 = arith.constant 0 : index
    %46 = vector.load %arg11[%c0_25, %c0_26] : memref<1x32xf32, #tpu.memory_space<vmem>>, vector<1x32xf32>
    %47 = arith.mulf %45, %45 : vector<8x32xf32>
    %cst_27 = arith.constant dense<0.000000e+00> : vector<8xf32>
    %48 = vector.multi_reduction <add>, %47, %cst_27 [1] : vector<8x32xf32> to vector<8xf32>
    %49 = vector.shape_cast %48 : vector<8xf32> to vector<8x1xf32>
    %cst_28 = arith.constant 3.200000e+01 : f32
    %50 = vector.broadcast %cst_28 : f32 to vector<8x1xf32>
    %51 = arith.divf %49, %50 : vector<8x1xf32>
    %cst_29 = arith.constant 9.99999997E-7 : f32
    %52 = vector.broadcast %cst_29 : f32 to vector<8x1xf32>
    %53 = arith.addf %51, %52 : vector<8x1xf32>
    %54 = math.rsqrt %53 : vector<8x1xf32>
    %55 = vector.broadcast %54 : vector<8x1xf32> to vector<8x32xf32>
    %56 = arith.mulf %45, %55 : vector<8x32xf32>
    %57 = vector.broadcast %46 : vector<1x32xf32> to vector<8x32xf32>
    %58 = arith.mulf %56, %57 : vector<8x32xf32>
    %c0_30 = arith.constant 0 : index
    %c0_31 = arith.constant 0 : index
    %59 = vector.load %arg12[%c0_30, %c0_31] : memref<32x64xf32, #tpu.memory_space<vmem>>, vector<32x64xf32>
    %cst_32 = arith.constant dense<0.000000e+00> : vector<8x64xf32>
    %60 = tpu.matmul %58, %59, %cst_32 {dimension_numbers = #tpu.dot_dimension_numbers<[1], [0], [0], [1], [0, 0, 1, 1], [], []>} : vector<8x32xf32>, vector<32x64xf32>, vector<8x64xf32> -> vector<8x64xf32>
    %cst_33 = arith.constant 0.000000e+00 : f32
    %61 = vector.broadcast %cst_33 : f32 to vector<8x64xf32>
    %62 = arith.maximumf %60, %61 : vector<8x64xf32>
    %c0_34 = arith.constant 0 : index
    %c0_35 = arith.constant 0 : index
    %63 = vector.load %arg13[%c0_34, %c0_35] : memref<64x32xf32, #tpu.memory_space<vmem>>, vector<64x32xf32>
    %cst_36 = arith.constant dense<0.000000e+00> : vector<8x32xf32>
    %64 = tpu.matmul %62, %63, %cst_36 {dimension_numbers = #tpu.dot_dimension_numbers<[1], [0], [0], [1], [0, 0, 1, 1], [], []>} : vector<8x64xf32>, vector<64x32xf32>, vector<8x32xf32> -> vector<8x32xf32>
    %65 = arith.addf %45, %64 : vector<8x32xf32>
    %c0_37 = arith.constant 0 : index
    %c0_38 = arith.constant 0 : index
    %66 = vector.load %arg14[%c0_37, %c0_38] : memref<1x32xf32, #tpu.memory_space<vmem>>, vector<1x32xf32>
    %67 = arith.mulf %65, %65 : vector<8x32xf32>
    %cst_39 = arith.constant dense<0.000000e+00> : vector<8xf32>
    %68 = vector.multi_reduction <add>, %67, %cst_39 [1] : vector<8x32xf32> to vector<8xf32>
    %69 = vector.shape_cast %68 : vector<8xf32> to vector<8x1xf32>
    %cst_40 = arith.constant 3.200000e+01 : f32
    %70 = vector.broadcast %cst_40 : f32 to vector<8x1xf32>
    %71 = arith.divf %69, %70 : vector<8x1xf32>
    %cst_41 = arith.constant 9.99999997E-7 : f32
    %72 = vector.broadcast %cst_41 : f32 to vector<8x1xf32>
    %73 = arith.addf %71, %72 : vector<8x1xf32>
    %74 = math.rsqrt %73 : vector<8x1xf32>
    %75 = vector.broadcast %74 : vector<8x1xf32> to vector<8x32xf32>
    %76 = arith.mulf %65, %75 : vector<8x32xf32>
    %77 = vector.broadcast %66 : vector<1x32xf32> to vector<8x32xf32>
    %78 = arith.mulf %76, %77 : vector<8x32xf32>
    %c0_42 = arith.constant 0 : index
    %c0_43 = arith.constant 0 : index
    %c0_44 = arith.constant 0 : index
    %79 = vector.load %arg3[%c0_42, %c0_43, %c0_44] : memref<1x8x32xf32, #tpu.memory_space<vmem>>, vector<1x8x32xf32>
    %80 = vector.shape_cast %79 : vector<1x8x32xf32> to vector<8x32xf32>
    %c0_45 = arith.constant 0 : index
    %c0_46 = arith.constant 0 : index
    %81 = vector.load %arg15[%c0_45, %c0_46] : memref<1x32xf32, #tpu.memory_space<vmem>>, vector<1x32xf32>
    %82 = arith.mulf %80, %80 : vector<8x32xf32>
    %cst_47 = arith.constant dense<0.000000e+00> : vector<8xf32>
    %83 = vector.multi_reduction <add>, %82, %cst_47 [1] : vector<8x32xf32> to vector<8xf32>
    %84 = vector.shape_cast %83 : vector<8xf32> to vector<8x1xf32>
    %cst_48 = arith.constant 3.200000e+01 : f32
    %85 = vector.broadcast %cst_48 : f32 to vector<8x1xf32>
    %86 = arith.divf %84, %85 : vector<8x1xf32>
    %cst_49 = arith.constant 9.99999997E-7 : f32
    %87 = vector.broadcast %cst_49 : f32 to vector<8x1xf32>
    %88 = arith.addf %86, %87 : vector<8x1xf32>
    %89 = math.rsqrt %88 : vector<8x1xf32>
    %90 = vector.broadcast %89 : vector<8x1xf32> to vector<8x32xf32>
    %91 = arith.mulf %80, %90 : vector<8x32xf32>
    %92 = vector.broadcast %81 : vector<1x32xf32> to vector<8x32xf32>
    %93 = arith.mulf %91, %92 : vector<8x32xf32>
    %c0_50 = arith.constant 0 : index
    %c0_51 = arith.constant 0 : index
    %c0_52 = arith.constant 0 : index
    %94 = vector.load %arg16[%c0_50, %c0_51, %c0_52] : memref<12x32x8xf32, #tpu.memory_space<vmem>>, vector<12x32x8xf32>
    %95 = vector.shape_cast %93 : vector<8x32xf32> to vector<1x8x32xf32>
    %96 = vector.shape_cast %95 : vector<1x8x32xf32> to vector<1x8x32xf32>
    %97 = vector.broadcast %96 : vector<1x8x32xf32> to vector<12x8x32xf32>
    %cst_53 = arith.constant dense<0.000000e+00> : vector<12x8x8xf32>
    %98 = tpu.matmul %97, %94, %cst_53 {dimension_numbers = #tpu.dot_dimension_numbers<[2], [1], [1], [2], [0, 0, 0, 1, 1, 2], [0], [0]>} : vector<12x8x32xf32>, vector<12x32x8xf32>, vector<12x8x8xf32> -> vector<12x8x8xf32>
    %99 = vector.extract_strided_slice %98 {offsets = [0, 0, 0], sizes = [4, 8, 8], strides = [1, 1, 1]} : vector<12x8x8xf32> to vector<4x8x8xf32>
    %100 = vector.extract_strided_slice %98 {offsets = [4, 0, 0], sizes = [4, 8, 8], strides = [1, 1, 1]} : vector<12x8x8xf32> to vector<4x8x8xf32>
    %101 = vector.extract_strided_slice %98 {offsets = [8, 0, 0], sizes = [4, 8, 8], strides = [1, 1, 1]} : vector<12x8x8xf32> to vector<4x8x8xf32>
    %c0_54 = arith.constant 0 : index
    %c0_55 = arith.constant 0 : index
    %c0_56 = arith.constant 0 : index
    %102 = vector.load %arg17[%c0_54, %c0_55, %c0_56] : memref<4x8x32xf32, #tpu.memory_space<vmem>>, vector<4x8x32xf32>
    %c0_57 = arith.constant 0 : index
    %c0_58 = arith.constant 0 : index
    %c0_59 = arith.constant 0 : index
    %103 = vector.load %arg6[%c0_57, %c0_58, %c0_59] : memref<4x8x8xf32, #tpu.memory_space<vmem>>, vector<4x8x8xf32>
    %cst_60 = arith.constant dense<0.000000e+00> : vector<4x8x8xf32>
    %104 = tpu.matmul %99, %100, %cst_60 {dimension_numbers = #tpu.dot_dimension_numbers<[2], [2], [1], [1], [0, 0, 0, 1, 1, 1], [0], [0]>} : vector<4x8x8xf32>, vector<4x8x8xf32>, vector<4x8x8xf32> -> vector<4x8x8xf32>
    %105 = arith.addf %104, %103 : vector<4x8x8xf32>
    %cst_61 = arith.constant dense<0xFF800000> : vector<4x8xf32>
    %106 = vector.multi_reduction <maximumf>, %105, %cst_61 [2] : vector<4x8x8xf32> to vector<4x8xf32>
    %107 = vector.shape_cast %106 : vector<4x8xf32> to vector<4x8x1xf32>
    %108 = vector.broadcast %107 : vector<4x8x1xf32> to vector<4x8x8xf32>
    %109 = arith.subf %105, %108 : vector<4x8x8xf32>
    %110 = math.exp %109 : vector<4x8x8xf32>
    %cst_62 = arith.constant dense<0.000000e+00> : vector<4x8xf32>
    %111 = vector.multi_reduction <add>, %110, %cst_62 [2] : vector<4x8x8xf32> to vector<4x8xf32>
    %112 = vector.shape_cast %111 : vector<4x8xf32> to vector<4x8x1xf32>
    %113 = tpu.reciprocal %112 {approx = true} : vector<4x8x1xf32> -> vector<4x8x1xf32>
    %114 = vector.broadcast %113 : vector<4x8x1xf32> to vector<4x8x8xf32>
    %115 = arith.mulf %110, %114 : vector<4x8x8xf32>
    %cst_63 = arith.constant dense<0.000000e+00> : vector<4x8x8xf32>
    %116 = tpu.matmul %115, %101, %cst_63 {dimension_numbers = #tpu.dot_dimension_numbers<[2], [1], [1], [2], [0, 0, 0, 1, 1, 2], [0], [0]>} : vector<4x8x8xf32>, vector<4x8x8xf32>, vector<4x8x8xf32> -> vector<4x8x8xf32>
    %cst_64 = arith.constant dense<0.000000e+00> : vector<4x8x32xf32>
    %117 = tpu.matmul %116, %102, %cst_64 {dimension_numbers = #tpu.dot_dimension_numbers<[2], [1], [1], [2], [0, 0, 0, 1, 1, 2], [0], [0]>} : vector<4x8x8xf32>, vector<4x8x32xf32>, vector<4x8x32xf32> -> vector<4x8x32xf32>
    %cst_65 = arith.constant dense<0.000000e+00> : vector<8x32xf32>
    %118 = vector.multi_reduction <add>, %117, %cst_65 [0] : vector<4x8x32xf32> to vector<8x32xf32>
    %119 = arith.addf %80, %118 : vector<8x32xf32>
    %c0_66 = arith.constant 0 : index
    %c0_67 = arith.constant 0 : index
    %120 = vector.load %arg18[%c0_66, %c0_67] : memref<1x32xf32, #tpu.memory_space<vmem>>, vector<1x32xf32>
    %121 = arith.mulf %119, %119 : vector<8x32xf32>
    %cst_68 = arith.constant dense<0.000000e+00> : vector<8xf32>
    %122 = vector.multi_reduction <add>, %121, %cst_68 [1] : vector<8x32xf32> to vector<8xf32>
    %123 = vector.shape_cast %122 : vector<8xf32> to vector<8x1xf32>
    %cst_69 = arith.constant 3.200000e+01 : f32
    %124 = vector.broadcast %cst_69 : f32 to vector<8x1xf32>
    %125 = arith.divf %123, %124 : vector<8x1xf32>
    %cst_70 = arith.constant 9.99999997E-7 : f32
    %126 = vector.broadcast %cst_70 : f32 to vector<8x1xf32>
    %127 = arith.addf %125, %126 : vector<8x1xf32>
    %128 = math.rsqrt %127 : vector<8x1xf32>
    %129 = vector.broadcast %128 : vector<8x1xf32> to vector<8x32xf32>
    %130 = arith.mulf %119, %129 : vector<8x32xf32>
    %131 = vector.broadcast %120 : vector<1x32xf32> to vector<8x32xf32>
    %132 = arith.mulf %130, %131 : vector<8x32xf32>
    %c0_71 = arith.constant 0 : index
    %c0_72 = arith.constant 0 : index
    %c0_73 = arith.constant 0 : index
    %133 = vector.load %arg19[%c0_71, %c0_72, %c0_73] : memref<4x32x8xf32, #tpu.memory_space<vmem>>, vector<4x32x8xf32>
    %134 = vector.shape_cast %132 : vector<8x32xf32> to vector<1x8x32xf32>
    %135 = vector.shape_cast %134 : vector<1x8x32xf32> to vector<1x8x32xf32>
    %136 = vector.broadcast %135 : vector<1x8x32xf32> to vector<4x8x32xf32>
    %cst_74 = arith.constant dense<0.000000e+00> : vector<4x8x8xf32>
    %137 = tpu.matmul %136, %133, %cst_74 {dimension_numbers = #tpu.dot_dimension_numbers<[2], [1], [1], [2], [0, 0, 0, 1, 1, 2], [0], [0]>} : vector<4x8x32xf32>, vector<4x32x8xf32>, vector<4x8x8xf32> -> vector<4x8x8xf32>
    %c0_75 = arith.constant 0 : index
    %c0_76 = arith.constant 0 : index
    %c0_77 = arith.constant 0 : index
    %138 = vector.load %arg20[%c0_75, %c0_76, %c0_77] : memref<8x32x8xf32, #tpu.memory_space<vmem>>, vector<8x32x8xf32>
    %139 = vector.shape_cast %78 : vector<8x32xf32> to vector<1x8x32xf32>
    %140 = vector.shape_cast %139 : vector<1x8x32xf32> to vector<1x8x32xf32>
    %141 = vector.broadcast %140 : vector<1x8x32xf32> to vector<8x8x32xf32>
    %cst_78 = arith.constant dense<0.000000e+00> : vector<8x8x8xf32>
    %142 = tpu.matmul %141, %138, %cst_78 {dimension_numbers = #tpu.dot_dimension_numbers<[2], [1], [1], [2], [0, 0, 0, 1, 1, 2], [0], [0]>} : vector<8x8x32xf32>, vector<8x32x8xf32>, vector<8x8x8xf32> -> vector<8x8x8xf32>
    %143 = vector.extract_strided_slice %142 {offsets = [0, 0, 0], sizes = [4, 8, 8], strides = [1, 1, 1]} : vector<8x8x8xf32> to vector<4x8x8xf32>
    %144 = vector.extract_strided_slice %142 {offsets = [4, 0, 0], sizes = [4, 8, 8], strides = [1, 1, 1]} : vector<8x8x8xf32> to vector<4x8x8xf32>
    %c0_79 = arith.constant 0 : index
    %c0_80 = arith.constant 0 : index
    %c0_81 = arith.constant 0 : index
    %145 = vector.load %arg21[%c0_79, %c0_80, %c0_81] : memref<4x8x32xf32, #tpu.memory_space<vmem>>, vector<4x8x32xf32>
    %cst_82 = arith.constant dense<0.000000e+00> : vector<4x8x8xf32>
    %146 = tpu.matmul %137, %143, %cst_82 {dimension_numbers = #tpu.dot_dimension_numbers<[2], [2], [1], [1], [0, 0, 0, 1, 1, 1], [0], [0]>} : vector<4x8x8xf32>, vector<4x8x8xf32>, vector<4x8x8xf32> -> vector<4x8x8xf32>
    %147 = vector.shape_cast %1 : vector<1x8xf32> to vector<1x1x8xf32>
    %148 = vector.broadcast %147 : vector<1x1x8xf32> to vector<4x8x8xf32>
    %149 = arith.addf %146, %148 : vector<4x8x8xf32>
    %cst_83 = arith.constant dense<0xFF800000> : vector<4x8xf32>
    %150 = vector.multi_reduction <maximumf>, %149, %cst_83 [2] : vector<4x8x8xf32> to vector<4x8xf32>
    %151 = vector.shape_cast %150 : vector<4x8xf32> to vector<4x8x1xf32>
    %152 = vector.broadcast %151 : vector<4x8x1xf32> to vector<4x8x8xf32>
    %153 = arith.subf %149, %152 : vector<4x8x8xf32>
    %154 = math.exp %153 : vector<4x8x8xf32>
    %cst_84 = arith.constant dense<0.000000e+00> : vector<4x8xf32>
    %155 = vector.multi_reduction <add>, %154, %cst_84 [2] : vector<4x8x8xf32> to vector<4x8xf32>
    %156 = vector.shape_cast %155 : vector<4x8xf32> to vector<4x8x1xf32>
    %157 = tpu.reciprocal %156 {approx = true} : vector<4x8x1xf32> -> vector<4x8x1xf32>
    %158 = vector.broadcast %157 : vector<4x8x1xf32> to vector<4x8x8xf32>
    %159 = arith.mulf %154, %158 : vector<4x8x8xf32>
    %cst_85 = arith.constant dense<0.000000e+00> : vector<4x8x8xf32>
    %160 = tpu.matmul %159, %144, %cst_85 {dimension_numbers = #tpu.dot_dimension_numbers<[2], [1], [1], [2], [0, 0, 0, 1, 1, 2], [0], [0]>} : vector<4x8x8xf32>, vector<4x8x8xf32>, vector<4x8x8xf32> -> vector<4x8x8xf32>
    %cst_86 = arith.constant dense<0.000000e+00> : vector<4x8x32xf32>
    %161 = tpu.matmul %160, %145, %cst_86 {dimension_numbers = #tpu.dot_dimension_numbers<[2], [1], [1], [2], [0, 0, 0, 1, 1, 2], [0], [0]>} : vector<4x8x8xf32>, vector<4x8x32xf32>, vector<4x8x32xf32> -> vector<4x8x32xf32>
    %cst_87 = arith.constant dense<0.000000e+00> : vector<8x32xf32>
    %162 = vector.multi_reduction <add>, %161, %cst_87 [0] : vector<4x8x32xf32> to vector<8x32xf32>
    %163 = arith.addf %119, %162 : vector<8x32xf32>
    %c0_88 = arith.constant 0 : index
    %c0_89 = arith.constant 0 : index
    %164 = vector.load %arg22[%c0_88, %c0_89] : memref<1x32xf32, #tpu.memory_space<vmem>>, vector<1x32xf32>
    %165 = arith.mulf %163, %163 : vector<8x32xf32>
    %cst_90 = arith.constant dense<0.000000e+00> : vector<8xf32>
    %166 = vector.multi_reduction <add>, %165, %cst_90 [1] : vector<8x32xf32> to vector<8xf32>
    %167 = vector.shape_cast %166 : vector<8xf32> to vector<8x1xf32>
    %cst_91 = arith.constant 3.200000e+01 : f32
    %168 = vector.broadcast %cst_91 : f32 to vector<8x1xf32>
    %169 = arith.divf %167, %168 : vector<8x1xf32>
    %cst_92 = arith.constant 9.99999997E-7 : f32
    %170 = vector.broadcast %cst_92 : f32 to vector<8x1xf32>
    %171 = arith.addf %169, %170 : vector<8x1xf32>
    %172 = math.rsqrt %171 : vector<8x1xf32>
    %173 = vector.broadcast %172 : vector<8x1xf32> to vector<8x32xf32>
    %174 = arith.mulf %163, %173 : vector<8x32xf32>
    %175 = vector.broadcast %164 : vector<1x32xf32> to vector<8x32xf32>
    %176 = arith.mulf %174, %175 : vector<8x32xf32>
    %c0_93 = arith.constant 0 : index
    %c0_94 = arith.constant 0 : index
    %177 = vector.load %arg23[%c0_93, %c0_94] : memref<32x64xf32, #tpu.memory_space<vmem>>, vector<32x64xf32>
    %cst_95 = arith.constant dense<0.000000e+00> : vector<8x64xf32>
    %178 = tpu.matmul %176, %177, %cst_95 {dimension_numbers = #tpu.dot_dimension_numbers<[1], [0], [0], [1], [0, 0, 1, 1], [], []>} : vector<8x32xf32>, vector<32x64xf32>, vector<8x64xf32> -> vector<8x64xf32>
    %cst_96 = arith.constant 0.000000e+00 : f32
    %179 = vector.broadcast %cst_96 : f32 to vector<8x64xf32>
    %180 = arith.maximumf %178, %179 : vector<8x64xf32>
    %c0_97 = arith.constant 0 : index
    %c0_98 = arith.constant 0 : index
    %181 = vector.load %arg24[%c0_97, %c0_98] : memref<64x32xf32, #tpu.memory_space<vmem>>, vector<64x32xf32>
    %cst_99 = arith.constant dense<0.000000e+00> : vector<8x32xf32>
    %182 = tpu.matmul %180, %181, %cst_99 {dimension_numbers = #tpu.dot_dimension_numbers<[1], [0], [0], [1], [0, 0, 1, 1], [], []>} : vector<8x64xf32>, vector<64x32xf32>, vector<8x32xf32> -> vector<8x32xf32>
    %183 = arith.addf %163, %182 : vector<8x32xf32>
    %c0_100 = arith.constant 0 : index
    %c0_101 = arith.constant 0 : index
    %184 = vector.load %arg25[%c0_100, %c0_101] : memref<1x32xf32, #tpu.memory_space<vmem>>, vector<1x32xf32>
    %185 = arith.mulf %183, %183 : vector<8x32xf32>
    %cst_102 = arith.constant dense<0.000000e+00> : vector<8xf32>
    %186 = vector.multi_reduction <add>, %185, %cst_102 [1] : vector<8x32xf32> to vector<8xf32>
    %187 = vector.shape_cast %186 : vector<8xf32> to vector<8x1xf32>
    %cst_103 = arith.constant 3.200000e+01 : f32
    %188 = vector.broadcast %cst_103 : f32 to vector<8x1xf32>
    %189 = arith.divf %187, %188 : vector<8x1xf32>
    %cst_104 = arith.constant 9.99999997E-7 : f32
    %190 = vector.broadcast %cst_104 : f32 to vector<8x1xf32>
    %191 = arith.addf %189, %190 : vector<8x1xf32>
    %192 = math.rsqrt %191 : vector<8x1xf32>
    %193 = vector.broadcast %192 : vector<8x1xf32> to vector<8x32xf32>
    %194 = arith.mulf %183, %193 : vector<8x32xf32>
    %195 = vector.broadcast %184 : vector<1x32xf32> to vector<8x32xf32>
    %196 = arith.mulf %194, %195 : vector<8x32xf32>
    %c0_105 = arith.constant 0 : index
    %c0_106 = arith.constant 0 : index
    %197 = vector.load %arg7[%c0_105, %c0_106] : memref<64x32xf32, #tpu.memory_space<vmem>>, vector<64x32xf32>
    %cst_107 = arith.constant dense<0.000000e+00> : vector<8x64xf32>
    %198 = tpu.matmul %196, %197, %cst_107 {dimension_numbers = #tpu.dot_dimension_numbers<[1], [1], [0], [0], [0, 0, 1, 0], [], []>} : vector<8x32xf32>, vector<64x32xf32>, vector<8x64xf32> -> vector<8x64xf32>
    %cst_108 = arith.constant 0.176776692 : f32
    %199 = vector.broadcast %cst_108 : f32 to vector<8x64xf32>
    %200 = arith.mulf %198, %199 : vector<8x64xf32>
    %cst_109 = arith.constant dense<0xFF800000> : vector<8xf32>
    %201 = vector.multi_reduction <maximumf>, %200, %cst_109 [1] : vector<8x64xf32> to vector<8xf32>
    %202 = vector.shape_cast %201 : vector<8xf32> to vector<8x1xf32>
    %203 = vector.broadcast %202 : vector<8x1xf32> to vector<8x64xf32>
    %204 = arith.subf %200, %203 : vector<8x64xf32>
    %205 = math.exp %204 : vector<8x64xf32>
    %cst_110 = arith.constant dense<0.000000e+00> : vector<8xf32>
    %206 = vector.multi_reduction <add>, %205, %cst_110 [1] : vector<8x64xf32> to vector<8xf32>
    %207 = vector.shape_cast %206 : vector<8xf32> to vector<8x1xf32>
    %208 = math.log %207 : vector<8x1xf32>
    %209 = arith.addf %208, %202 : vector<8x1xf32>
    %c0_111 = arith.constant 0 : index
    %c0_112 = arith.constant 0 : index
    %c0_113 = arith.constant 0 : index
    %210 = vector.load %arg4[%c0_111, %c0_112, %c0_113] : memref<1x8x1xi32, #tpu.memory_space<vmem>>, vector<1x8x1xi32>
    %211 = vector.shape_cast %210 : vector<1x8x1xi32> to vector<8x1xi32>
    %212 = tpu.iota {dimensions = array<i32: 1>} : vector<8x64xi32>
    %213 = vector.broadcast %211 : vector<8x1xi32> to vector<8x64xi32>
    %214 = arith.cmpi eq, %212, %213 : vector<8x64xi32>
    %cst_114 = arith.constant 0.000000e+00 : f32
    %215 = vector.broadcast %cst_114 : f32 to vector<8x64xf32>
    %216 = arith.select %214, %200, %215 : vector<8x64xi1>, vector<8x64xf32>
    %cst_115 = arith.constant dense<0.000000e+00> : vector<8xf32>
    %217 = vector.multi_reduction <add>, %216, %cst_115 [1] : vector<8x64xf32> to vector<8xf32>
    %218 = vector.shape_cast %217 : vector<8xf32> to vector<8x1xf32>
    %c-100_i32 = arith.constant -100 : i32
    %219 = vector.broadcast %c-100_i32 : i32 to vector<8x1xi32>
    %220 = arith.cmpi ne, %211, %219 : vector<8x1xi32>
    %c0_116 = arith.constant 0 : index
    %c0_117 = arith.constant 0 : index
    %c0_118 = arith.constant 0 : index
    %221 = vector.load %arg26[%c0_116, %c0_117, %c0_118] : memref<1x8x64xf32, #tpu.memory_space<vmem>>, vector<1x8x64xf32>
    %222 = vector.shape_cast %221 : vector<1x8x64xf32> to vector<8x64xf32>
    %223 = vector.shape_cast %200 : vector<8x64xf32> to vector<1x8x64xf32>
    tpu.vector_store %arg26[%c0_116, %c0_117, %c0_118], %223 {strides = array<i32>} : memref<1x8x64xf32, #tpu.memory_space<vmem>>, vector<1x8x64xf32>,
    %224 = arith.subf %209, %218 : vector<8x1xf32>
    %cst_119 = arith.constant 0.000000e+00 : f32
    %225 = vector.broadcast %cst_119 : f32 to vector<8x1xf32>
    %226 = arith.select %220, %224, %225 : vector<8x1xi1>, vector<8x1xf32>
    %c0_120 = arith.constant 0 : index
    %c0_121 = arith.constant 0 : index
    %c0_122 = arith.constant 0 : index
    %227 = vector.load %arg27[%c0_120, %c0_121, %c0_122] : memref<1x8x1xf32, #tpu.memory_space<vmem>>, vector<1x8x1xf32>
    %228 = vector.shape_cast %227 : vector<1x8x1xf32> to vector<8x1xf32>
    %229 = vector.shape_cast %226 : vector<8x1xf32> to vector<1x8x1xf32>
    tpu.vector_store %arg27[%c0_120, %c0_121, %c0_122], %229 {strides = array<i32>} : memref<1x8x1xf32, #tpu.memory_space<vmem>>, vector<1x8x1xf32>,
    return
  }
  func.func @transform_0(%arg0: i32) -> (i32, i32, i32) {
    %c0_i32 = arith.constant 0 : i32
    %c0_i32_0 = arith.constant 0 : i32
    %c0_i32_1 = arith.constant 0 : i32
    return %arg0, %c0_i32, %c0_i32_0 : i32, i32, i32
  }
  func.func @transform_1(%arg0: i32) -> (i32, i32, i32) {
    %c0_i32 = arith.constant 0 : i32
    %c0_i32_0 = arith.constant 0 : i32
    %c0_i32_1 = arith.constant 0 : i32
    return %arg0, %c0_i32, %c0_i32_0 : i32, i32, i32
  }
  func.func @transform_2(%arg0: i32) -> (i32, i32, i32) {
    %c0_i32 = arith.constant 0 : i32
    %c0_i32_0 = arith.constant 0 : i32
    %c0_i32_1 = arith.constant 0 : i32
    return %arg0, %c0_i32, %c0_i32_0 : i32, i32, i32
  }
  func.func @transform_3(%arg0: i32) -> (i32, i32, i32) {
    %c0_i32 = arith.constant 0 : i32
    %c0_i32_0 = arith.constant 0 : i32
    %c0_i32_1 = arith.constant 0 : i32
    return %arg0, %c0_i32, %c0_i32_0 : i32, i32, i32
  }
  func.func @transform_4(%arg0: i32) -> (i32, i32, i32) {
    %c0_i32 = arith.constant 0 : i32
    %c0_i32_0 = arith.constant 0 : i32
    %c0_i32_1 = arith.constant 0 : i32
    %c0_i32_2 = arith.constant 0 : i32
    return %c0_i32, %c0_i32_0, %c0_i32_1 : i32, i32, i32
  }
  func.func @transform_5(%arg0: i32) -> (i32, i32, i32) {
    %c0_i32 = arith.constant 0 : i32
    %c0_i32_0 = arith.constant 0 : i32
    %c0_i32_1 = arith.constant 0 : i32
    %c0_i32_2 = arith.constant 0 : i32
    return %c0_i32, %c0_i32_0, %c0_i32_1 : i32, i32, i32
  }
  func.func @transform_6(%arg0: i32) -> (i32, i32) {
    %c0_i32 = arith.constant 0 : i32
    %c0_i32_0 = arith.constant 0 : i32
    %c0_i32_1 = arith.constant 0 : i32
    return %c0_i32, %c0_i32_0 : i32, i32
  }
  func.func @transform_7(%arg0: i32) -> (i32, i32) {
    %c0_i32 = arith.constant 0 : i32
    %c0_i32_0 = arith.constant 0 : i32
    %c0_i32_1 = arith.constant 0 : i32
    return %c0_i32, %c0_i32_0 : i32, i32
  }
  func.func @transform_8(%arg0: i32) -> (i32, i32, i32) {
    %c0_i32 = arith.constant 0 : i32
    %c0_i32_0 = arith.constant 0 : i32
    %c0_i32_1 = arith.constant 0 : i32
    %c0_i32_2 = arith.constant 0 : i32
    return %c0_i32, %c0_i32_0, %c0_i32_1 : i32, i32, i32
  }
  func.func @transform_9(%arg0: i32) -> (i32, i32, i32) {
    %c0_i32 = arith.constant 0 : i32
    %c0_i32_0 = arith.constant 0 : i32
    %c0_i32_1 = arith.constant 0 : i32
    %c0_i32_2 = arith.constant 0 : i32
    return %c0_i32, %c0_i32_0, %c0_i32_1 : i32, i32, i32
  }
  func.func @transform_10(%arg0: i32) -> (i32, i32) {
    %c0_i32 = arith.constant 0 : i32
    %c0_i32_0 = arith.constant 0 : i32
    %c0_i32_1 = arith.constant 0 : i32
    return %c0_i32, %c0_i32_0 : i32, i32
  }
  func.func @transform_11(%arg0: i32) -> (i32, i32) {
    %c0_i32 = arith.constant 0 : i32
    %c0_i32_0 = arith.constant 0 : i32
    %c0_i32_1 = arith.constant 0 : i32
    return %c0_i32, %c0_i32_0 : i32, i32
  }
  func.func @transform_12(%arg0: i32) -> (i32, i32) {
    %c0_i32 = arith.constant 0 : i32
    %c0_i32_0 = arith.constant 0 : i32
    %c0_i32_1 = arith.constant 0 : i32
    return %c0_i32, %c0_i32_0 : i32, i32
  }
  func.func @transform_13(%arg0: i32) -> (i32, i32) {
    %c0_i32 = arith.constant 0 : i32
    %c0_i32_0 = arith.constant 0 : i32
    %c0_i32_1 = arith.constant 0 : i32
    return %c0_i32, %c0_i32_0 : i32, i32
  }
  func.func @transform_14(%arg0: i32) -> (i32, i32) {
    %c0_i32 = arith.constant 0 : i32
    %c0_i32_0 = arith.constant 0 : i32
    %c0_i32_1 = arith.constant 0 : i32
    return %c0_i32, %c0_i32_0 : i32, i32
  }
  func.func @transform_15(%arg0: i32) -> (i32, i32, i32) {
    %c0_i32 = arith.constant 0 : i32
    %c0_i32_0 = arith.constant 0 : i32
    %c0_i32_1 = arith.constant 0 : i32
    %c0_i32_2 = arith.constant 0 : i32
    return %c0_i32, %c0_i32_0, %c0_i32_1 : i32, i32, i32
  }
  func.func @transform_16(%arg0: i32) -> (i32, i32, i32) {
    %c0_i32 = arith.constant 0 : i32
    %c0_i32_0 = arith.constant 0 : i32
    %c0_i32_1 = arith.constant 0 : i32
    %c0_i32_2 = arith.constant 0 : i32
    return %c0_i32, %c0_i32_0, %c0_i32_1 : i32, i32, i32
  }
  func.func @transform_17(%arg0: i32) -> (i32, i32) {
    %c0_i32 = arith.constant 0 : i32
    %c0_i32_0 = arith.constant 0 : i32
    %c0_i32_1 = arith.constant 0 : i32
    return %c0_i32, %c0_i32_0 : i32, i32
  }
  func.func @transform_18(%arg0: i32) -> (i32, i32, i32) {
    %c0_i32 = arith.constant 0 : i32
    %c0_i32_0 = arith.constant 0 : i32
    %c0_i32_1 = arith.constant 0 : i32
    %c0_i32_2 = arith.constant 0 : i32
    return %c0_i32, %c0_i32_0, %c0_i32_1 : i32, i32, i32
  }
  func.func @transform_19(%arg0: i32) -> (i32, i32, i32) {
    %c0_i32 = arith.constant 0 : i32
    %c0_i32_0 = arith.constant 0 : i32
    %c0_i32_1 = arith.constant 0 : i32
    %c0_i32_2 = arith.constant 0 : i32
    return %c0_i32, %c0_i32_0, %c0_i32_1 : i32, i32, i32
  }
  func.func @transform_20(%arg0: i32) -> (i32, i32, i32) {
    %c0_i32 = arith.constant 0 : i32
    %c0_i32_0 = arith.constant 0 : i32
    %c0_i32_1 = arith.constant 0 : i32
    %c0_i32_2 = arith.constant 0 : i32
    return %c0_i32, %c0_i32_0, %c0_i32_1 : i32, i32, i32
  }
  func.func @transform_21(%arg0: i32) -> (i32, i32) {
    %c0_i32 = arith.constant 0 : i32
    %c0_i32_0 = arith.constant 0 : i32
    %c0_i32_1 = arith.constant 0 : i32
    return %c0_i32, %c0_i32_0 : i32, i32
  }
  func.func @transform_22(%arg0: i32) -> (i32, i32) {
    %c0_i32 = arith.constant 0 : i32
    %c0_i32_0 = arith.constant 0 : i32
    %c0_i32_1 = arith.constant 0 : i32
    return %c0_i32, %c0_i32_0 : i32, i32
  }
  func.func @transform_23(%arg0: i32) -> (i32, i32) {
    %c0_i32 = arith.constant 0 : i32
    %c0_i32_0 = arith.constant 0 : i32
    %c0_i32_1 = arith.constant 0 : i32
    return %c0_i32, %c0_i32_0 : i32, i32
  }
  func.func @transform_24(%arg0: i32) -> (i32, i32) {
    %c0_i32 = arith.constant 0 : i32
    %c0_i32_0 = arith.constant 0 : i32
    %c0_i32_1 = arith.constant 0 : i32
    return %c0_i32, %c0_i32_0 : i32, i32
  }
  func.func @transform_25(%arg0: i32) -> (i32, i32, i32) {
    %c0_i32 = arith.constant 0 : i32
    %c0_i32_0 = arith.constant 0 : i32
    %c0_i32_1 = arith.constant 0 : i32
    return %arg0, %c0_i32, %c0_i32_0 : i32, i32, i32
  }
  func.func @transform_26(%arg0: i32) -> (i32, i32, i32) {
    %c0_i32 = arith.constant 0 : i32
    %c0_i32_0 = arith.constant 0 : i32
    %c0_i32_1 = arith.constant 0 : i32
    return %arg0, %c0_i32, %c0_i32_0 : i32, i32, i32
  }
}

</mosaic_0001>

<llo_original>
// kernel: fld_forward.1
$region0: #{fld_forward.1}
  #allocation0 [shape = 'u32[]', space=smem, size = 0x4, offset = 0x4, fixed_abs, tag = 'smem constant byte address 0x4 - core index']
  #allocation1 [shape = 'u32[72,128]{1,0:T(1,128)}', space=vmem, size = 0x9000, scoped, tag = 'internal scratch']
  %s0 = inlined_call_operand.vmem [shape: f32[2,8,32], index: 0, kind: input, shape index: {}]
  %s1 = inlined_call_operand.vmem [shape: f32[2,1,8], index: 1, kind: input, shape index: {}]
  %s2 = inlined_call_operand.vmem [shape: f32[2,8,32], index: 2, kind: input, shape index: {}]
  %s3 = inlined_call_operand.vmem [shape: s32[2,8,1], index: 3, kind: input, shape index: {}]
  %s4 = inlined_call_operand.vmem [shape: f32[4,8,8], index: 4, kind: input, shape index: {}]
  %s5 = inlined_call_operand.vmem [shape: f32[4,8,8], index: 5, kind: input, shape index: {}]
  %s6 = inlined_call_operand.vmem [shape: f32[64,32], index: 6, kind: input, shape index: {}]
  %s7 = inlined_call_operand.vmem [shape: f32[1,32], index: 7, kind: input, shape index: {}]
  %s8 = inlined_call_operand.vmem [shape: f32[12,32,8], index: 8, kind: input, shape index: {}]
  %s9 = inlined_call_operand.vmem [shape: f32[4,8,32], index: 9, kind: input, shape index: {}]
  %s10 = inlined_call_operand.vmem [shape: f32[1,32], index: 10, kind: input, shape index: {}]
  %s11 = inlined_call_operand.vmem [shape: f32[32,64], index: 11, kind: input, shape index: {}]
  %s12 = inlined_call_operand.vmem [shape: f32[64,32], index: 12, kind: input, shape index: {}]
  %s13 = inlined_call_operand.vmem [shape: f32[1,32], index: 13, kind: input, shape index: {}]
  %s14 = inlined_call_operand.vmem [shape: f32[1,32], index: 14, kind: input, shape index: {}]
  %s15 = inlined_call_operand.vmem [shape: f32[12,32,8], index: 15, kind: input, shape index: {}]
  %s16 = inlined_call_operand.vmem [shape: f32[4,8,32], index: 16, kind: input, shape index: {}]
  %s17 = inlined_call_operand.vmem [shape: f32[1,32], index: 17, kind: input, shape index: {}]
  %s18 = inlined_call_operand.vmem [shape: f32[4,32,8], index: 18, kind: input, shape index: {}]
  %s19 = inlined_call_operand.vmem [shape: f32[8,32,8], index: 19, kind: input, shape index: {}]
  %s20 = inlined_call_operand.vmem [shape: f32[4,8,32], index: 20, kind: input, shape index: {}]
  %s21 = inlined_call_operand.vmem [shape: f32[1,32], index: 21, kind: input, shape index: {}]
  %s22 = inlined_call_operand.vmem [shape: f32[32,64], index: 22, kind: input, shape index: {}]
  %s23 = inlined_call_operand.vmem [shape: f32[64,32], index: 23, kind: input, shape index: {}]
  %s24 = inlined_call_operand.vmem [shape: f32[1,32], index: 24, kind: input, shape index: {}]
  %s25 = inlined_call_operand.hbm [shape: f32[2,8,64], index: 25, kind: output, shape index: {0}]
  %s26 = inlined_call_operand.vmem [shape: f32[2,8,1], index: 26, kind: output, shape index: {1}]
  %27 = xla_tuple %s25, %s26
  %s28 = sld [smem:[#allocation0]]
  $region141: #{fld_forward.1} parent=0
    _
  %s30 = ssub.s32 1, %s28
  %s31 = scalar_select 0, %s30, %s28
  $region1: #{fld_forward.1} parent=0
    #allocation2 [shape = 'u8[8192]{0}', space=vmem, size = 0x2000, scoped, tag = 'output window, operand 0']
    #allocation3 [shape = 's32[2]{0}', space=sflag, size = 0x8, scoped, tag = 'scoped memory for fld_forward.1']
    %32 = vsyncpa [#allocation3], 0
    %s33 = scalar_lea.sflag [#allocation3], 1
    %34 = vsyncpa %s33, 0
    loop: start=0, step=1, limit=4
    $region2: #{fld_forward.1} parent=1 // loop_pre_header
      _
    $region3: #{fld_forward.1} parent=1 // loop_header
      %s36 = sphi 0, %s40
      %p37 = scmp.ge.s32.totalorder %s36, 4
      %s46 = sphi 0, %s48
      %s49 = sphi 0, %s46
      %s50 = sphi 0, %s49
      %s66 = sphi 0, %s50
      %s72 = sphi 0, %s74
      %s75 = sphi 0, %s72
      %s76 = sphi 0, %s75
      %s92 = sphi 0, %s76
      %s98 = sphi 0, %s100
      %s101 = sphi 0, %s98
      %s102 = sphi 0, %s101
      %s118 = sphi 0, %s102
      %s124 = sphi 0, %s126
      %s127 = sphi 0, %s124
      %s128 = sphi 0, %s127
      %s144 = sphi 0, %s128
      %s148 = sphi 0, %s148
      %s150 = sphi 0, %s148
      %s151 = sphi 0, %s150
      %s165 = sphi 0, %s151
      %s169 = sphi 0, %s169
      %s171 = sphi 0, %s169
      %s172 = sphi 0, %s171
      %s186 = sphi 0, %s172
      %s190 = sphi 0, %s190
      %s192 = sphi 0, %s190
      %s193 = sphi 0, %s192
      %s207 = sphi 0, %s193
      %s211 = sphi 0, %s211
      %s213 = sphi 0, %s211
      %s214 = sphi 0, %s213
      %s228 = sphi 0, %s214
      %s232 = sphi 0, %s232
      %s234 = sphi 0, %s232
      %s235 = sphi 0, %s234
      %s249 = sphi 0, %s235
      %s253 = sphi 0, %s253
      %s255 = sphi 0, %s253
      %s256 = sphi 0, %s255
      %s270 = sphi 0, %s256
      %s274 = sphi 0, %s274
      %s276 = sphi 0, %s274
      %s277 = sphi 0, %s276
      %s291 = sphi 0, %s277
      %s295 = sphi 0, %s295
      %s297 = sphi 0, %s295
      %s298 = sphi 0, %s297
      %s312 = sphi 0, %s298
      %s316 = sphi 0, %s316
      %s318 = sphi 0, %s316
      %s319 = sphi 0, %s318
      %s333 = sphi 0, %s319
      %s337 = sphi 0, %s337
      %s339 = sphi 0, %s337
      %s340 = sphi 0, %s339
      %s354 = sphi 0, %s340
      %s358 = sphi 0, %s358
      %s360 = sphi 0, %s358
      %s361 = sphi 0, %s360
      %s375 = sphi 0, %s361
      %s379 = sphi 0, %s379
      %s381 = sphi 0, %s379
      %s382 = sphi 0, %s381
      %s396 = sphi 0, %s382
      %s400 = sphi 0, %s400
      %s402 = sphi 0, %s400
      %s403 = sphi 0, %s402
      %s417 = sphi 0, %s403
      %s421 = sphi 0, %s421
      %s423 = sphi 0, %s421
      %s424 = sphi 0, %s423
      %s438 = sphi 0, %s424
      %s442 = sphi 0, %s442
      %s444 = sphi 0, %s442
      %s445 = sphi 0, %s444
      %s459 = sphi 0, %s445
      %s463 = sphi 0, %s463
      %s465 = sphi 0, %s463
      %s466 = sphi 0, %s465
      %s480 = sphi 0, %s466
      %s484 = sphi 0, %s484
      %s486 = sphi 0, %s484
      %s487 = sphi 0, %s486
      %s501 = sphi 0, %s487
      %s505 = sphi 0, %s505
      %s507 = sphi 0, %s505
      %s508 = sphi 0, %s507
      %s522 = sphi 0, %s508
      %s526 = sphi 0, %s526
      %s528 = sphi 0, %s526
      %s529 = sphi 0, %s528
      %s543 = sphi 0, %s529
      %s547 = sphi 0, %s547
      %s549 = sphi 0, %s547
      %s550 = sphi 0, %s549
      %s564 = sphi 0, %s550
      %s568 = sphi 0, %s568
      %s570 = sphi 0, %s568
      %s571 = sphi 0, %s570
      %s585 = sphi 0, %s571
      %s591 = sphi 0, %s593
      %s594 = sphi 0, %s591
      %s595 = sphi 0, %s594
      %s611 = sphi 0, %s595
      %s617 = sphi 0, %s619
      %s620 = sphi 0, %s617
      %s621 = sphi 0, %s620
      %s637 = sphi 0, %s621
    $region4: #{fld_forward.1} parent=1 // loop_header_branch
      %39 = sbr.rel (%p37) target = $region8
    $region5: #{fld_forward.1} parent=1 // loop_body
      %s41 = ssub.s32 %s36, 1
      %s42 = ssub.s32 %s36, 2
      %s43 = sadd.s32 %s36, 1
      %s44 = ssub.s32 %s36, %s43
      %p45 = scmp.eq.s32.totalorder %s44, 0
      %s47 = sadd.s32 %s46, 1
      %s48 = scalar_select %p45, %s46, %s47
      %p51 = pneg %p45
      %p52 = scmp.eq.s32.totalorder %s36, 1
      %p53 = por %p51, %p52
      %p54 = scmp.ne.s32.totalorder %s46, %s49
      %p55 = scmp.eq.s32.totalorder %s36, 0
      %p56 = por %p54, %p55
      %p57 = scmp.ne.s32.totalorder %s46, %s49
      %p58 = scmp.eq.s32.totalorder %s41, 1
      %p59 = por %p57, %p58
      %p60 = scmp.ne.s32.totalorder %s49, %s50
      %p61 = scmp.eq.s32.totalorder %s41, 0
      %p62 = por %p60, %p61
      %p63 = scmp.ne.s32.totalorder %s49, %s50
      %p64 = scmp.eq.s32.totalorder %s42, 1
      %p65 = por %p63, %p64
      %p67 = scmp.ne.s32.totalorder %s50, %s66
      %p68 = scmp.eq.s32.totalorder %s42, 0
      %p69 = por %p67, %p68
      %s70 = ssub.s32 %s36, %s43
      %p71 = scmp.eq.s32.totalorder %s70, 0
      %s73 = sadd.s32 %s72, 1
      %s74 = scalar_select %p71, %s72, %s73
      %p77 = pneg %p71
      %p78 = scmp.eq.s32.totalorder %s36, 1
      %p79 = por %p77, %p78
      %p80 = scmp.ne.s32.totalorder %s72, %s75
      %p81 = scmp.eq.s32.totalorder %s36, 0
      %p82 = por %p80, %p81
      %p83 = scmp.ne.s32.totalorder %s72, %s75
      %p84 = scmp.eq.s32.totalorder %s41, 1
      %p85 = por %p83, %p84
      %p86 = scmp.ne.s32.totalorder %s75, %s76
      %p87 = scmp.eq.s32.totalorder %s41, 0
      %p88 = por %p86, %p87
      %p89 = scmp.ne.s32.totalorder %s75, %s76
      %p90 = scmp.eq.s32.totalorder %s42, 1
      %p91 = por %p89, %p90
      %p93 = scmp.ne.s32.totalorder %s76, %s92
      %p94 = scmp.eq.s32.totalorder %s42, 0
      %p95 = por %p93, %p94
      %s96 = ssub.s32 %s36, %s43
      %p97 = scmp.eq.s32.totalorder %s96, 0
      %s99 = sadd.s32 %s98, 1
      %s100 = scalar_select %p97, %s98, %s99
      %p103 = pneg %p97
      %p104 = scmp.eq.s32.totalorder %s36, 1
      %p105 = por %p103, %p104
      %p106 = scmp.ne.s32.totalorder %s98, %s101
      %p107 = scmp.eq.s32.totalorder %s36, 0
      %p108 = por %p106, %p107
      %p109 = scmp.ne.s32.totalorder %s98, %s101
      %p110 = scmp.eq.s32.totalorder %s41, 1
      %p111 = por %p109, %p110
      %p112 = scmp.ne.s32.totalorder %s101, %s102
      %p113 = scmp.eq.s32.totalorder %s41, 0
      %p114 = por %p112, %p113
      %p115 = scmp.ne.s32.totalorder %s101, %s102
      %p116 = scmp.eq.s32.totalorder %s42, 1
      %p117 = por %p115, %p116
      %p119 = scmp.ne.s32.totalorder %s102, %s118
      %p120 = scmp.eq.s32.totalorder %s42, 0
      %p121 = por %p119, %p120
      %s122 = ssub.s32 %s36, %s43
      %p123 = scmp.eq.s32.totalorder %s122, 0
      %s125 = sadd.s32 %s124, 1
      %s126 = scalar_select %p123, %s124, %s125
      %p129 = pneg %p123
      %p130 = scmp.eq.s32.totalorder %s36, 1
      %p131 = por %p129, %p130
      %p132 = scmp.ne.s32.totalorder %s124, %s127
      %p133 = scmp.eq.s32.totalorder %s36, 0
      %p134 = por %p132, %p133
      %p135 = scmp.ne.s32.totalorder %s124, %s127
      %p136 = scmp.eq.s32.totalorder %s41, 1
      %p137 = por %p135, %p136
      %p138 = scmp.ne.s32.totalorder %s127, %s128
      %p139 = scmp.eq.s32.totalorder %s41, 0
      %p140 = por %p138, %p139
      %p141 = scmp.ne.s32.totalorder %s127, %s128
      %p142 = scmp.eq.s32.totalorder %s42, 1
      %p143 = por %p141, %p142
      %p145 = scmp.ne.s32.totalorder %s128, %s144
      %p146 = scmp.eq.s32.totalorder %s42, 0
      %p147 = por %p145, %p146
      %s149 = sadd.s32 %s148, 1
      %p152 = scmp.eq.s32.totalorder %s36, 1
      %p153 = scmp.ne.s32.totalorder %s148, %s150
      %p154 = scmp.eq.s32.totalorder %s36, 0
      %p155 = por %p153, %p154
      %p156 = scmp.ne.s32.totalorder %s148, %s150
      %p157 = scmp.eq.s32.totalorder %s41, 1
      %p158 = por %p156, %p157
      %p159 = scmp.ne.s32.totalorder %s150, %s151
      %p160 = scmp.eq.s32.totalorder %s41, 0
      %p161 = por %p159, %p160
      %p162 = scmp.ne.s32.totalorder %s150, %s151
      %p163 = scmp.eq.s32.totalorder %s42, 1
      %p164 = por %p162, %p163
      %p166 = scmp.ne.s32.totalorder %s151, %s165
      %p167 = scmp.eq.s32.totalorder %s42, 0
      %p168 = por %p166, %p167
      %s170 = sadd.s32 %s169, 1
      %p173 = scmp.eq.s32.totalorder %s36, 1
      %p174 = scmp.ne.s32.totalorder %s169, %s171
      %p175 = scmp.eq.s32.totalorder %s36, 0
      %p176 = por %p174, %p175
      %p177 = scmp.ne.s32.totalorder %s169, %s171
      %p178 = scmp.eq.s32.totalorder %s41, 1
      %p179 = por %p177, %p178
      %p180 = scmp.ne.s32.totalorder %s171, %s172
      %p181 = scmp.eq.s32.totalorder %s41, 0
      %p182 = por %p180, %p181
      %p183 = scmp.ne.s32.totalorder %s171, %s172
      %p184 = scmp.eq.s32.totalorder %s42, 1
      %p185 = por %p183, %p184
      %p187 = scmp.ne.s32.totalorder %s172, %s186
      %p188 = scmp.eq.s32.totalorder %s42, 0
      %p189 = por %p187, %p188
      %s191 = sadd.s32 %s190, 1
      %p194 = scmp.eq.s32.totalorder %s36, 1
      %p195 = scmp.ne.s32.totalorder %s190, %s192
      %p196 = scmp.eq.s32.totalorder %s36, 0
      %p197 = por %p195, %p196
      %p198 = scmp.ne.s32.totalorder %s190, %s192
      %p199 = scmp.eq.s32.totalorder %s41, 1
      %p200 = por %p198, %p199
      %p201 = scmp.ne.s32.totalorder %s192, %s193
      %p202 = scmp.eq.s32.totalorder %s41, 0
      %p203 = por %p201, %p202
      %p204 = scmp.ne.s32.totalorder %s192, %s193
      %p205 = scmp.eq.s32.totalorder %s42, 1
      %p206 = por %p204, %p205
      %p208 = scmp.ne.s32.totalorder %s193, %s207
      %p209 = scmp.eq.s32.totalorder %s42, 0
      %p210 = por %p208, %p209
      %s212 = sadd.s32 %s211, 1
      %p215 = scmp.eq.s32.totalorder %s36, 1
      %p216 = scmp.ne.s32.totalorder %s211, %s213
      %p217 = scmp.eq.s32.totalorder %s36, 0
      %p218 = por %p216, %p217
      %p219 = scmp.ne.s32.totalorder %s211, %s213
      %p220 = scmp.eq.s32.totalorder %s41, 1
      %p221 = por %p219, %p220
      %p222 = scmp.ne.s32.totalorder %s213, %s214
      %p223 = scmp.eq.s32.totalorder %s41, 0
      %p224 = por %p222, %p223
      %p225 = scmp.ne.s32.totalorder %s213, %s214
      %p226 = scmp.eq.s32.totalorder %s42, 1
      %p227 = por %p225, %p226
      %p229 = scmp.ne.s32.totalorder %s214, %s228
      %p230 = scmp.eq.s32.totalorder %s42, 0
      %p231 = por %p229, %p230
      %s233 = sadd.s32 %s232, 1
      %p236 = scmp.eq.s32.totalorder %s36, 1
      %p237 = scmp.ne.s32.totalorder %s232, %s234
      %p238 = scmp.eq.s32.totalorder %s36, 0
      %p239 = por %p237, %p238
      %p240 = scmp.ne.s32.totalorder %s232, %s234
      %p241 = scmp.eq.s32.totalorder %s41, 1
      %p242 = por %p240, %p241
      %p243 = scmp.ne.s32.totalorder %s234, %s235
      %p244 = scmp.eq.s32.totalorder %s41, 0
      %p245 = por %p243, %p244
      %p246 = scmp.ne.s32.totalorder %s234, %s235
      %p247 = scmp.eq.s32.totalorder %s42, 1
      %p248 = por %p246, %p247
      %p250 = scmp.ne.s32.totalorder %s235, %s249
      %p251 = scmp.eq.s32.totalorder %s42, 0
      %p252 = por %p250, %p251
      %s254 = sadd.s32 %s253, 1
      %p257 = scmp.eq.s32.totalorder %s36, 1
      %p258 = scmp.ne.s32.totalorder %s253, %s255
      %p259 = scmp.eq.s32.totalorder %s36, 0
      %p260 = por %p258, %p259
      %p261 = scmp.ne.s32.totalorder %s253, %s255
      %p262 = scmp.eq.s32.totalorder %s41, 1
      %p263 = por %p261, %p262
      %p264 = scmp.ne.s32.totalorder %s255, %s256
      %p265 = scmp.eq.s32.totalorder %s41, 0
      %p266 = por %p264, %p265
      %p267 = scmp.ne.s32.totalorder %s255, %s256
      %p268 = scmp.eq.s32.totalorder %s42, 1
      %p269 = por %p267, %p268
      %p271 = scmp.ne.s32.totalorder %s256, %s270
      %p272 = scmp.eq.s32.totalorder %s42, 0
      %p273 = por %p271, %p272
      %s275 = sadd.s32 %s274, 1
      %p278 = scmp.eq.s32.totalorder %s36, 1
      %p279 = scmp.ne.s32.totalorder %s274, %s276
      %p280 = scmp.eq.s32.totalorder %s36, 0
      %p281 = por %p279, %p280
      %p282 = scmp.ne.s32.totalorder %s274, %s276
      %p283 = scmp.eq.s32.totalorder %s41, 1
      %p284 = por %p282, %p283
      %p285 = scmp.ne.s32.totalorder %s276, %s277
      %p286 = scmp.eq.s32.totalorder %s41, 0
      %p287 = por %p285, %p286
      %p288 = scmp.ne.s32.totalorder %s276, %s277
      %p289 = scmp.eq.s32.totalorder %s42, 1
      %p290 = por %p288, %p289
      %p292 = scmp.ne.s32.totalorder %s277, %s291
      %p293 = scmp.eq.s32.totalorder %s42, 0
      %p294 = por %p292, %p293
      %s296 = sadd.s32 %s295, 1
      %p299 = scmp.eq.s32.totalorder %s36, 1
      %p300 = scmp.ne.s32.totalorder %s295, %s297
      %p301 = scmp.eq.s32.totalorder %s36, 0
      %p302 = por %p300, %p301
      %p303 = scmp.ne.s32.totalorder %s295, %s297
      %p304 = scmp.eq.s32.totalorder %s41, 1
      %p305 = por %p303, %p304
      %p306 = scmp.ne.s32.totalorder %s297, %s298
      %p307 = scmp.eq.s32.totalorder %s41, 0
      %p308 = por %p306, %p307
      %p309 = scmp.ne.s32.totalorder %s297, %s298
      %p310 = scmp.eq.s32.totalorder %s42, 1
      %p311 = por %p309, %p310
      %p313 = scmp.ne.s32.totalorder %s298, %s312
      %p314 = scmp.eq.s32.totalorder %s42, 0
      %p315 = por %p313, %p314
      %s317 = sadd.s32 %s316, 1
      %p320 = scmp.eq.s32.totalorder %s36, 1
      %p321 = scmp.ne.s32.totalorder %s316, %s318
      %p322 = scmp.eq.s32.totalorder %s36, 0
      %p323 = por %p321, %p322
      %p324 = scmp.ne.s32.totalorder %s316, %s318
      %p325 = scmp.eq.s32.totalorder %s41, 1
      %p326 = por %p324, %p325
      %p327 = scmp.ne.s32.totalorder %s318, %s319
      %p328 = scmp.eq.s32.totalorder %s41, 0
      %p329 = por %p327, %p328
      %p330 = scmp.ne.s32.totalorder %s318, %s319
      %p331 = scmp.eq.s32.totalorder %s42, 1
      %p332 = por %p330, %p331
      %p334 = scmp.ne.s32.totalorder %s319, %s333
      %p335 = scmp.eq.s32.totalorder %s42, 0
      %p336 = por %p334, %p335
      %s338 = sadd.s32 %s337, 1
      %p341 = scmp.eq.s32.totalorder %s36, 1
      %p342 = scmp.ne.s32.totalorder %s337, %s339
      %p343 = scmp.eq.s32.totalorder %s36, 0
      %p344 = por %p342, %p343
      %p345 = scmp.ne.s32.totalorder %s337, %s339
      %p346 = scmp.eq.s32.totalorder %s41, 1
      %p347 = por %p345, %p346
      %p348 = scmp.ne.s32.totalorder %s339, %s340
      %p349 = scmp.eq.s32.totalorder %s41, 0
      %p350 = por %p348, %p349
      %p351 = scmp.ne.s32.totalorder %s339, %s340
      %p352 = scmp.eq.s32.totalorder %s42, 1
      %p353 = por %p351, %p352
      %p355 = scmp.ne.s32.totalorder %s340, %s354
      %p356 = scmp.eq.s32.totalorder %s42, 0
      %p357 = por %p355, %p356
      %s359 = sadd.s32 %s358, 1
      %p362 = scmp.eq.s32.totalorder %s36, 1
      %p363 = scmp.ne.s32.totalorder %s358, %s360
      %p364 = scmp.eq.s32.totalorder %s36, 0
      %p365 = por %p363, %p364
      %p366 = scmp.ne.s32.totalorder %s358, %s360
      %p367 = scmp.eq.s32.totalorder %s41, 1
      %p368 = por %p366, %p367
      %p369 = scmp.ne.s32.totalorder %s360, %s361
      %p370 = scmp.eq.s32.totalorder %s41, 0
      %p371 = por %p369, %p370
      %p372 = scmp.ne.s32.totalorder %s360, %s361
      %p373 = scmp.eq.s32.totalorder %s42, 1
      %p374 = por %p372, %p373
      %p376 = scmp.ne.s32.totalorder %s361, %s375
      %p377 = scmp.eq.s32.totalorder %s42, 0
      %p378 = por %p376, %p377
      %s380 = sadd.s32 %s379, 1
      %p383 = scmp.eq.s32.totalorder %s36, 1
      %p384 = scmp.ne.s32.totalorder %s379, %s381
      %p385 = scmp.eq.s32.totalorder %s36, 0
      %p386 = por %p384, %p385
      %p387 = scmp.ne.s32.totalorder %s379, %s381
      %p388 = scmp.eq.s32.totalorder %s41, 1
      %p389 = por %p387, %p388
      %p390 = scmp.ne.s32.totalorder %s381, %s382
      %p391 = scmp.eq.s32.totalorder %s41, 0
      %p392 = por %p390, %p391
      %p393 = scmp.ne.s32.totalorder %s381, %s382
      %p394 = scmp.eq.s32.totalorder %s42, 1
      %p395 = por %p393, %p394
      %p397 = scmp.ne.s32.totalorder %s382, %s396
      %p398 = scmp.eq.s32.totalorder %s42, 0
      %p399 = por %p397, %p398
      %s401 = sadd.s32 %s400, 1
      %p404 = scmp.eq.s32.totalorder %s36, 1
      %p405 = scmp.ne.s32.totalorder %s400, %s402
      %p406 = scmp.eq.s32.totalorder %s36, 0
      %p407 = por %p405, %p406
      %p408 = scmp.ne.s32.totalorder %s400, %s402
      %p409 = scmp.eq.s32.totalorder %s41, 1
      %p410 = por %p408, %p409
      %p411 = scmp.ne.s32.totalorder %s402, %s403
      %p412 = scmp.eq.s32.totalorder %s41, 0
      %p413 = por %p411, %p412
      %p414 = scmp.ne.s32.totalorder %s402, %s403
      %p415 = scmp.eq.s32.totalorder %s42, 1
      %p416 = por %p414, %p415
      %p418 = scmp.ne.s32.totalorder %s403, %s417
      %p419 = scmp.eq.s32.totalorder %s42, 0
      %p420 = por %p418, %p419
      %s422 = sadd.s32 %s421, 1
      %p425 = scmp.eq.s32.totalorder %s36, 1
      %p426 = scmp.ne.s32.totalorder %s421, %s423
      %p427 = scmp.eq.s32.totalorder %s36, 0
      %p428 = por %p426, %p427
      %p429 = scmp.ne.s32.totalorder %s421, %s423
      %p430 = scmp.eq.s32.totalorder %s41, 1
      %p431 = por %p429, %p430
      %p432 = scmp.ne.s32.totalorder %s423, %s424
      %p433 = scmp.eq.s32.totalorder %s41, 0
      %p434 = por %p432, %p433
      %p435 = scmp.ne.s32.totalorder %s423, %s424
      %p436 = scmp.eq.s32.totalorder %s42, 1
      %p437 = por %p435, %p436
      %p439 = scmp.ne.s32.totalorder %s424, %s438
      %p440 = scmp.eq.s32.totalorder %s42, 0
      %p441 = por %p439, %p440
      %s443 = sadd.s32 %s442, 1
      %p446 = scmp.eq.s32.totalorder %s36, 1
      %p447 = scmp.ne.s32.totalorder %s442, %s444
      %p448 = scmp.eq.s32.totalorder %s36, 0
      %p449 = por %p447, %p448
      %p450 = scmp.ne.s32.totalorder %s442, %s444
      %p451 = scmp.eq.s32.totalorder %s41, 1
      %p452 = por %p450, %p451
      %p453 = scmp.ne.s32.totalorder %s444, %s445
      %p454 = scmp.eq.s32.totalorder %s41, 0
      %p455 = por %p453, %p454
      %p456 = scmp.ne.s32.totalorder %s444, %s445
      %p457 = scmp.eq.s32.totalorder %s42, 1
      %p458 = por %p456, %p457
      %p460 = scmp.ne.s32.totalorder %s445, %s459
      %p461 = scmp.eq.s32.totalorder %s42, 0
      %p462 = por %p460, %p461
      %s464 = sadd.s32 %s463, 1
      %p467 = scmp.eq.s32.totalorder %s36, 1
      %p468 = scmp.ne.s32.totalorder %s463, %s465
      %p469 = scmp.eq.s32.totalorder %s36, 0
      %p470 = por %p468, %p469
      %p471 = scmp.ne.s32.totalorder %s463, %s465
      %p472 = scmp.eq.s32.totalorder %s41, 1
      %p473 = por %p471, %p472
      %p474 = scmp.ne.s32.totalorder %s465, %s466
      %p475 = scmp.eq.s32.totalorder %s41, 0
      %p476 = por %p474, %p475
      %p477 = scmp.ne.s32.totalorder %s465, %s466
      %p478 = scmp.eq.s32.totalorder %s42, 1
      %p479 = por %p477, %p478
      %p481 = scmp.ne.s32.totalorder %s466, %s480
      %p482 = scmp.eq.s32.totalorder %s42, 0
      %p483 = por %p481, %p482
      %s485 = sadd.s32 %s484, 1
      %p488 = scmp.eq.s32.totalorder %s36, 1
      %p489 = scmp.ne.s32.totalorder %s484, %s486
      %p490 = scmp.eq.s32.totalorder %s36, 0
      %p491 = por %p489, %p490
      %p492 = scmp.ne.s32.totalorder %s484, %s486
      %p493 = scmp.eq.s32.totalorder %s41, 1
      %p494 = por %p492, %p493
      %p495 = scmp.ne.s32.totalorder %s486, %s487
      %p496 = scmp.eq.s32.totalorder %s41, 0
      %p497 = por %p495, %p496
      %p498 = scmp.ne.s32.totalorder %s486, %s487
      %p499 = scmp.eq.s32.totalorder %s42, 1
      %p500 = por %p498, %p499
      %p502 = scmp.ne.s32.totalorder %s487, %s501
      %p503 = scmp.eq.s32.totalorder %s42, 0
      %p504 = por %p502, %p503
      %s506 = sadd.s32 %s505, 1
      %p509 = scmp.eq.s32.totalorder %s36, 1
      %p510 = scmp.ne.s32.totalorder %s505, %s507
      %p511 = scmp.eq.s32.totalorder %s36, 0
      %p512 = por %p510, %p511
      %p513 = scmp.ne.s32.totalorder %s505, %s507
      %p514 = scmp.eq.s32.totalorder %s41, 1
      %p515 = por %p513, %p514
      %p516 = scmp.ne.s32.totalorder %s507, %s508
      %p517 = scmp.eq.s32.totalorder %s41, 0
      %p518 = por %p516, %p517
      %p519 = scmp.ne.s32.totalorder %s507, %s508
      %p520 = scmp.eq.s32.totalorder %s42, 1
      %p521 = por %p519, %p520
      %p523 = scmp.ne.s32.totalorder %s508, %s522
      %p524 = scmp.eq.s32.totalorder %s42, 0
      %p525 = por %p523, %p524
      %s527 = sadd.s32 %s526, 1
      %p530 = scmp.eq.s32.totalorder %s36, 1
      %p531 = scmp.ne.s32.totalorder %s526, %s528
      %p532 = scmp.eq.s32.totalorder %s36, 0
      %p533 = por %p531, %p532
      %p534 = scmp.ne.s32.totalorder %s526, %s528
      %p535 = scmp.eq.s32.totalorder %s41, 1
      %p536 = por %p534, %p535
      %p537 = scmp.ne.s32.totalorder %s528, %s529
      %p538 = scmp.eq.s32.totalorder %s41, 0
      %p539 = por %p537, %p538
      %p540 = scmp.ne.s32.totalorder %s528, %s529
      %p541 = scmp.eq.s32.totalorder %s42, 1
      %p542 = por %p540, %p541
      %p544 = scmp.ne.s32.totalorder %s529, %s543
      %p545 = scmp.eq.s32.totalorder %s42, 0
      %p546 = por %p544, %p545
      %s548 = sadd.s32 %s547, 1
      %p551 = scmp.eq.s32.totalorder %s36, 1
      %p552 = scmp.ne.s32.totalorder %s547, %s549
      %p553 = scmp.eq.s32.totalorder %s36, 0
      %p554 = por %p552, %p553
      %p555 = scmp.ne.s32.totalorder %s547, %s549
      %p556 = scmp.eq.s32.totalorder %s41, 1
      %p557 = por %p555, %p556
      %p558 = scmp.ne.s32.totalorder %s549, %s550
      %p559 = scmp.eq.s32.totalorder %s41, 0
      %p560 = por %p558, %p559
      %p561 = scmp.ne.s32.totalorder %s549, %s550
      %p562 = scmp.eq.s32.totalorder %s42, 1
      %p563 = por %p561, %p562
      %p565 = scmp.ne.s32.totalorder %s550, %s564
      %p566 = scmp.eq.s32.totalorder %s42, 0
      %p567 = por %p565, %p566
      %s569 = sadd.s32 %s568, 1
      %p572 = scmp.eq.s32.totalorder %s36, 1
      %p573 = scmp.ne.s32.totalorder %s568, %s570
      %p574 = scmp.eq.s32.totalorder %s36, 0
      %p575 = por %p573, %p574
      %p576 = scmp.ne.s32.totalorder %s568, %s570
      %p577 = scmp.eq.s32.totalorder %s41, 1
      %p578 = por %p576, %p577
      %p579 = scmp.ne.s32.totalorder %s570, %s571
      %p580 = scmp.eq.s32.totalorder %s41, 0
      %p581 = por %p579, %p580
      %p582 = scmp.ne.s32.totalorder %s570, %s571
      %p583 = scmp.eq.s32.totalorder %s42, 1
      %p584 = por %p582, %p583
      %p586 = scmp.ne.s32.totalorder %s571, %s585
      %p587 = scmp.eq.s32.totalorder %s42, 0
      %p588 = por %p586, %p587
      %s589 = ssub.s32 %s36, %s43
      %p590 = scmp.eq.s32.totalorder %s589, 0
      %s592 = sadd.s32 %s591, 1
      %s593 = scalar_select %p590, %s591, %s592
      %p596 = pneg %p590
      %p597 = scmp.eq.s32.totalorder %s36, 1
      %p598 = por %p596, %p597
      %p599 = scmp.ne.s32.totalorder %s591, %s594
      %p600 = scmp.eq.s32.totalorder %s36, 0
      %p601 = por %p599, %p600
      %p602 = scmp.ne.s32.totalorder %s591, %s594
      %p603 = scmp.eq.s32.totalorder %s41, 1
      %p604 = por %p602, %p603
      %p605 = scmp.ne.s32.totalorder %s594, %s595
      %p606 = scmp.eq.s32.totalorder %s41, 0
      %p607 = por %p605, %p606
      %p608 = scmp.ne.s32.totalorder %s594, %s595
      %p609 = scmp.eq.s32.totalorder %s42, 1
      %p610 = por %p608, %p609
      %p612 = scmp.ne.s32.totalorder %s595, %s611
      %p613 = scmp.eq.s32.totalorder %s42, 0
      %p614 = por %p612, %p613
      %s615 = ssub.s32 %s36, %s43
      %p616 = scmp.eq.s32.totalorder %s615, 0
      %s618 = sadd.s32 %s617, 1
      %s619 = scalar_select %p616, %s617, %s618
      %p622 = pneg %p616
      %p623 = scmp.eq.s32.totalorder %s36, 1
      %p624 = por %p622, %p623
      %p625 = scmp.ne.s32.totalorder %s617, %s620
      %p626 = scmp.eq.s32.totalorder %s36, 0
      %p627 = por %p625, %p626
      %p628 = scmp.ne.s32.totalorder %s617, %s620
      %p629 = scmp.eq.s32.totalorder %s41, 1
      %p630 = por %p628, %p629
      %p631 = scmp.ne.s32.totalorder %s620, %s621
      %p632 = scmp.eq.s32.totalorder %s41, 0
      %p633 = por %p631, %p632
      %p634 = scmp.ne.s32.totalorder %s620, %s621
      %p635 = scmp.eq.s32.totalorder %s42, 1
      %p636 = por %p634, %p635
      %p638 = scmp.ne.s32.totalorder %s621, %s637
      %p639 = scmp.eq.s32.totalorder %s42, 0
      %p640 = por %p638, %p639
      %p641 = scmp.le.s32.totalorder 1, %s36
      %p642 = scmp.lt.s32.totalorder %s36, 3
      %p643 = pnand %p641, %p642
      %p644 = pneg %p643
      // Predicated region
      $region9: #{fld_forward.1} parent=5 // pred_check
        _
      $region10: #{fld_forward.1} parent=5 // pred_check_branch
        %646 = sbr.rel (%p643) target = $region12
      $region11: #{fld_forward.1} parent=5 // pred_region
        %s647 = ssub.s32 %s36, 1
        // Predicated region
        $region13: #{fld_forward.1} parent=11 // pred_check
          %p648 = pneg %p161
        $region14: #{fld_forward.1} parent=11 // pred_check_branch
          %650 = sbr.rel (%p648) target = $region16
        $region15: #{fld_forward.1} parent=11 // pred_region
          _
        $region16: #{fld_forward.1} parent=11 // pred_fallthru
          _
        // Predicated region
        $region17: #{fld_forward.1} parent=11 // pred_check
          %p651 = pneg %p182
        $region18: #{fld_forward.1} parent=11 // pred_check_branch
          %653 = sbr.rel (%p651) target = $region20
        $region19: #{fld_forward.1} parent=11 // pred_region
          _
        $region20: #{fld_forward.1} parent=11 // pred_fallthru
          _
        // Predicated region
        $region21: #{fld_forward.1} parent=11 // pred_check
          %p654 = pneg %p203
        $region22: #{fld_forward.1} parent=11 // pred_check_branch
          %656 = sbr.rel (%p654) target = $region24
        $region23: #{fld_forward.1} parent=11 // pred_region
          _
        $region24: #{fld_forward.1} parent=11 // pred_fallthru
          _
        // Predicated region
        $region25: #{fld_forward.1} parent=11 // pred_check
          %p657 = pneg %p224
        $region26: #{fld_forward.1} parent=11 // pred_check_branch
          %659 = sbr.rel (%p657) target = $region28
        $region27: #{fld_forward.1} parent=11 // pred_region
          _
        $region28: #{fld_forward.1} parent=11 // pred_fallthru
          _
        // Predicated region
        $region29: #{fld_forward.1} parent=11 // pred_check
          %p660 = pneg %p245
        $region30: #{fld_forward.1} parent=11 // pred_check_branch
          %662 = sbr.rel (%p660) target = $region32
        $region31: #{fld_forward.1} parent=11 // pred_region
          _
        $region32: #{fld_forward.1} parent=11 // pred_fallthru
          _
        // Predicated region
        $region33: #{fld_forward.1} parent=11 // pred_check
          %p663 = pneg %p266
        $region34: #{fld_forward.1} parent=11 // pred_check_branch
          %665 = sbr.rel (%p663) target = $region36
        $region35: #{fld_forward.1} parent=11 // pred_region
          _
        $region36: #{fld_forward.1} parent=11 // pred_fallthru
          _
        // Predicated region
        $region37: #{fld_forward.1} parent=11 // pred_check
          %p666 = pneg %p287
        $region38: #{fld_forward.1} parent=11 // pred_check_branch
          %668 = sbr.rel (%p666) target = $region40
        $region39: #{fld_forward.1} parent=11 // pred_region
          _
        $region40: #{fld_forward.1} parent=11 // pred_fallthru
          _
        // Predicated region
        $region41: #{fld_forward.1} parent=11 // pred_check
          %p669 = pneg %p308
        $region42: #{fld_forward.1} parent=11 // pred_check_branch
          %671 = sbr.rel (%p669) target = $region44
        $region43: #{fld_forward.1} parent=11 // pred_region
          _
        $region44: #{fld_forward.1} parent=11 // pred_fallthru
          _
        // Predicated region
        $region45: #{fld_forward.1} parent=11 // pred_check
          %p672 = pneg %p329
        $region46: #{fld_forward.1} parent=11 // pred_check_branch
          %674 = sbr.rel (%p672) target = $region48
        $region47: #{fld_forward.1} parent=11 // pred_region
          _
        $region48: #{fld_forward.1} parent=11 // pred_fallthru
          _
        // Predicated region
        $region49: #{fld_forward.1} parent=11 // pred_check
          %p675 = pneg %p350
        $region50: #{fld_forward.1} parent=11 // pred_check_branch
          %677 = sbr.rel (%p675) target = $region52
        $region51: #{fld_forward.1} parent=11 // pred_region
          _
        $region52: #{fld_forward.1} parent=11 // pred_fallthru
          _
        // Predicated region
        $region53: #{fld_forward.1} parent=11 // pred_check
          %p678 = pneg %p371
        $region54: #{fld_forward.1} parent=11 // pred_check_branch
          %680 = sbr.rel (%p678) target = $region56
        $region55: #{fld_forward.1} parent=11 // pred_region
          _
        $region56: #{fld_forward.1} parent=11 // pred_fallthru
          _
        // Predicated region
        $region57: #{fld_forward.1} parent=11 // pred_check
          %p681 = pneg %p392
        $region58: #{fld_forward.1} parent=11 // pred_check_branch
          %683 = sbr.rel (%p681) target = $region60
        $region59: #{fld_forward.1} parent=11 // pred_region
          _
        $region60: #{fld_forward.1} parent=11 // pred_fallthru
          _
        // Predicated region
        $region61: #{fld_forward.1} parent=11 // pred_check
          %p684 = pneg %p413
        $region62: #{fld_forward.1} parent=11 // pred_check_branch
          %686 = sbr.rel (%p684) target = $region64
        $region63: #{fld_forward.1} parent=11 // pred_region
          _
        $region64: #{fld_forward.1} parent=11 // pred_fallthru
          _
        // Predicated region
        $region65: #{fld_forward.1} parent=11 // pred_check
          %p687 = pneg %p434
        $region66: #{fld_forward.1} parent=11 // pred_check_branch
          %689 = sbr.rel (%p687) target = $region68
        $region67: #{fld_forward.1} parent=11 // pred_region
          _
        $region68: #{fld_forward.1} parent=11 // pred_fallthru
          _
        // Predicated region
        $region69: #{fld_forward.1} parent=11 // pred_check
          %p690 = pneg %p455
        $region70: #{fld_forward.1} parent=11 // pred_check_branch
          %692 = sbr.rel (%p690) target = $region72
        $region71: #{fld_forward.1} parent=11 // pred_region
          _
        $region72: #{fld_forward.1} parent=11 // pred_fallthru
          _
        // Predicated region
        $region73: #{fld_forward.1} parent=11 // pred_check
          %p693 = pneg %p476
        $region74: #{fld_forward.1} parent=11 // pred_check_branch
          %695 = sbr.rel (%p693) target = $region76
        $region75: #{fld_forward.1} parent=11 // pred_region
          _
        $region76: #{fld_forward.1} parent=11 // pred_fallthru
          _
        // Predicated region
        $region77: #{fld_forward.1} parent=11 // pred_check
          %p696 = pneg %p497
        $region78: #{fld_forward.1} parent=11 // pred_check_branch
          %698 = sbr.rel (%p696) target = $region80
        $region79: #{fld_forward.1} parent=11 // pred_region
          _
        $region80: #{fld_forward.1} parent=11 // pred_fallthru
          _
        // Predicated region
        $region81: #{fld_forward.1} parent=11 // pred_check
          %p699 = pneg %p518
        $region82: #{fld_forward.1} parent=11 // pred_check_branch
          %701 = sbr.rel (%p699) target = $region84
        $region83: #{fld_forward.1} parent=11 // pred_region
          _
        $region84: #{fld_forward.1} parent=11 // pred_fallthru
          _
        // Predicated region
        $region85: #{fld_forward.1} parent=11 // pred_check
          %p702 = pneg %p539
        $region86: #{fld_forward.1} parent=11 // pred_check_branch
          %704 = sbr.rel (%p702) target = $region88
        $region87: #{fld_forward.1} parent=11 // pred_region
          _
        $region88: #{fld_forward.1} parent=11 // pred_fallthru
          _
        // Predicated region
        $region89: #{fld_forward.1} parent=11 // pred_check
          %p705 = pneg %p560
        $region90: #{fld_forward.1} parent=11 // pred_check_branch
          %707 = sbr.rel (%p705) target = $region92
        $region91: #{fld_forward.1} parent=11 // pred_region
          _
        $region92: #{fld_forward.1} parent=11 // pred_fallthru
          _
        // Predicated region
        $region93: #{fld_forward.1} parent=11 // pred_check
          %p708 = pneg %p581
        $region94: #{fld_forward.1} parent=11 // pred_check_branch
          %710 = sbr.rel (%p708) target = $region96
        $region95: #{fld_forward.1} parent=11 // pred_region
          _
        $region96: #{fld_forward.1} parent=11 // pred_fallthru
          _
      $region12: #{fld_forward.1} parent=5 // pred_fallthru
        _
      %p711 = scmp.lt.s32.totalorder %s36, 2
      // Predicated region
      $region97: #{fld_forward.1} parent=5 // pred_check
        %p712 = pneg %p711
      $region98: #{fld_forward.1} parent=5 // pred_check_branch
        %714 = sbr.rel (%p712) target = $region100
      $region99: #{fld_forward.1} parent=5 // pred_region
        // Predicated region
        $region101: #{fld_forward.1} parent=99 // pred_check
          %p715 = pneg %p56
        $region102: #{fld_forward.1} parent=99 // pred_check_branch
          %717 = sbr.rel (%p715) target = $region104
        $region103: #{fld_forward.1} parent=99 // pred_region
          %p718 = scmp.lt.s32.totalorder %s36, 1
          %s719 = scalar_select %p718, %s36, 1
          %s720 = smul.addr %s719, 8
          %s721 = scalar_lea.vmem %s0, %s720
        $region104: #{fld_forward.1} parent=99 // pred_fallthru
          _
        // Predicated region
        $region105: #{fld_forward.1} parent=99 // pred_check
          %p722 = pneg %p82
        $region106: #{fld_forward.1} parent=99 // pred_check_branch
          %724 = sbr.rel (%p722) target = $region108
        $region107: #{fld_forward.1} parent=99 // pred_region
          %p725 = scmp.lt.s32.totalorder %s36, 1
          %s726 = scalar_select %p725, %s36, 1
          %s727 = scalar_lea.vmem %s1, %s726
        $region108: #{fld_forward.1} parent=99 // pred_fallthru
          _
        // Predicated region
        $region109: #{fld_forward.1} parent=99 // pred_check
          %p728 = pneg %p108
        $region110: #{fld_forward.1} parent=99 // pred_check_branch
          %730 = sbr.rel (%p728) target = $region112
        $region111: #{fld_forward.1} parent=99 // pred_region
          %p731 = scmp.lt.s32.totalorder %s36, 1
          %s732 = scalar_select %p731, %s36, 1
          %s733 = smul.addr %s732, 8
          %s734 = scalar_lea.vmem %s2, %s733
        $region112: #{fld_forward.1} parent=99 // pred_fallthru
          _
        // Predicated region
        $region113: #{fld_forward.1} parent=99 // pred_check
          %p735 = pneg %p134
        $region114: #{fld_forward.1} parent=99 // pred_check_branch
          %737 = sbr.rel (%p735) target = $region116
        $region115: #{fld_forward.1} parent=99 // pred_region
          %p738 = scmp.lt.s32.totalorder %s36, 1
          %s739 = scalar_select %p738, %s36, 1
          %s740 = smul.addr %s739, 8
          %s741 = scalar_lea.vmem %s3, %s740
        $region116: #{fld_forward.1} parent=99 // pred_fallthru
          _
      $region100: #{fld_forward.1} parent=5 // pred_fallthru
        _
      %p742 = scmp.le.s32.totalorder 1, %s36
      %p743 = scmp.lt.s32.totalorder %s36, 3
      %p744 = pnand %p742, %p743
      %p745 = pneg %p744
      // Predicated region
      $region117: #{fld_forward.1} parent=5 // pred_check
        _
      $region118: #{fld_forward.1} parent=5 // pred_check_branch
        %747 = sbr.rel (%p744) target = $region120
      $region119: #{fld_forward.1} parent=5 // pred_region
        %s748 = ssub.s32 %s36, 1
        %p749 = scmp.lt.s32.totalorder %s41, 1
        %s750 = scalar_select %p749, %s41, 1
        %s751 = smul.addr %s750, 8
        %s752 = scalar_lea.vmem %s0, %s751
        %p753 = pneg %p62
        %p754 = pneg %p59
        %p755 = scmp.lt.s32.totalorder %s41, 1
        %s756 = scalar_select %p755, %s41, 1
        %s757 = scalar_lea.vmem %s1, %s756
        %p758 = pneg %p88
        %p759 = pneg %p85
        %p760 = scmp.lt.s32.totalorder %s41, 1
        %s761 = scalar_select %p760, %s41, 1
        %s762 = smul.addr %s761, 8
        %s763 = scalar_lea.vmem %s2, %s762
        %p764 = pneg %p114
        %p765 = pneg %p111
        %p766 = scmp.lt.s32.totalorder %s41, 1
        %s767 = scalar_select %p766, %s41, 1
        %s768 = smul.addr %s767, 8
        %s769 = scalar_lea.vmem %s3, %s768
        %p770 = pneg %p140
        %p771 = pneg %p137
        %p772 = pneg %p161
        %p773 = pneg %p158
        %p774 = pneg %p182
        %p775 = pneg %p179
        %p776 = pneg %p203
        %p777 = pneg %p200
        %p778 = pneg %p224
        %p779 = pneg %p221
        %p780 = pneg %p245
        %p781 = pneg %p242
        %p782 = pneg %p266
        %p783 = pneg %p263
        %p784 = pneg %p287
        %p785 = pneg %p284
        %p786 = pneg %p308
        %p787 = pneg %p305
        %p788 = pneg %p329
        %p789 = pneg %p326
        %p790 = pneg %p350
        %p791 = pneg %p347
        %p792 = pneg %p371
        %p793 = pneg %p368
        %p794 = pneg %p392
        %p795 = pneg %p389
        %p796 = pneg %p413
        %p797 = pneg %p410
        %p798 = pneg %p434
        %p799 = pneg %p431
        %p800 = pneg %p455
        %p801 = pneg %p452
        %p802 = pneg %p476
        %p803 = pneg %p473
        %p804 = pneg %p497
        %p805 = pneg %p494
        %p806 = pneg %p518
        %p807 = pneg %p515
        %p808 = pneg %p539
        %p809 = pneg %p536
        %p810 = pneg %p560
        %p811 = pneg %p557
        %p812 = pneg %p581
        %p813 = pneg %p578
        %p814 = pneg %p607
        %p815 = pneg %p604
        %s816 = sand.u32 %s594, 1
        %s817 = scalar_lea.sflag [#allocation3], %s816
        %s818 = sand.u32 %s594, 1
        %s819 = smul.addr %s818, 8
        %s820 = scalar_lea.vmem [#allocation2], %s819
        %p821 = pneg %p633
        %p822 = pneg %p630
        %p823 = scmp.lt.s32.totalorder %s41, 1
        %s824 = scalar_select %p823, %s41, 1
        %s825 = smul.addr %s824, 8
        %s826 = scalar_lea.vmem %s26, %s825
        %p827 = scmp.lt.s32.totalorder %s41, 1
        %s828 = scalar_select %p827, %s41, 1
        %s829 = smul.addr %s828, 8
        %s830 = scalar_lea.vmem %s0, %s829
        %p831 = scmp.lt.s32.totalorder %s41, 1
        %s832 = scalar_select %p831, %s41, 1
        %s833 = scalar_lea.vmem %s1, %s832
        %p834 = scmp.lt.s32.totalorder %s41, 1
        %s835 = scalar_select %p834, %s41, 1
        %s836 = smul.addr %s835, 8
        %s837 = scalar_lea.vmem %s2, %s836
        %p838 = scmp.lt.s32.totalorder %s41, 1
        %s839 = scalar_select %p838, %s41, 1
        %s840 = smul.addr %s839, 8
        %s841 = scalar_lea.vmem %s3, %s840
        %p842 = scmp.lt.s32.totalorder %s41, 1
        %s843 = scalar_select %p842, %s41, 1
        %s844 = smul.addr %s843, 8
        %s845 = scalar_lea.vmem %s26, %s844
        %v846 = vld [vmem:[%s833] sm:$0x1]
        %v847 = vld [vmem:[%s830] sm:$0xff]
        %v848 = vld [vmem:[%s4] sm:$0xff]
        %v849 = vld [vmem:[%s4 + $0x8] sm:$0xff]
        %v850 = vld [vmem:[%s4 + $0x10] sm:$0xff]
        %v851 = vld [vmem:[%s4 + $0x18] sm:$0xff]
        %v853 = vperm.slane %v846, 0
        %v855 = vadd.f32 %v848, %v853
        %v856 = vadd.f32 %v849, %v853
        %v857 = vadd.f32 %v850, %v853
        %v858 = vadd.f32 %v851, %v853
        %v859 = vld [vmem:[%s7] sm:$0x1]
        %v860 = vmul.f32 %v847, %v847
        %vm861 = vcmask 261120
        %v862 = vsel %vm861, %v860, 0.0
        %863 = vadd.xlane.f32.xlu0 %v862
        %v864 = vpop.xlane.xlu0 %863
        %v865 = vrcp.pop 32.0
        %v866 = vmul.f32 32.0, %v865
        %v867 = vsub.f32 1.0, %v866
        %v868 = vmul.f32 %v865, %v867
        %v869 = vadd.f32 %v865, %v868
        %vm870 = vweird.f32 %v865
        %v871 = vsel %vm870, %v865, %v869
        %v872 = vmul.f32 %v864, %v871
        %v873 = vadd.f32 %v872, 1e-06
        %v874 = vrsqrt.pop %v873
        %v875 = vmul.f32 %v874, %v873
        %v876 = vmul.f32 %v875, %v874
        %v877 = vmul.f32 0.5, %v876
        %v878 = vsub.f32 1.5, %v877
        %v879 = vmul.f32 %v874, %v878
        %vm880 = vweird.f32 %v873
        %vm881 = vweird.f32 %v874
        %vm882 = vmor %vm880, %vm881
        %v883 = vsel %vm882, %v874, %v879
        %v884 = vmul.f32 %v847, %v883
        %v886 = vperm.slane %v859, 0
        %v888 = vmul.f32 %v884, %v886
        %v889 = vld [vmem:[%s8] sm:$0xff]
        %v890 = vld [vmem:[%s8 + $0x8] sm:$0xff]
        %v891 = vld [vmem:[%s8 + $0x10] sm:$0xff]
        %v892 = vld [vmem:[%s8 + $0x18] sm:$0xff]
        %v893 = vld [vmem:[%s8 + $0x20] sm:$0xff]
        %v894 = vld [vmem:[%s8 + $0x28] sm:$0xff]
        %v895 = vld [vmem:[%s8 + $0x30] sm:$0xff]
        %v896 = vld [vmem:[%s8 + $0x38] sm:$0xff]
        %v897 = vld [vmem:[%s8 + $0x40] sm:$0xff]
        %v898 = vld [vmem:[%s8 + $0x48] sm:$0xff]
        %v899 = vld [vmem:[%s8 + $0x50] sm:$0xff]
        %v900 = vld [vmem:[%s8 + $0x58] sm:$0xff]
        %v901 = vld [vmem:[%s8 + $0x60] sm:$0xff]
        %v902 = vld [vmem:[%s8 + $0x68] sm:$0xff]
        %v903 = vld [vmem:[%s8 + $0x70] sm:$0xff]
        %v904 = vld [vmem:[%s8 + $0x78] sm:$0xff]
        %v905 = vld [vmem:[%s8 + $0x80] sm:$0xff]
        %v906 = vld [vmem:[%s8 + $0x88] sm:$0xff]
        %v907 = vld [vmem:[%s8 + $0x90] sm:$0xff]
        %v908 = vld [vmem:[%s8 + $0x98] sm:$0xff]
        %v909 = vld [vmem:[%s8 + $0xa0] sm:$0xff]
        %v910 = vld [vmem:[%s8 + $0xa8] sm:$0xff]
        %v911 = vld [vmem:[%s8 + $0xb0] sm:$0xff]
        %v912 = vld [vmem:[%s8 + $0xb8] sm:$0xff]
        %v913 = vld [vmem:[%s8 + $0xc0] sm:$0xff]
        %v914 = vld [vmem:[%s8 + $0xc8] sm:$0xff]
        %v915 = vld [vmem:[%s8 + $0xd0] sm:$0xff]
        %v916 = vld [vmem:[%s8 + $0xd8] sm:$0xff]
        %v917 = vld [vmem:[%s8 + $0xe0] sm:$0xff]
        %v918 = vld [vmem:[%s8 + $0xe8] sm:$0xff]
        %v919 = vld [vmem:[%s8 + $0xf0] sm:$0xff]
        %v920 = vld [vmem:[%s8 + $0xf8] sm:$0xff]
        %v921 = vld [vmem:[%s8 + $0x100] sm:$0xff]
        %v922 = vld [vmem:[%s8 + $0x108] sm:$0xff]
        %v923 = vld [vmem:[%s8 + $0x110] sm:$0xff]
        %v924 = vld [vmem:[%s8 + $0x118] sm:$0xff]
        %v925 = vld [vmem:[%s8 + $0x120] sm:$0xff]
        %v926 = vld [vmem:[%s8 + $0x128] sm:$0xff]
        %v927 = vld [vmem:[%s8 + $0x130] sm:$0xff]
        %v928 = vld [vmem:[%s8 + $0x138] sm:$0xff]
        %v929 = vld [vmem:[%s8 + $0x140] sm:$0xff]
        %v930 = vld [vmem:[%s8 + $0x148] sm:$0xff]
        %v931 = vld [vmem:[%s8 + $0x150] sm:$0xff]
        %v932 = vld [vmem:[%s8 + $0x158] sm:$0xff]
        %v933 = vld [vmem:[%s8 + $0x160] sm:$0xff]
        %v934 = vld [vmem:[%s8 + $0x168] sm:$0xff]
        %v935 = vld [vmem:[%s8 + $0x170] sm:$0xff]
        %v936 = vld [vmem:[%s8 + $0x178] sm:$0xff]
        %v938 = vsel %vm861, %v888, 0
        %940 = vmatpush.msra.mxu0 0.0
        %941 = vmatpush.msra.mxu0 0.0
        %942 = vmatpush.msra.mxu0 0.0
        %943 = vmatpush.msra.mxu0 0.0
        %944 = vmatpush.msra.mxu0 0.0
        %945 = vmatpush.msra.mxu0 0.0
        %946 = vmatpush.msra.mxu0 0.0
        %947 = vmatpush.msra.mxu0 0.0
        %948 = vmatpush.msra.mxu0 0.0
        %949 = vmatpush.msra.mxu0 0.0
        %950 = vmatpush.msra.mxu0 0.0
        %951 = vmatpush.msra.mxu0 0.0
        %952 = vmatpush.msra.mxu0 %v892
        %953 = vmatpush.msra.mxu0 %v891
        %954 = vmatpush.msra.mxu0 %v890
        %955 = vmatpush.msra.mxu0 %v889
        %956 = vmatmul.f32.gmra.mxu0 %v938
        %v957 = vpop.f32.mrf.mxu0
        %v958 = vadd.f32 0.0, %v957
        %959 = vdwg.mxu0
        %960 = vmatpush.msra.mxu0 0.0
        %961 = vmatpush.msra.mxu0 0.0
        %962 = vmatpush.msra.mxu0 0.0
        %963 = vmatpush.msra.mxu0 0.0
        %964 = vmatpush.msra.mxu0 0.0
        %965 = vmatpush.msra.mxu0 0.0
        %966 = vmatpush.msra.mxu0 0.0
        %967 = vmatpush.msra.mxu0 0.0
        %968 = vmatpush.msra.mxu0 0.0
        %969 = vmatpush.msra.mxu0 0.0
        %970 = vmatpush.msra.mxu0 0.0
        %971 = vmatpush.msra.mxu0 0.0
        %972 = vmatpush.msra.mxu0 %v896
        %973 = vmatpush.msra.mxu0 %v895
        %974 = vmatpush.msra.mxu0 %v894
        %975 = vmatpush.msra.mxu0 %v893
        %976 = vmatmul.f32.gmra.mxu0 %v938
        %v977 = vpop.f32.mrf.mxu0
        %v978 = vadd.f32 0.0, %v977
        %979 = vdwg.mxu0
        %980 = vmatpush.msra.mxu0 0.0
        %981 = vmatpush.msra.mxu0 0.0
        %982 = vmatpush.msra.mxu0 0.0
        %983 = vmatpush.msra.mxu0 0.0
        %984 = vmatpush.msra.mxu0 0.0
        %985 = vmatpush.msra.mxu0 0.0
        %986 = vmatpush.msra.mxu0 0.0
        %987 = vmatpush.msra.mxu0 0.0
        %988 = vmatpush.msra.mxu0 0.0
        %989 = vmatpush.msra.mxu0 0.0
        %990 = vmatpush.msra.mxu0 0.0
        %991 = vmatpush.msra.mxu0 0.0
        %992 = vmatpush.msra.mxu0 %v900
        %993 = vmatpush.msra.mxu0 %v899
        %994 = vmatpush.msra.mxu0 %v898
        %995 = vmatpush.msra.mxu0 %v897
        %996 = vmatmul.f32.gmra.mxu0 %v938
        %v997 = vpop.f32.mrf.mxu0
        %v998 = vadd.f32 0.0, %v997
        %999 = vdwg.mxu0
        %1000 = vmatpush.msra.mxu0 0.0
        %1001 = vmatpush.msra.mxu0 0.0
        %1002 = vmatpush.msra.mxu0 0.0
        %1003 = vmatpush.msra.mxu0 0.0
        %1004 = vmatpush.msra.mxu0 0.0
        %1005 = vmatpush.msra.mxu0 0.0
        %1006 = vmatpush.msra.mxu0 0.0
        %1007 = vmatpush.msra.mxu0 0.0
        %1008 = vmatpush.msra.mxu0 0.0
        %1009 = vmatpush.msra.mxu0 0.0
        %1010 = vmatpush.msra.mxu0 0.0
        %1011 = vmatpush.msra.mxu0 0.0
        %1012 = vmatpush.msra.mxu0 %v904
        %1013 = vmatpush.msra.mxu0 %v903
        %1014 = vmatpush.msra.mxu0 %v902
        %1015 = vmatpush.msra.mxu0 %v901
        %1016 = vmatmul.f32.gmra.mxu0 %v938
        %v1017 = vpop.f32.mrf.mxu0
        %v1018 = vadd.f32 0.0, %v1017
        %1019 = vdwg.mxu0
        %1020 = vmatpush.msra.mxu0 0.0
        %1021 = vmatpush.msra.mxu0 0.0
        %1022 = vmatpush.msra.mxu0 0.0
        %1023 = vmatpush.msra.mxu0 0.0
        %1024 = vmatpush.msra.mxu0 0.0
        %1025 = vmatpush.msra.mxu0 0.0
        %1026 = vmatpush.msra.mxu0 0.0
        %1027 = vmatpush.msra.mxu0 0.0
        %1028 = vmatpush.msra.mxu0 0.0
        %1029 = vmatpush.msra.mxu0 0.0
        %1030 = vmatpush.msra.mxu0 0.0
        %1031 = vmatpush.msra.mxu0 0.0
        %1032 = vmatpush.msra.mxu0 %v908
        %1033 = vmatpush.msra.mxu0 %v907
        %1034 = vmatpush.msra.mxu0 %v906
        %1035 = vmatpush.msra.mxu0 %v905
        %1036 = vmatmul.f32.gmra.mxu0 %v938
        %v1037 = vpop.f32.mrf.mxu0
        %v1038 = vadd.f32 0.0, %v1037
        %1039 = vdwg.mxu0
        %1040 = vmatpush.msra.mxu0 0.0
        %1041 = vmatpush.msra.mxu0 0.0
        %1042 = vmatpush.msra.mxu0 0.0
        %1043 = vmatpush.msra.mxu0 0.0
        %1044 = vmatpush.msra.mxu0 0.0
        %1045 = vmatpush.msra.mxu0 0.0
        %1046 = vmatpush.msra.mxu0 0.0
        %1047 = vmatpush.msra.mxu0 0.0
        %1048 = vmatpush.msra.mxu0 0.0
        %1049 = vmatpush.msra.mxu0 0.0
        %1050 = vmatpush.msra.mxu0 0.0
        %1051 = vmatpush.msra.mxu0 0.0
        %1052 = vmatpush.msra.mxu0 %v912
        %1053 = vmatpush.msra.mxu0 %v911
        %1054 = vmatpush.msra.mxu0 %v910
        %1055 = vmatpush.msra.mxu0 %v909
        %1056 = vmatmul.f32.gmra.mxu0 %v938
        %v1057 = vpop.f32.mrf.mxu0
        %v1058 = vadd.f32 0.0, %v1057
        %1059 = vdwg.mxu0
        %1060 = vmatpush.msra.mxu0 0.0
        %1061 = vmatpush.msra.mxu0 0.0
        %1062 = vmatpush.msra.mxu0 0.0
        %1063 = vmatpush.msra.mxu0 0.0
        %1064 = vmatpush.msra.mxu0 0.0
        %1065 = vmatpush.msra.mxu0 0.0
        %1066 = vmatpush.msra.mxu0 0.0
        %1067 = vmatpush.msra.mxu0 0.0
        %1068 = vmatpush.msra.mxu0 0.0
        %1069 = vmatpush.msra.mxu0 0.0
        %1070 = vmatpush.msra.mxu0 0.0
        %1071 = vmatpush.msra.mxu0 0.0
        %1072 = vmatpush.msra.mxu0 %v916
        %1073 = vmatpush.msra.mxu0 %v915
        %1074 = vmatpush.msra.mxu0 %v914
        %1075 = vmatpush.msra.mxu0 %v913
        %1076 = vmatmul.f32.gmra.mxu0 %v938
        %v1077 = vpop.f32.mrf.mxu0
        %v1078 = vadd.f32 0.0, %v1077
        %1079 = vdwg.mxu0
        %1080 = vmatpush.msra.mxu0 0.0
        %1081 = vmatpush.msra.mxu0 0.0
        %1082 = vmatpush.msra.mxu0 0.0
        %1083 = vmatpush.msra.mxu0 0.0
        %1084 = vmatpush.msra.mxu0 0.0
        %1085 = vmatpush.msra.mxu0 0.0
        %1086 = vmatpush.msra.mxu0 0.0
        %1087 = vmatpush.msra.mxu0 0.0
        %1088 = vmatpush.msra.mxu0 0.0
        %1089 = vmatpush.msra.mxu0 0.0
        %1090 = vmatpush.msra.mxu0 0.0
        %1091 = vmatpush.msra.mxu0 0.0
        %1092 = vmatpush.msra.mxu0 %v920
        %1093 = vmatpush.msra.mxu0 %v919
        %1094 = vmatpush.msra.mxu0 %v918
        %1095 = vmatpush.msra.mxu0 %v917
        %1096 = vmatmul.f32.gmra.mxu0 %v938
        %v1097 = vpop.f32.mrf.mxu0
        %v1098 = vadd.f32 0.0, %v1097
        %1099 = vdwg.mxu0
        %1100 = vmatpush.msra.mxu0 0.0
        %1101 = vmatpush.msra.mxu0 0.0
        %1102 = vmatpush.msra.mxu0 0.0
        %1103 = vmatpush.msra.mxu0 0.0
        %1104 = vmatpush.msra.mxu0 0.0
        %1105 = vmatpush.msra.mxu0 0.0
        %1106 = vmatpush.msra.mxu0 0.0
        %1107 = vmatpush.msra.mxu0 0.0
        %1108 = vmatpush.msra.mxu0 0.0
        %1109 = vmatpush.msra.mxu0 0.0
        %1110 = vmatpush.msra.mxu0 0.0
        %1111 = vmatpush.msra.mxu0 0.0
        %1112 = vmatpush.msra.mxu0 %v924
        %1113 = vmatpush.msra.mxu0 %v923
        %1114 = vmatpush.msra.mxu0 %v922
        %1115 = vmatpush.msra.mxu0 %v921
        %1116 = vmatmul.f32.gmra.mxu0 %v938
        %v1117 = vpop.f32.mrf.mxu0
        %v1118 = vadd.f32 0.0, %v1117
        %1119 = vdwg.mxu0
        %1120 = vmatpush.msra.mxu0 0.0
        %1121 = vmatpush.msra.mxu0 0.0
        %1122 = vmatpush.msra.mxu0 0.0
        %1123 = vmatpush.msra.mxu0 0.0
        %1124 = vmatpush.msra.mxu0 0.0
        %1125 = vmatpush.msra.mxu0 0.0
        %1126 = vmatpush.msra.mxu0 0.0
        %1127 = vmatpush.msra.mxu0 0.0
        %1128 = vmatpush.msra.mxu0 0.0
        %1129 = vmatpush.msra.mxu0 0.0
        %1130 = vmatpush.msra.mxu0 0.0
        %1131 = vmatpush.msra.mxu0 0.0
        %1132 = vmatpush.msra.mxu0 %v928
        %1133 = vmatpush.msra.mxu0 %v927
        %1134 = vmatpush.msra.mxu0 %v926
        %1135 = vmatpush.msra.mxu0 %v925
        %1136 = vmatmul.f32.gmra.mxu0 %v938
        %v1137 = vpop.f32.mrf.mxu0
        %v1138 = vadd.f32 0.0, %v1137
        %1139 = vdwg.mxu0
        %1140 = vmatpush.msra.mxu0 0.0
        %1141 = vmatpush.msra.mxu0 0.0
        %1142 = vmatpush.msra.mxu0 0.0
        %1143 = vmatpush.msra.mxu0 0.0
        %1144 = vmatpush.msra.mxu0 0.0
        %1145 = vmatpush.msra.mxu0 0.0
        %1146 = vmatpush.msra.mxu0 0.0
        %1147 = vmatpush.msra.mxu0 0.0
        %1148 = vmatpush.msra.mxu0 0.0
        %1149 = vmatpush.msra.mxu0 0.0
        %1150 = vmatpush.msra.mxu0 0.0
        %1151 = vmatpush.msra.mxu0 0.0
        %1152 = vmatpush.msra.mxu0 %v932
        %1153 = vmatpush.msra.mxu0 %v931
        %1154 = vmatpush.msra.mxu0 %v930
        %1155 = vmatpush.msra.mxu0 %v929
        %1156 = vmatmul.f32.gmra.mxu0 %v938
        %v1157 = vpop.f32.mrf.mxu0
        %v1158 = vadd.f32 0.0, %v1157
        %1159 = vdwg.mxu0
        %1160 = vmatpush.msra.mxu0 0.0
        %1161 = vmatpush.msra.mxu0 0.0
        %1162 = vmatpush.msra.mxu0 0.0
        %1163 = vmatpush.msra.mxu0 0.0
        %1164 = vmatpush.msra.mxu0 0.0
        %1165 = vmatpush.msra.mxu0 0.0
        %1166 = vmatpush.msra.mxu0 0.0
        %1167 = vmatpush.msra.mxu0 0.0
        %1168 = vmatpush.msra.mxu0 0.0
        %1169 = vmatpush.msra.mxu0 0.0
        %1170 = vmatpush.msra.mxu0 0.0
        %1171 = vmatpush.msra.mxu0 0.0
        %1172 = vmatpush.msra.mxu0 %v936
        %1173 = vmatpush.msra.mxu0 %v935
        %1174 = vmatpush.msra.mxu0 %v934
        %1175 = vmatpush.msra.mxu0 %v933
        %1176 = vmatmul.f32.gmra.mxu0 %v938
        %v1177 = vpop.f32.mrf.mxu0
        %v1178 = vadd.f32 0.0, %v1177
        %1179 = vdwg.mxu0
        %v1180 = vld [vmem:[%s9] sm:$0xff]
        %v1181 = vld [vmem:[%s9 + $0x8] sm:$0xff]
        %v1182 = vld [vmem:[%s9 + $0x10] sm:$0xff]
        %v1183 = vld [vmem:[%s9 + $0x18] sm:$0xff]
        %vm1184 = vcmask 64512
        %v1186 = vsel %vm1184, %v958, 0
        %v1189 = vsel %vm1184, %v1038, 0
        %1191 = vmatpush.xpose.msra.mxu0 0.0
        %1192 = vmatpush.xpose.msra.mxu0 0.0
        %1193 = vmatpush.xpose.msra.mxu0 0.0
        %1194 = vmatpush.xpose.msra.mxu0 0.0
        %1195 = vmatpush.xpose.msra.mxu0 0.0
        %1196 = vmatpush.xpose.msra.mxu0 0.0
        %1197 = vmatpush.xpose.msra.mxu0 0.0
        %1198 = vmatpush.xpose.msra.mxu0 0.0
        %1199 = vmatpush.xpose.msra.mxu0 0.0
        %1200 = vmatpush.xpose.msra.mxu0 0.0
        %1201 = vmatpush.xpose.msra.mxu0 0.0
        %1202 = vmatpush.xpose.msra.mxu0 0.0
        %1203 = vmatpush.xpose.msra.mxu0 0.0
        %1204 = vmatpush.xpose.msra.mxu0 0.0
        %1205 = vmatpush.xpose.msra.mxu0 0.0
        %1206 = vmatpush.xpose.msra.mxu0 %v1189
        %1207 = vmatmul.f32.gmra.mxu0 %v1186
        %v1208 = vpop.f32.mrf.mxu0
        %v1209 = vadd.f32 %v855, %v1208
        %1210 = vdwg.mxu0
        %v1212 = vsel %vm1184, %v978, 0
        %v1215 = vsel %vm1184, %v1058, 0
        %1217 = vmatpush.xpose.msra.mxu0 0.0
        %1218 = vmatpush.xpose.msra.mxu0 0.0
        %1219 = vmatpush.xpose.msra.mxu0 0.0
        %1220 = vmatpush.xpose.msra.mxu0 0.0
        %1221 = vmatpush.xpose.msra.mxu0 0.0
        %1222 = vmatpush.xpose.msra.mxu0 0.0
        %1223 = vmatpush.xpose.msra.mxu0 0.0
        %1224 = vmatpush.xpose.msra.mxu0 0.0
        %1225 = vmatpush.xpose.msra.mxu0 0.0
        %1226 = vmatpush.xpose.msra.mxu0 0.0
        %1227 = vmatpush.xpose.msra.mxu0 0.0
        %1228 = vmatpush.xpose.msra.mxu0 0.0
        %1229 = vmatpush.xpose.msra.mxu0 0.0
        %1230 = vmatpush.xpose.msra.mxu0 0.0
        %1231 = vmatpush.xpose.msra.mxu0 0.0
        %1232 = vmatpush.xpose.msra.mxu0 %v1215
        %1233 = vmatmul.f32.gmra.mxu0 %v1212
        %v1234 = vpop.f32.mrf.mxu0
        %v1235 = vadd.f32 %v856, %v1234
        %1236 = vdwg.mxu0
        %v1238 = vsel %vm1184, %v998, 0
        %v1241 = vsel %vm1184, %v1078, 0
        %1243 = vmatpush.xpose.msra.mxu0 0.0
        %1244 = vmatpush.xpose.msra.mxu0 0.0
        %1245 = vmatpush.xpose.msra.mxu0 0.0
        %1246 = vmatpush.xpose.msra.mxu0 0.0
        %1247 = vmatpush.xpose.msra.mxu0 0.0
        %1248 = vmatpush.xpose.msra.mxu0 0.0
        %1249 = vmatpush.xpose.msra.mxu0 0.0
        %1250 = vmatpush.xpose.msra.mxu0 0.0
        %1251 = vmatpush.xpose.msra.mxu0 0.0
        %1252 = vmatpush.xpose.msra.mxu0 0.0
        %1253 = vmatpush.xpose.msra.mxu0 0.0
        %1254 = vmatpush.xpose.msra.mxu0 0.0
        %1255 = vmatpush.xpose.msra.mxu0 0.0
        %1256 = vmatpush.xpose.msra.mxu0 0.0
        %1257 = vmatpush.xpose.msra.mxu0 0.0
        %1258 = vmatpush.xpose.msra.mxu0 %v1241
        %1259 = vmatmul.f32.gmra.mxu0 %v1238
        %v1260 = vpop.f32.mrf.mxu0
        %v1261 = vadd.f32 %v857, %v1260
        %1262 = vdwg.mxu0
        %v1264 = vsel %vm1184, %v1018, 0
        %v1267 = vsel %vm1184, %v1098, 0
        %1269 = vmatpush.xpose.msra.mxu0 0.0
        %1270 = vmatpush.xpose.msra.mxu0 0.0
        %1271 = vmatpush.xpose.msra.mxu0 0.0
        %1272 = vmatpush.xpose.msra.mxu0 0.0
        %1273 = vmatpush.xpose.msra.mxu0 0.0
        %1274 = vmatpush.xpose.msra.mxu0 0.0
        %1275 = vmatpush.xpose.msra.mxu0 0.0
        %1276 = vmatpush.xpose.msra.mxu0 0.0
        %1277 = vmatpush.xpose.msra.mxu0 0.0
        %1278 = vmatpush.xpose.msra.mxu0 0.0
        %1279 = vmatpush.xpose.msra.mxu0 0.0
        %1280 = vmatpush.xpose.msra.mxu0 0.0
        %1281 = vmatpush.xpose.msra.mxu0 0.0
        %1282 = vmatpush.xpose.msra.mxu0 0.0
        %1283 = vmatpush.xpose.msra.mxu0 0.0
        %1284 = vmatpush.xpose.msra.mxu0 %v1267
        %1285 = vmatmul.f32.gmra.mxu0 %v1264
        %v1286 = vpop.f32.mrf.mxu0
        %v1287 = vadd.f32 %v858, %v1286
        %1288 = vdwg.mxu0
        %v1289 = vsel %vm1184, %v1209, -inf
        %1290 = vmax.xlane.f32.xlu0 %v1289
        %v1291 = vpop.xlane.xlu0 %1290
        %v1292 = vsel %vm1184, %v1235, -inf
        %1293 = vmax.xlane.f32.xlu0 %v1292
        %v1294 = vpop.xlane.xlu0 %1293
        %v1295 = vsel %vm1184, %v1261, -inf
        %1296 = vmax.xlane.f32.xlu0 %v1295
        %v1297 = vpop.xlane.xlu0 %1296
        %v1298 = vsel %vm1184, %v1287, -inf
        %1299 = vmax.xlane.f32.xlu0 %v1298
        %v1300 = vpop.xlane.xlu0 %1299
        %v1301 = vsub.f32 %v1209, %v1291
        %v1302 = vsub.f32 %v1235, %v1294
        %v1303 = vsub.f32 %v1261, %v1297
        %v1304 = vsub.f32 %v1287, %v1300
        %v1305 = vmul.f32 %v1301, 1.442695
        %v1306 = vpow.pop %v1305
        %v1307 = vmul.f32 %v1302, 1.442695
        %v1308 = vpow.pop %v1307
        %v1309 = vmul.f32 %v1303, 1.442695
        %v1310 = vpow.pop %v1309
        %v1311 = vmul.f32 %v1304, 1.442695
        %v1312 = vpow.pop %v1311
        %v1313 = vsel %vm1184, %v1306, 0.0
        %1314 = vadd.xlane.f32.xlu0 %v1313
        %v1315 = vpop.xlane.xlu0 %1314
        %v1316 = vsel %vm1184, %v1308, 0.0
        %1317 = vadd.xlane.f32.xlu0 %v1316
        %v1318 = vpop.xlane.xlu0 %1317
        %v1319 = vsel %vm1184, %v1310, 0.0
        %1320 = vadd.xlane.f32.xlu0 %v1319
        %v1321 = vpop.xlane.xlu0 %1320
        %v1322 = vsel %vm1184, %v1312, 0.0
        %1323 = vadd.xlane.f32.xlu0 %v1322
        %v1324 = vpop.xlane.xlu0 %1323
        %v1325 = vrcp.pop %v1315
        %v1326 = vrcp.pop %v1318
        %v1327 = vrcp.pop %v1321
        %v1328 = vrcp.pop %v1324
        %v1329 = vmul.f32 %v1306, %v1325
        %v1330 = vmul.f32 %v1308, %v1326
        %v1331 = vmul.f32 %v1310, %v1327
        %v1332 = vmul.f32 %v1312, %v1328
        %v1334 = vsel %vm1184, %v1329, 0
        %1336 = vmatpush.msra.mxu0 0.0
        %1337 = vmatpush.msra.mxu0 0.0
        %1338 = vmatpush.msra.mxu0 0.0
        %1339 = vmatpush.msra.mxu0 0.0
        %1340 = vmatpush.msra.mxu0 0.0
        %1341 = vmatpush.msra.mxu0 0.0
        %1342 = vmatpush.msra.mxu0 0.0
        %1343 = vmatpush.msra.mxu0 0.0
        %1344 = vmatpush.msra.mxu0 0.0
        %1345 = vmatpush.msra.mxu0 0.0
        %1346 = vmatpush.msra.mxu0 0.0
        %1347 = vmatpush.msra.mxu0 0.0
        %1348 = vmatpush.msra.mxu0 0.0
        %1349 = vmatpush.msra.mxu0 0.0
        %1350 = vmatpush.msra.mxu0 0.0
        %1351 = vmatpush.msra.mxu0 %v1118
        %1352 = vmatmul.f32.gmra.mxu0 %v1334
        %v1353 = vpop.f32.mrf.mxu0
        %v1354 = vadd.f32 0.0, %v1353
        %1355 = vdwg.mxu0
        %v1357 = vsel %vm1184, %v1330, 0
        %1359 = vmatpush.msra.mxu0 0.0
        %1360 = vmatpush.msra.mxu0 0.0
        %1361 = vmatpush.msra.mxu0 0.0
        %1362 = vmatpush.msra.mxu0 0.0
        %1363 = vmatpush.msra.mxu0 0.0
        %1364 = vmatpush.msra.mxu0 0.0
        %1365 = vmatpush.msra.mxu0 0.0
        %1366 = vmatpush.msra.mxu0 0.0
        %1367 = vmatpush.msra.mxu0 0.0
        %1368 = vmatpush.msra.mxu0 0.0
        %1369 = vmatpush.msra.mxu0 0.0
        %1370 = vmatpush.msra.mxu0 0.0
        %1371 = vmatpush.msra.mxu0 0.0
        %1372 = vmatpush.msra.mxu0 0.0
        %1373 = vmatpush.msra.mxu0 0.0
        %1374 = vmatpush.msra.mxu0 %v1138
        %1375 = vmatmul.f32.gmra.mxu0 %v1357
        %v1376 = vpop.f32.mrf.mxu0
        %v1377 = vadd.f32 0.0, %v1376
        %1378 = vdwg.mxu0
        %v1380 = vsel %vm1184, %v1331, 0
        %1382 = vmatpush.msra.mxu0 0.0
        %1383 = vmatpush.msra.mxu0 0.0
        %1384 = vmatpush.msra.mxu0 0.0
        %1385 = vmatpush.msra.mxu0 0.0
        %1386 = vmatpush.msra.mxu0 0.0
        %1387 = vmatpush.msra.mxu0 0.0
        %1388 = vmatpush.msra.mxu0 0.0
        %1389 = vmatpush.msra.mxu0 0.0
        %1390 = vmatpush.msra.mxu0 0.0
        %1391 = vmatpush.msra.mxu0 0.0
        %1392 = vmatpush.msra.mxu0 0.0
        %1393 = vmatpush.msra.mxu0 0.0
        %1394 = vmatpush.msra.mxu0 0.0
        %1395 = vmatpush.msra.mxu0 0.0
        %1396 = vmatpush.msra.mxu0 0.0
        %1397 = vmatpush.msra.mxu0 %v1158
        %1398 = vmatmul.f32.gmra.mxu0 %v1380
        %v1399 = vpop.f32.mrf.mxu0
        %v1400 = vadd.f32 0.0, %v1399
        %1401 = vdwg.mxu0
        %v1403 = vsel %vm1184, %v1332, 0
        %1405 = vmatpush.msra.mxu0 0.0
        %1406 = vmatpush.msra.mxu0 0.0
        %1407 = vmatpush.msra.mxu0 0.0
        %1408 = vmatpush.msra.mxu0 0.0
        %1409 = vmatpush.msra.mxu0 0.0
        %1410 = vmatpush.msra.mxu0 0.0
        %1411 = vmatpush.msra.mxu0 0.0
        %1412 = vmatpush.msra.mxu0 0.0
        %1413 = vmatpush.msra.mxu0 0.0
        %1414 = vmatpush.msra.mxu0 0.0
        %1415 = vmatpush.msra.mxu0 0.0
        %1416 = vmatpush.msra.mxu0 0.0
        %1417 = vmatpush.msra.mxu0 0.0
        %1418 = vmatpush.msra.mxu0 0.0
        %1419 = vmatpush.msra.mxu0 0.0
        %1420 = vmatpush.msra.mxu0 %v1178
        %1421 = vmatmul.f32.gmra.mxu0 %v1403
        %v1422 = vpop.f32.mrf.mxu0
        %v1423 = vadd.f32 0.0, %v1422
        %1424 = vdwg.mxu0
        %v1426 = vsel %vm1184, %v1354, 0
        %1428 = vmatpush.msra.mxu0 0.0
        %1429 = vmatpush.msra.mxu0 0.0
        %1430 = vmatpush.msra.mxu0 0.0
        %1431 = vmatpush.msra.mxu0 0.0
        %1432 = vmatpush.msra.mxu0 0.0
        %1433 = vmatpush.msra.mxu0 0.0
        %1434 = vmatpush.msra.mxu0 0.0
        %1435 = vmatpush.msra.mxu0 0.0
        %1436 = vmatpush.msra.mxu0 0.0
        %1437 = vmatpush.msra.mxu0 0.0
        %1438 = vmatpush.msra.mxu0 0.0
        %1439 = vmatpush.msra.mxu0 0.0
        %1440 = vmatpush.msra.mxu0 0.0
        %1441 = vmatpush.msra.mxu0 0.0
        %1442 = vmatpush.msra.mxu0 0.0
        %1443 = vmatpush.msra.mxu0 %v1180
        %1444 = vmatmul.f32.gmra.mxu0 %v1426
        %v1445 = vpop.f32.mrf.mxu0
        %v1446 = vadd.f32 0.0, %v1445
        %1447 = vdwg.mxu0
        %v1449 = vsel %vm1184, %v1377, 0
        %1451 = vmatpush.msra.mxu0 0.0
        %1452 = vmatpush.msra.mxu0 0.0
        %1453 = vmatpush.msra.mxu0 0.0
        %1454 = vmatpush.msra.mxu0 0.0
        %1455 = vmatpush.msra.mxu0 0.0
        %1456 = vmatpush.msra.mxu0 0.0
        %1457 = vmatpush.msra.mxu0 0.0
        %1458 = vmatpush.msra.mxu0 0.0
        %1459 = vmatpush.msra.mxu0 0.0
        %1460 = vmatpush.msra.mxu0 0.0
        %1461 = vmatpush.msra.mxu0 0.0
        %1462 = vmatpush.msra.mxu0 0.0
        %1463 = vmatpush.msra.mxu0 0.0
        %1464 = vmatpush.msra.mxu0 0.0
        %1465 = vmatpush.msra.mxu0 0.0
        %1466 = vmatpush.msra.mxu0 %v1181
        %1467 = vmatmul.f32.gmra.mxu0 %v1449
        %v1468 = vpop.f32.mrf.mxu0
        %v1469 = vadd.f32 0.0, %v1468
        %1470 = vdwg.mxu0
        %v1472 = vsel %vm1184, %v1400, 0
        %1474 = vmatpush.msra.mxu0 0.0
        %1475 = vmatpush.msra.mxu0 0.0
        %1476 = vmatpush.msra.mxu0 0.0
        %1477 = vmatpush.msra.mxu0 0.0
        %1478 = vmatpush.msra.mxu0 0.0
        %1479 = vmatpush.msra.mxu0 0.0
        %1480 = vmatpush.msra.mxu0 0.0
        %1481 = vmatpush.msra.mxu0 0.0
        %1482 = vmatpush.msra.mxu0 0.0
        %1483 = vmatpush.msra.mxu0 0.0
        %1484 = vmatpush.msra.mxu0 0.0
        %1485 = vmatpush.msra.mxu0 0.0
        %1486 = vmatpush.msra.mxu0 0.0
        %1487 = vmatpush.msra.mxu0 0.0
        %1488 = vmatpush.msra.mxu0 0.0
        %1489 = vmatpush.msra.mxu0 %v1182
        %1490 = vmatmul.f32.gmra.mxu0 %v1472
        %v1491 = vpop.f32.mrf.mxu0
        %v1492 = vadd.f32 0.0, %v1491
        %1493 = vdwg.mxu0
        %v1495 = vsel %vm1184, %v1423, 0
        %1497 = vmatpush.msra.mxu0 0.0
        %1498 = vmatpush.msra.mxu0 0.0
        %1499 = vmatpush.msra.mxu0 0.0
        %1500 = vmatpush.msra.mxu0 0.0
        %1501 = vmatpush.msra.mxu0 0.0
        %1502 = vmatpush.msra.mxu0 0.0
        %1503 = vmatpush.msra.mxu0 0.0
        %1504 = vmatpush.msra.mxu0 0.0
        %1505 = vmatpush.msra.mxu0 0.0
        %1506 = vmatpush.msra.mxu0 0.0
        %1507 = vmatpush.msra.mxu0 0.0
        %1508 = vmatpush.msra.mxu0 0.0
        %1509 = vmatpush.msra.mxu0 0.0
        %1510 = vmatpush.msra.mxu0 0.0
        %1511 = vmatpush.msra.mxu0 0.0
        %1512 = vmatpush.msra.mxu0 %v1183
        %1513 = vmatmul.f32.gmra.mxu0 %v1495
        %v1514 = vpop.f32.mrf.mxu0
        %v1515 = vadd.f32 0.0, %v1514
        %1516 = vdwg.mxu0
        %v1517 = vsel %vm861, %v1446, 0.0
        %v1518 = vsel %vm861, %v1469, 0.0
        %v1519 = vadd.f32 %v1517, %v1518
        %v1520 = vsel %vm861, %v1492, 0.0
        %v1521 = vadd.f32 %v1519, %v1520
        %v1522 = vsel %vm861, %v1515, 0.0
        %v1523 = vadd.f32 %v1521, %v1522
        %v1524 = vadd.f32 %v847, %v1523
        %v1525 = vld [vmem:[%s10] sm:$0x1]
        %v1526 = vmul.f32 %v1524, %v1524
        %v1527 = vsel %vm861, %v1526, 0.0
        %1528 = vadd.xlane.f32.xlu0 %v1527
        %v1529 = vpop.xlane.xlu0 %1528
        %v1530 = vmul.f32 %v1529, %v871
        %v1531 = vadd.f32 %v1530, 1e-06
        %v1532 = vrsqrt.pop %v1531
        %v1533 = vmul.f32 %v1532, %v1531
        %v1534 = vmul.f32 %v1533, %v1532
        %v1535 = vmul.f32 0.5, %v1534
        %v1536 = vsub.f32 1.5, %v1535
        %v1537 = vmul.f32 %v1532, %v1536
        %vm1538 = vweird.f32 %v1531
        %vm1539 = vweird.f32 %v1532
        %vm1540 = vmor %vm1538, %vm1539
        %v1541 = vsel %vm1540, %v1532, %v1537
        %v1542 = vmul.f32 %v1524, %v1541
        %v1544 = vperm.slane %v1525, 0
        %v1546 = vmul.f32 %v1542, %v1544
        %v1547 = vld [vmem:[%s11] sm:$0xff]
        %v1548 = vld [vmem:[%s11 + $0x8] sm:$0xff]
        %v1549 = vld [vmem:[%s11 + $0x10] sm:$0xff]
        %v1550 = vld [vmem:[%s11 + $0x18] sm:$0xff]
        %v1552 = vsel %vm861, %v1546, 0
        %1554 = vmatpush.msra.mxu0 0.0
        %1555 = vmatpush.msra.mxu0 0.0
        %1556 = vmatpush.msra.mxu0 0.0
        %1557 = vmatpush.msra.mxu0 0.0
        %1558 = vmatpush.msra.mxu0 0.0
        %1559 = vmatpush.msra.mxu0 0.0
        %1560 = vmatpush.msra.mxu0 0.0
        %1561 = vmatpush.msra.mxu0 0.0
        %1562 = vmatpush.msra.mxu0 0.0
        %1563 = vmatpush.msra.mxu0 0.0
        %1564 = vmatpush.msra.mxu0 0.0
        %1565 = vmatpush.msra.mxu0 0.0
        %1566 = vmatpush.msra.mxu0 %v1550
        %1567 = vmatpush.msra.mxu0 %v1549
        %1568 = vmatpush.msra.mxu0 %v1548
        %1569 = vmatpush.msra.mxu0 %v1547
        %1570 = vmatmul.f32.gmra.mxu0 %v1552
        %v1571 = vpop.f32.mrf.mxu0
        %v1572 = vadd.f32 0.0, %v1571
        %1573 = vdwg.mxu0
        %v1574 = vmax.f32 %v1572, 0.0
        %v1575 = vld [vmem:[%s12] sm:$0xff]
        %v1576 = vld [vmem:[%s12 + $0x8] sm:$0xff]
        %v1577 = vld [vmem:[%s12 + $0x10] sm:$0xff]
        %v1578 = vld [vmem:[%s12 + $0x18] sm:$0xff]
        %v1579 = vld [vmem:[%s12 + $0x20] sm:$0xff]
        %v1580 = vld [vmem:[%s12 + $0x28] sm:$0xff]
        %v1581 = vld [vmem:[%s12 + $0x30] sm:$0xff]
        %v1582 = vld [vmem:[%s12 + $0x38] sm:$0xff]
        %vm1583 = vcmask 523264
        %v1585 = vsel %vm1583, %v1574, 0
        %1587 = vmatpush.msra.mxu0 0.0
        %1588 = vmatpush.msra.mxu0 0.0
        %1589 = vmatpush.msra.mxu0 0.0
        %1590 = vmatpush.msra.mxu0 0.0
        %1591 = vmatpush.msra.mxu0 0.0
        %1592 = vmatpush.msra.mxu0 0.0
        %1593 = vmatpush.msra.mxu0 0.0
        %1594 = vmatpush.msra.mxu0 0.0
        %1595 = vmatpush.msra.mxu0 %v1582
        %1596 = vmatpush.msra.mxu0 %v1581
        %1597 = vmatpush.msra.mxu0 %v1580
        %1598 = vmatpush.msra.mxu0 %v1579
        %1599 = vmatpush.msra.mxu0 %v1578
        %1600 = vmatpush.msra.mxu0 %v1577
        %1601 = vmatpush.msra.mxu0 %v1576
        %1602 = vmatpush.msra.mxu0 %v1575
        %1603 = vmatmul.f32.gmra.mxu0 %v1585
        %v1604 = vpop.f32.mrf.mxu0
        %v1605 = vadd.f32 0.0, %v1604
        %1606 = vdwg.mxu0
        %v1607 = vadd.f32 %v1524, %v1605
        %v1608 = vld [vmem:[%s13] sm:$0x1]
        %v1609 = vmul.f32 %v1607, %v1607
        %v1610 = vsel %vm861, %v1609, 0.0
        %1611 = vadd.xlane.f32.xlu0 %v1610
        %v1612 = vpop.xlane.xlu0 %1611
        %v1613 = vmul.f32 %v1612, %v871
        %v1614 = vadd.f32 %v1613, 1e-06
        %v1615 = vrsqrt.pop %v1614
        %v1616 = vmul.f32 %v1615, %v1614
        %v1617 = vmul.f32 %v1616, %v1615
        %v1618 = vmul.f32 0.5, %v1617
        %v1619 = vsub.f32 1.5, %v1618
        %v1620 = vmul.f32 %v1615, %v1619
        %vm1621 = vweird.f32 %v1614
        %vm1622 = vweird.f32 %v1615
        %vm1623 = vmor %vm1621, %vm1622
        %v1624 = vsel %vm1623, %v1615, %v1620
        %v1625 = vmul.f32 %v1607, %v1624
        %v1627 = vperm.slane %v1608, 0
        %v1629 = vmul.f32 %v1625, %v1627
        %v1630 = vld [vmem:[%s837] sm:$0xff]
        %v1631 = vld [vmem:[%s14] sm:$0x1]
        %v1632 = vmul.f32 %v1630, %v1630
        %v1633 = vsel %vm861, %v1632, 0.0
        %1634 = vadd.xlane.f32.xlu0 %v1633
        %v1635 = vpop.xlane.xlu0 %1634
        %v1636 = vmul.f32 %v1635, %v871
        %v1637 = vadd.f32 %v1636, 1e-06
        %v1638 = vrsqrt.pop %v1637
        %v1639 = vmul.f32 %v1638, %v1637
        %v1640 = vmul.f32 %v1639, %v1638
        %v1641 = vmul.f32 0.5, %v1640
        %v1642 = vsub.f32 1.5, %v1641
        %v1643 = vmul.f32 %v1638, %v1642
        %vm1644 = vweird.f32 %v1637
        %vm1645 = vweird.f32 %v1638
        %vm1646 = vmor %vm1644, %vm1645
        %v1647 = vsel %vm1646, %v1638, %v1643
        %v1648 = vmul.f32 %v1630, %v1647
        %v1650 = vperm.slane %v1631, 0
        %v1652 = vmul.f32 %v1648, %v1650
        %v1653 = vld [vmem:[%s15] sm:$0xff]
        %v1654 = vld [vmem:[%s15 + $0x8] sm:$0xff]
        %v1655 = vld [vmem:[%s15 + $0x10] sm:$0xff]
        %v1656 = vld [vmem:[%s15 + $0x18] sm:$0xff]
        %v1657 = vld [vmem:[%s15 + $0x20] sm:$0xff]
        %v1658 = vld [vmem:[%s15 + $0x28] sm:$0xff]
        %v1659 = vld [vmem:[%s15 + $0x30] sm:$0xff]
        %v1660 = vld [vmem:[%s15 + $0x38] sm:$0xff]
        %v1661 = vld [vmem:[%s15 + $0x40] sm:$0xff]
        %v1662 = vld [vmem:[%s15 + $0x48] sm:$0xff]
        %v1663 = vld [vmem:[%s15 + $0x50] sm:$0xff]
        %v1664 = vld [vmem:[%s15 + $0x58] sm:$0xff]
        %v1665 = vld [vmem:[%s15 + $0x60] sm:$0xff]
        %v1666 = vld [vmem:[%s15 + $0x68] sm:$0xff]
        %v1667 = vld [vmem:[%s15 + $0x70] sm:$0xff]
        %v1668 = vld [vmem:[%s15 + $0x78] sm:$0xff]
        %v1669 = vld [vmem:[%s15 + $0x80] sm:$0xff]
        %v1670 = vld [vmem:[%s15 + $0x88] sm:$0xff]
        %v1671 = vld [vmem:[%s15 + $0x90] sm:$0xff]
        %v1672 = vld [vmem:[%s15 + $0x98] sm:$0xff]
        %v1673 = vld [vmem:[%s15 + $0xa0] sm:$0xff]
        %v1674 = vld [vmem:[%s15 + $0xa8] sm:$0xff]
        %v1675 = vld [vmem:[%s15 + $0xb0] sm:$0xff]
        %v1676 = vld [vmem:[%s15 + $0xb8] sm:$0xff]
        %v1677 = vld [vmem:[%s15 + $0xc0] sm:$0xff]
        %v1678 = vld [vmem:[%s15 + $0xc8] sm:$0xff]
        %v1679 = vld [vmem:[%s15 + $0xd0] sm:$0xff]
        %v1680 = vld [vmem:[%s15 + $0xd8] sm:$0xff]
        %v1681 = vld [vmem:[%s15 + $0xe0] sm:$0xff]
        %v1682 = vld [vmem:[%s15 + $0xe8] sm:$0xff]
        %v1683 = vld [vmem:[%s15 + $0xf0] sm:$0xff]
        %v1684 = vld [vmem:[%s15 + $0xf8] sm:$0xff]
        %v1685 = vld [vmem:[%s15 + $0x100] sm:$0xff]
        %v1686 = vld [vmem:[%s15 + $0x108] sm:$0xff]
        %v1687 = vld [vmem:[%s15 + $0x110] sm:$0xff]
        %v1688 = vld [vmem:[%s15 + $0x118] sm:$0xff]
        %v1689 = vld [vmem:[%s15 + $0x120] sm:$0xff]
        %v1690 = vld [vmem:[%s15 + $0x128] sm:$0xff]
        %v1691 = vld [vmem:[%s15 + $0x130] sm:$0xff]
        %v1692 = vld [vmem:[%s15 + $0x138] sm:$0xff]
        %v1693 = vld [vmem:[%s15 + $0x140] sm:$0xff]
        %v1694 = vld [vmem:[%s15 + $0x148] sm:$0xff]
        %v1695 = vld [vmem:[%s15 + $0x150] sm:$0xff]
        %v1696 = vld [vmem:[%s15 + $0x158] sm:$0xff]
        %v1697 = vld [vmem:[%s15 + $0x160] sm:$0xff]
        %v1698 = vld [vmem:[%s15 + $0x168] sm:$0xff]
        %v1699 = vld [vmem:[%s15 + $0x170] sm:$0xff]
        %v1700 = vld [vmem:[%s15 + $0x178] sm:$0xff]
        %v1702 = vsel %vm861, %v1652, 0
        %1704 = vmatpush.msra.mxu0 0.0
        %1705 = vmatpush.msra.mxu0 0.0
        %1706 = vmatpush.msra.mxu0 0.0
        %1707 = vmatpush.msra.mxu0 0.0
        %1708 = vmatpush.msra.mxu0 0.0
        %1709 = vmatpush.msra.mxu0 0.0
        %1710 = vmatpush.msra.mxu0 0.0
        %1711 = vmatpush.msra.mxu0 0.0
        %1712 = vmatpush.msra.mxu0 0.0
        %1713 = vmatpush.msra.mxu0 0.0
        %1714 = vmatpush.msra.mxu0 0.0
        %1715 = vmatpush.msra.mxu0 0.0
        %1716 = vmatpush.msra.mxu0 %v1656
        %1717 = vmatpush.msra.mxu0 %v1655
        %1718 = vmatpush.msra.mxu0 %v1654
        %1719 = vmatpush.msra.mxu0 %v1653
        %1720 = vmatmul.f32.gmra.mxu0 %v1702
        %v1721 = vpop.f32.mrf.mxu0
        %v1722 = vadd.f32 0.0, %v1721
        %1723 = vdwg.mxu0
        %1724 = vmatpush.msra.mxu0 0.0
        %1725 = vmatpush.msra.mxu0 0.0
        %1726 = vmatpush.msra.mxu0 0.0
        %1727 = vmatpush.msra.mxu0 0.0
        %1728 = vmatpush.msra.mxu0 0.0
        %1729 = vmatpush.msra.mxu0 0.0
        %1730 = vmatpush.msra.mxu0 0.0
        %1731 = vmatpush.msra.mxu0 0.0
        %1732 = vmatpush.msra.mxu0 0.0
        %1733 = vmatpush.msra.mxu0 0.0
        %1734 = vmatpush.msra.mxu0 0.0
        %1735 = vmatpush.msra.mxu0 0.0
        %1736 = vmatpush.msra.mxu0 %v1660
        %1737 = vmatpush.msra.mxu0 %v1659
        %1738 = vmatpush.msra.mxu0 %v1658
        %1739 = vmatpush.msra.mxu0 %v1657
        %1740 = vmatmul.f32.gmra.mxu0 %v1702
        %v1741 = vpop.f32.mrf.mxu0
        %v1742 = vadd.f32 0.0, %v1741
        %1743 = vdwg.mxu0
        %1744 = vmatpush.msra.mxu0 0.0
        %1745 = vmatpush.msra.mxu0 0.0
        %1746 = vmatpush.msra.mxu0 0.0
        %1747 = vmatpush.msra.mxu0 0.0
        %1748 = vmatpush.msra.mxu0 0.0
        %1749 = vmatpush.msra.mxu0 0.0
        %1750 = vmatpush.msra.mxu0 0.0
        %1751 = vmatpush.msra.mxu0 0.0
        %1752 = vmatpush.msra.mxu0 0.0
        %1753 = vmatpush.msra.mxu0 0.0
        %1754 = vmatpush.msra.mxu0 0.0
        %1755 = vmatpush.msra.mxu0 0.0
        %1756 = vmatpush.msra.mxu0 %v1664
        %1757 = vmatpush.msra.mxu0 %v1663
        %1758 = vmatpush.msra.mxu0 %v1662
        %1759 = vmatpush.msra.mxu0 %v1661
        %1760 = vmatmul.f32.gmra.mxu0 %v1702
        %v1761 = vpop.f32.mrf.mxu0
        %v1762 = vadd.f32 0.0, %v1761
        %1763 = vdwg.mxu0
        %1764 = vmatpush.msra.mxu0 0.0
        %1765 = vmatpush.msra.mxu0 0.0
        %1766 = vmatpush.msra.mxu0 0.0
        %1767 = vmatpush.msra.mxu0 0.0
        %1768 = vmatpush.msra.mxu0 0.0
        %1769 = vmatpush.msra.mxu0 0.0
        %1770 = vmatpush.msra.mxu0 0.0
        %1771 = vmatpush.msra.mxu0 0.0
        %1772 = vmatpush.msra.mxu0 0.0
        %1773 = vmatpush.msra.mxu0 0.0
        %1774 = vmatpush.msra.mxu0 0.0
        %1775 = vmatpush.msra.mxu0 0.0
        %1776 = vmatpush.msra.mxu0 %v1668
        %1777 = vmatpush.msra.mxu0 %v1667
        %1778 = vmatpush.msra.mxu0 %v1666
        %1779 = vmatpush.msra.mxu0 %v1665
        %1780 = vmatmul.f32.gmra.mxu0 %v1702
        %v1781 = vpop.f32.mrf.mxu0
        %v1782 = vadd.f32 0.0, %v1781
        %1783 = vdwg.mxu0
        %1784 = vmatpush.msra.mxu0 0.0
        %1785 = vmatpush.msra.mxu0 0.0
        %1786 = vmatpush.msra.mxu0 0.0
        %1787 = vmatpush.msra.mxu0 0.0
        %1788 = vmatpush.msra.mxu0 0.0
        %1789 = vmatpush.msra.mxu0 0.0
        %1790 = vmatpush.msra.mxu0 0.0
        %1791 = vmatpush.msra.mxu0 0.0
        %1792 = vmatpush.msra.mxu0 0.0
        %1793 = vmatpush.msra.mxu0 0.0
        %1794 = vmatpush.msra.mxu0 0.0
        %1795 = vmatpush.msra.mxu0 0.0
        %1796 = vmatpush.msra.mxu0 %v1672
        %1797 = vmatpush.msra.mxu0 %v1671
        %1798 = vmatpush.msra.mxu0 %v1670
        %1799 = vmatpush.msra.mxu0 %v1669
        %1800 = vmatmul.f32.gmra.mxu0 %v1702
        %v1801 = vpop.f32.mrf.mxu0
        %v1802 = vadd.f32 0.0, %v1801
        %1803 = vdwg.mxu0
        %1804 = vmatpush.msra.mxu0 0.0
        %1805 = vmatpush.msra.mxu0 0.0
        %1806 = vmatpush.msra.mxu0 0.0
        %1807 = vmatpush.msra.mxu0 0.0
        %1808 = vmatpush.msra.mxu0 0.0
        %1809 = vmatpush.msra.mxu0 0.0
        %1810 = vmatpush.msra.mxu0 0.0
        %1811 = vmatpush.msra.mxu0 0.0
        %1812 = vmatpush.msra.mxu0 0.0
        %1813 = vmatpush.msra.mxu0 0.0
        %1814 = vmatpush.msra.mxu0 0.0
        %1815 = vmatpush.msra.mxu0 0.0
        %1816 = vmatpush.msra.mxu0 %v1676
        %1817 = vmatpush.msra.mxu0 %v1675
        %1818 = vmatpush.msra.mxu0 %v1674
        %1819 = vmatpush.msra.mxu0 %v1673
        %1820 = vmatmul.f32.gmra.mxu0 %v1702
        %v1821 = vpop.f32.mrf.mxu0
        %v1822 = vadd.f32 0.0, %v1821
        %1823 = vdwg.mxu0
        %1824 = vmatpush.msra.mxu0 0.0
        %1825 = vmatpush.msra.mxu0 0.0
        %1826 = vmatpush.msra.mxu0 0.0
        %1827 = vmatpush.msra.mxu0 0.0
        %1828 = vmatpush.msra.mxu0 0.0
        %1829 = vmatpush.msra.mxu0 0.0
        %1830 = vmatpush.msra.mxu0 0.0
        %1831 = vmatpush.msra.mxu0 0.0
        %1832 = vmatpush.msra.mxu0 0.0
        %1833 = vmatpush.msra.mxu0 0.0
        %1834 = vmatpush.msra.mxu0 0.0
        %1835 = vmatpush.msra.mxu0 0.0
        %1836 = vmatpush.msra.mxu0 %v1680
        %1837 = vmatpush.msra.mxu0 %v1679
        %1838 = vmatpush.msra.mxu0 %v1678
        %1839 = vmatpush.msra.mxu0 %v1677
        %1840 = vmatmul.f32.gmra.mxu0 %v1702
        %v1841 = vpop.f32.mrf.mxu0
        %v1842 = vadd.f32 0.0, %v1841
        %1843 = vdwg.mxu0
        %1844 = vmatpush.msra.mxu0 0.0
        %1845 = vmatpush.msra.mxu0 0.0
        %1846 = vmatpush.msra.mxu0 0.0
        %1847 = vmatpush.msra.mxu0 0.0
        %1848 = vmatpush.msra.mxu0 0.0
        %1849 = vmatpush.msra.mxu0 0.0
        %1850 = vmatpush.msra.mxu0 0.0
        %1851 = vmatpush.msra.mxu0 0.0
        %1852 = vmatpush.msra.mxu0 0.0
        %1853 = vmatpush.msra.mxu0 0.0
        %1854 = vmatpush.msra.mxu0 0.0
        %1855 = vmatpush.msra.mxu0 0.0
        %1856 = vmatpush.msra.mxu0 %v1684
        %1857 = vmatpush.msra.mxu0 %v1683
        %1858 = vmatpush.msra.mxu0 %v1682
        %1859 = vmatpush.msra.mxu0 %v1681
        %1860 = vmatmul.f32.gmra.mxu0 %v1702
        %v1861 = vpop.f32.mrf.mxu0
        %v1862 = vadd.f32 0.0, %v1861
        %1863 = vdwg.mxu0
        %1864 = vmatpush.msra.mxu0 0.0
        %1865 = vmatpush.msra.mxu0 0.0
        %1866 = vmatpush.msra.mxu0 0.0
        %1867 = vmatpush.msra.mxu0 0.0
        %1868 = vmatpush.msra.mxu0 0.0
        %1869 = vmatpush.msra.mxu0 0.0
        %1870 = vmatpush.msra.mxu0 0.0
        %1871 = vmatpush.msra.mxu0 0.0
        %1872 = vmatpush.msra.mxu0 0.0
        %1873 = vmatpush.msra.mxu0 0.0
        %1874 = vmatpush.msra.mxu0 0.0
        %1875 = vmatpush.msra.mxu0 0.0
        %1876 = vmatpush.msra.mxu0 %v1688
        %1877 = vmatpush.msra.mxu0 %v1687
        %1878 = vmatpush.msra.mxu0 %v1686
        %1879 = vmatpush.msra.mxu0 %v1685
        %1880 = vmatmul.f32.gmra.mxu0 %v1702
        %v1881 = vpop.f32.mrf.mxu0
        %v1882 = vadd.f32 0.0, %v1881
        %1883 = vdwg.mxu0
        %1884 = vmatpush.msra.mxu0 0.0
        %1885 = vmatpush.msra.mxu0 0.0
        %1886 = vmatpush.msra.mxu0 0.0
        %1887 = vmatpush.msra.mxu0 0.0
        %1888 = vmatpush.msra.mxu0 0.0
        %1889 = vmatpush.msra.mxu0 0.0
        %1890 = vmatpush.msra.mxu0 0.0
        %1891 = vmatpush.msra.mxu0 0.0
        %1892 = vmatpush.msra.mxu0 0.0
        %1893 = vmatpush.msra.mxu0 0.0
        %1894 = vmatpush.msra.mxu0 0.0
        %1895 = vmatpush.msra.mxu0 0.0
        %1896 = vmatpush.msra.mxu0 %v1692
        %1897 = vmatpush.msra.mxu0 %v1691
        %1898 = vmatpush.msra.mxu0 %v1690
        %1899 = vmatpush.msra.mxu0 %v1689
        %1900 = vmatmul.f32.gmra.mxu0 %v1702
        %v1901 = vpop.f32.mrf.mxu0
        %v1902 = vadd.f32 0.0, %v1901
        %1903 = vdwg.mxu0
        %1904 = vmatpush.msra.mxu0 0.0
        %1905 = vmatpush.msra.mxu0 0.0
        %1906 = vmatpush.msra.mxu0 0.0
        %1907 = vmatpush.msra.mxu0 0.0
        %1908 = vmatpush.msra.mxu0 0.0
        %1909 = vmatpush.msra.mxu0 0.0
        %1910 = vmatpush.msra.mxu0 0.0
        %1911 = vmatpush.msra.mxu0 0.0
        %1912 = vmatpush.msra.mxu0 0.0
        %1913 = vmatpush.msra.mxu0 0.0
        %1914 = vmatpush.msra.mxu0 0.0
        %1915 = vmatpush.msra.mxu0 0.0
        %1916 = vmatpush.msra.mxu0 %v1696
        %1917 = vmatpush.msra.mxu0 %v1695
        %1918 = vmatpush.msra.mxu0 %v1694
        %1919 = vmatpush.msra.mxu0 %v1693
        %1920 = vmatmul.f32.gmra.mxu0 %v1702
        %v1921 = vpop.f32.mrf.mxu0
        %v1922 = vadd.f32 0.0, %v1921
        %1923 = vdwg.mxu0
        %1924 = vmatpush.msra.mxu0 0.0
        %1925 = vmatpush.msra.mxu0 0.0
        %1926 = vmatpush.msra.mxu0 0.0
        %1927 = vmatpush.msra.mxu0 0.0
        %1928 = vmatpush.msra.mxu0 0.0
        %1929 = vmatpush.msra.mxu0 0.0
        %1930 = vmatpush.msra.mxu0 0.0
        %1931 = vmatpush.msra.mxu0 0.0
        %1932 = vmatpush.msra.mxu0 0.0
        %1933 = vmatpush.msra.mxu0 0.0
        %1934 = vmatpush.msra.mxu0 0.0
        %1935 = vmatpush.msra.mxu0 0.0
        %1936 = vmatpush.msra.mxu0 %v1700
        %1937 = vmatpush.msra.mxu0 %v1699
        %1938 = vmatpush.msra.mxu0 %v1698
        %1939 = vmatpush.msra.mxu0 %v1697
        %1940 = vmatmul.f32.gmra.mxu0 %v1702
        %v1941 = vpop.f32.mrf.mxu0
        %v1942 = vadd.f32 0.0, %v1941
        %1943 = vdwg.mxu0
        %v1944 = vld [vmem:[%s16] sm:$0xff]
        %v1945 = vld [vmem:[%s16 + $0x8] sm:$0xff]
        %v1946 = vld [vmem:[%s16 + $0x10] sm:$0xff]
        %v1947 = vld [vmem:[%s16 + $0x18] sm:$0xff]
        %v1948 = vld [vmem:[%s5] sm:$0xff]
        %v1949 = vld [vmem:[%s5 + $0x8] sm:$0xff]
        %v1950 = vld [vmem:[%s5 + $0x10] sm:$0xff]
        %v1951 = vld [vmem:[%s5 + $0x18] sm:$0xff]
        %v1953 = vsel %vm1184, %v1722, 0
        %v1956 = vsel %vm1184, %v1802, 0
        %1958 = vmatpush.xpose.msra.mxu0 0.0
        %1959 = vmatpush.xpose.msra.mxu0 0.0
        %1960 = vmatpush.xpose.msra.mxu0 0.0
        %1961 = vmatpush.xpose.msra.mxu0 0.0
        %1962 = vmatpush.xpose.msra.mxu0 0.0
        %1963 = vmatpush.xpose.msra.mxu0 0.0
        %1964 = vmatpush.xpose.msra.mxu0 0.0
        %1965 = vmatpush.xpose.msra.mxu0 0.0
        %1966 = vmatpush.xpose.msra.mxu0 0.0
        %1967 = vmatpush.xpose.msra.mxu0 0.0
        %1968 = vmatpush.xpose.msra.mxu0 0.0
        %1969 = vmatpush.xpose.msra.mxu0 0.0
        %1970 = vmatpush.xpose.msra.mxu0 0.0
        %1971 = vmatpush.xpose.msra.mxu0 0.0
        %1972 = vmatpush.xpose.msra.mxu0 0.0
        %1973 = vmatpush.xpose.msra.mxu0 %v1956
        %1974 = vmatmul.f32.gmra.mxu0 %v1953
        %v1975 = vpop.f32.mrf.mxu0
        %v1976 = vadd.f32 %v1948, %v1975
        %1977 = vdwg.mxu0
        %v1979 = vsel %vm1184, %v1742, 0
        %v1982 = vsel %vm1184, %v1822, 0
        %1984 = vmatpush.xpose.msra.mxu0 0.0
        %1985 = vmatpush.xpose.msra.mxu0 0.0
        %1986 = vmatpush.xpose.msra.mxu0 0.0
        %1987 = vmatpush.xpose.msra.mxu0 0.0
        %1988 = vmatpush.xpose.msra.mxu0 0.0
        %1989 = vmatpush.xpose.msra.mxu0 0.0
        %1990 = vmatpush.xpose.msra.mxu0 0.0
        %1991 = vmatpush.xpose.msra.mxu0 0.0
        %1992 = vmatpush.xpose.msra.mxu0 0.0
        %1993 = vmatpush.xpose.msra.mxu0 0.0
        %1994 = vmatpush.xpose.msra.mxu0 0.0
        %1995 = vmatpush.xpose.msra.mxu0 0.0
        %1996 = vmatpush.xpose.msra.mxu0 0.0
        %1997 = vmatpush.xpose.msra.mxu0 0.0
        %1998 = vmatpush.xpose.msra.mxu0 0.0
        %1999 = vmatpush.xpose.msra.mxu0 %v1982
        %2000 = vmatmul.f32.gmra.mxu0 %v1979
        %v2001 = vpop.f32.mrf.mxu0
        %v2002 = vadd.f32 %v1949, %v2001
        %2003 = vdwg.mxu0
        %v2005 = vsel %vm1184, %v1762, 0
        %v2008 = vsel %vm1184, %v1842, 0
        %2010 = vmatpush.xpose.msra.mxu0 0.0
        %2011 = vmatpush.xpose.msra.mxu0 0.0
        %2012 = vmatpush.xpose.msra.mxu0 0.0
        %2013 = vmatpush.xpose.msra.mxu0 0.0
        %2014 = vmatpush.xpose.msra.mxu0 0.0
        %2015 = vmatpush.xpose.msra.mxu0 0.0
        %2016 = vmatpush.xpose.msra.mxu0 0.0
        %2017 = vmatpush.xpose.msra.mxu0 0.0
        %2018 = vmatpush.xpose.msra.mxu0 0.0
        %2019 = vmatpush.xpose.msra.mxu0 0.0
        %2020 = vmatpush.xpose.msra.mxu0 0.0
        %2021 = vmatpush.xpose.msra.mxu0 0.0
        %2022 = vmatpush.xpose.msra.mxu0 0.0
        %2023 = vmatpush.xpose.msra.mxu0 0.0
        %2024 = vmatpush.xpose.msra.mxu0 0.0
        %2025 = vmatpush.xpose.msra.mxu0 %v2008
        %2026 = vmatmul.f32.gmra.mxu0 %v2005
        %v2027 = vpop.f32.mrf.mxu0
        %v2028 = vadd.f32 %v1950, %v2027
        %2029 = vdwg.mxu0
        %v2031 = vsel %vm1184, %v1782, 0
        %v2034 = vsel %vm1184, %v1862, 0
        %2036 = vmatpush.xpose.msra.mxu0 0.0
        %2037 = vmatpush.xpose.msra.mxu0 0.0
        %2038 = vmatpush.xpose.msra.mxu0 0.0
        %2039 = vmatpush.xpose.msra.mxu0 0.0
        %2040 = vmatpush.xpose.msra.mxu0 0.0
        %2041 = vmatpush.xpose.msra.mxu0 0.0
        %2042 = vmatpush.xpose.msra.mxu0 0.0
        %2043 = vmatpush.xpose.msra.mxu0 0.0
        %2044 = vmatpush.xpose.msra.mxu0 0.0
        %2045 = vmatpush.xpose.msra.mxu0 0.0
        %2046 = vmatpush.xpose.msra.mxu0 0.0
        %2047 = vmatpush.xpose.msra.mxu0 0.0
        %2048 = vmatpush.xpose.msra.mxu0 0.0
        %2049 = vmatpush.xpose.msra.mxu0 0.0
        %2050 = vmatpush.xpose.msra.mxu0 0.0
        %2051 = vmatpush.xpose.msra.mxu0 %v2034
        %2052 = vmatmul.f32.gmra.mxu0 %v2031
        %v2053 = vpop.f32.mrf.mxu0
        %v2054 = vadd.f32 %v1951, %v2053
        %2055 = vdwg.mxu0
        %v2056 = vsel %vm1184, %v1976, -inf
        %2057 = vmax.xlane.f32.xlu0 %v2056
        %v2058 = vpop.xlane.xlu0 %2057
        %v2059 = vsel %vm1184, %v2002, -inf
        %2060 = vmax.xlane.f32.xlu0 %v2059
        %v2061 = vpop.xlane.xlu0 %2060
        %v2062 = vsel %vm1184, %v2028, -inf
        %2063 = vmax.xlane.f32.xlu0 %v2062
        %v2064 = vpop.xlane.xlu0 %2063
        %v2065 = vsel %vm1184, %v2054, -inf
        %2066 = vmax.xlane.f32.xlu0 %v2065
        %v2067 = vpop.xlane.xlu0 %2066
        %v2068 = vsub.f32 %v1976, %v2058
        %v2069 = vsub.f32 %v2002, %v2061
        %v2070 = vsub.f32 %v2028, %v2064
        %v2071 = vsub.f32 %v2054, %v2067
        %v2072 = vmul.f32 %v2068, 1.442695
        %v2073 = vpow.pop %v2072
        %v2074 = vmul.f32 %v2069, 1.442695
        %v2075 = vpow.pop %v2074
        %v2076 = vmul.f32 %v2070, 1.442695
        %v2077 = vpow.pop %v2076
        %v2078 = vmul.f32 %v2071, 1.442695
        %v2079 = vpow.pop %v2078
        %v2080 = vsel %vm1184, %v2073, 0.0
        %2081 = vadd.xlane.f32.xlu0 %v2080
        %v2082 = vpop.xlane.xlu0 %2081
        %v2083 = vsel %vm1184, %v2075, 0.0
        %2084 = vadd.xlane.f32.xlu0 %v2083
        %v2085 = vpop.xlane.xlu0 %2084
        %v2086 = vsel %vm1184, %v2077, 0.0
        %2087 = vadd.xlane.f32.xlu0 %v2086
        %v2088 = vpop.xlane.xlu0 %2087
        %v2089 = vsel %vm1184, %v2079, 0.0
        %2090 = vadd.xlane.f32.xlu0 %v2089
        %v2091 = vpop.xlane.xlu0 %2090
        %v2092 = vrcp.pop %v2082
        %v2093 = vrcp.pop %v2085
        %v2094 = vrcp.pop %v2088
        %v2095 = vrcp.pop %v2091
        %v2096 = vmul.f32 %v2073, %v2092
        %v2097 = vmul.f32 %v2075, %v2093
        %v2098 = vmul.f32 %v2077, %v2094
        %v2099 = vmul.f32 %v2079, %v2095
        %v2101 = vsel %vm1184, %v2096, 0
        %2103 = vmatpush.msra.mxu0 0.0
        %2104 = vmatpush.msra.mxu0 0.0
        %2105 = vmatpush.msra.mxu0 0.0
        %2106 = vmatpush.msra.mxu0 0.0
        %2107 = vmatpush.msra.mxu0 0.0
        %2108 = vmatpush.msra.mxu0 0.0
        %2109 = vmatpush.msra.mxu0 0.0
        %2110 = vmatpush.msra.mxu0 0.0
        %2111 = vmatpush.msra.mxu0 0.0
        %2112 = vmatpush.msra.mxu0 0.0
        %2113 = vmatpush.msra.mxu0 0.0
        %2114 = vmatpush.msra.mxu0 0.0
        %2115 = vmatpush.msra.mxu0 0.0
        %2116 = vmatpush.msra.mxu0 0.0
        %2117 = vmatpush.msra.mxu0 0.0
        %2118 = vmatpush.msra.mxu0 %v1882
        %2119 = vmatmul.f32.gmra.mxu0 %v2101
        %v2120 = vpop.f32.mrf.mxu0
        %v2121 = vadd.f32 0.0, %v2120
        %2122 = vdwg.mxu0
        %v2124 = vsel %vm1184, %v2097, 0
        %2126 = vmatpush.msra.mxu0 0.0
        %2127 = vmatpush.msra.mxu0 0.0
        %2128 = vmatpush.msra.mxu0 0.0
        %2129 = vmatpush.msra.mxu0 0.0
        %2130 = vmatpush.msra.mxu0 0.0
        %2131 = vmatpush.msra.mxu0 0.0
        %2132 = vmatpush.msra.mxu0 0.0
        %2133 = vmatpush.msra.mxu0 0.0
        %2134 = vmatpush.msra.mxu0 0.0
        %2135 = vmatpush.msra.mxu0 0.0
        %2136 = vmatpush.msra.mxu0 0.0
        %2137 = vmatpush.msra.mxu0 0.0
        %2138 = vmatpush.msra.mxu0 0.0
        %2139 = vmatpush.msra.mxu0 0.0
        %2140 = vmatpush.msra.mxu0 0.0
        %2141 = vmatpush.msra.mxu0 %v1902
        %2142 = vmatmul.f32.gmra.mxu0 %v2124
        %v2143 = vpop.f32.mrf.mxu0
        %v2144 = vadd.f32 0.0, %v2143
        %2145 = vdwg.mxu0
        %v2147 = vsel %vm1184, %v2098, 0
        %2149 = vmatpush.msra.mxu0 0.0
        %2150 = vmatpush.msra.mxu0 0.0
        %2151 = vmatpush.msra.mxu0 0.0
        %2152 = vmatpush.msra.mxu0 0.0
        %2153 = vmatpush.msra.mxu0 0.0
        %2154 = vmatpush.msra.mxu0 0.0
        %2155 = vmatpush.msra.mxu0 0.0
        %2156 = vmatpush.msra.mxu0 0.0
        %2157 = vmatpush.msra.mxu0 0.0
        %2158 = vmatpush.msra.mxu0 0.0
        %2159 = vmatpush.msra.mxu0 0.0
        %2160 = vmatpush.msra.mxu0 0.0
        %2161 = vmatpush.msra.mxu0 0.0
        %2162 = vmatpush.msra.mxu0 0.0
        %2163 = vmatpush.msra.mxu0 0.0
        %2164 = vmatpush.msra.mxu0 %v1922
        %2165 = vmatmul.f32.gmra.mxu0 %v2147
        %v2166 = vpop.f32.mrf.mxu0
        %v2167 = vadd.f32 0.0, %v2166
        %2168 = vdwg.mxu0
        %v2170 = vsel %vm1184, %v2099, 0
        %2172 = vmatpush.msra.mxu0 0.0
        %2173 = vmatpush.msra.mxu0 0.0
        %2174 = vmatpush.msra.mxu0 0.0
        %2175 = vmatpush.msra.mxu0 0.0
        %2176 = vmatpush.msra.mxu0 0.0
        %2177 = vmatpush.msra.mxu0 0.0
        %2178 = vmatpush.msra.mxu0 0.0
        %2179 = vmatpush.msra.mxu0 0.0
        %2180 = vmatpush.msra.mxu0 0.0
        %2181 = vmatpush.msra.mxu0 0.0
        %2182 = vmatpush.msra.mxu0 0.0
        %2183 = vmatpush.msra.mxu0 0.0
        %2184 = vmatpush.msra.mxu0 0.0
        %2185 = vmatpush.msra.mxu0 0.0
        %2186 = vmatpush.msra.mxu0 0.0
        %2187 = vmatpush.msra.mxu0 %v1942
        %2188 = vmatmul.f32.gmra.mxu0 %v2170
        %v2189 = vpop.f32.mrf.mxu0
        %v2190 = vadd.f32 0.0, %v2189
        %2191 = vdwg.mxu0
        %v2193 = vsel %vm1184, %v2121, 0
        %2195 = vmatpush.msra.mxu0 0.0
        %2196 = vmatpush.msra.mxu0 0.0
        %2197 = vmatpush.msra.mxu0 0.0
        %2198 = vmatpush.msra.mxu0 0.0
        %2199 = vmatpush.msra.mxu0 0.0
        %2200 = vmatpush.msra.mxu0 0.0
        %2201 = vmatpush.msra.mxu0 0.0
        %2202 = vmatpush.msra.mxu0 0.0
        %2203 = vmatpush.msra.mxu0 0.0
        %2204 = vmatpush.msra.mxu0 0.0
        %2205 = vmatpush.msra.mxu0 0.0
        %2206 = vmatpush.msra.mxu0 0.0
        %2207 = vmatpush.msra.mxu0 0.0
        %2208 = vmatpush.msra.mxu0 0.0
        %2209 = vmatpush.msra.mxu0 0.0
        %2210 = vmatpush.msra.mxu0 %v1944
        %2211 = vmatmul.f32.gmra.mxu0 %v2193
        %v2212 = vpop.f32.mrf.mxu0
        %v2213 = vadd.f32 0.0, %v2212
        %2214 = vdwg.mxu0
        %v2216 = vsel %vm1184, %v2144, 0
        %2218 = vmatpush.msra.mxu0 0.0
        %2219 = vmatpush.msra.mxu0 0.0
        %2220 = vmatpush.msra.mxu0 0.0
        %2221 = vmatpush.msra.mxu0 0.0
        %2222 = vmatpush.msra.mxu0 0.0
        %2223 = vmatpush.msra.mxu0 0.0
        %2224 = vmatpush.msra.mxu0 0.0
        %2225 = vmatpush.msra.mxu0 0.0
        %2226 = vmatpush.msra.mxu0 0.0
        %2227 = vmatpush.msra.mxu0 0.0
        %2228 = vmatpush.msra.mxu0 0.0
        %2229 = vmatpush.msra.mxu0 0.0
        %2230 = vmatpush.msra.mxu0 0.0
        %2231 = vmatpush.msra.mxu0 0.0
        %2232 = vmatpush.msra.mxu0 0.0
        %2233 = vmatpush.msra.mxu0 %v1945
        %2234 = vmatmul.f32.gmra.mxu0 %v2216
        %v2235 = vpop.f32.mrf.mxu0
        %v2236 = vadd.f32 0.0, %v2235
        %2237 = vdwg.mxu0
        %v2239 = vsel %vm1184, %v2167, 0
        %2241 = vmatpush.msra.mxu0 0.0
        %2242 = vmatpush.msra.mxu0 0.0
        %2243 = vmatpush.msra.mxu0 0.0
        %2244 = vmatpush.msra.mxu0 0.0
        %2245 = vmatpush.msra.mxu0 0.0
        %2246 = vmatpush.msra.mxu0 0.0
        %2247 = vmatpush.msra.mxu0 0.0
        %2248 = vmatpush.msra.mxu0 0.0
        %2249 = vmatpush.msra.mxu0 0.0
        %2250 = vmatpush.msra.mxu0 0.0
        %2251 = vmatpush.msra.mxu0 0.0
        %2252 = vmatpush.msra.mxu0 0.0
        %2253 = vmatpush.msra.mxu0 0.0
        %2254 = vmatpush.msra.mxu0 0.0
        %2255 = vmatpush.msra.mxu0 0.0
        %2256 = vmatpush.msra.mxu0 %v1946
        %2257 = vmatmul.f32.gmra.mxu0 %v2239
        %v2258 = vpop.f32.mrf.mxu0
        %v2259 = vadd.f32 0.0, %v2258
        %2260 = vdwg.mxu0
        %v2262 = vsel %vm1184, %v2190, 0
        %2264 = vmatpush.msra.mxu0 0.0
        %2265 = vmatpush.msra.mxu0 0.0
        %2266 = vmatpush.msra.mxu0 0.0
        %2267 = vmatpush.msra.mxu0 0.0
        %2268 = vmatpush.msra.mxu0 0.0
        %2269 = vmatpush.msra.mxu0 0.0
        %2270 = vmatpush.msra.mxu0 0.0
        %2271 = vmatpush.msra.mxu0 0.0
        %2272 = vmatpush.msra.mxu0 0.0
        %2273 = vmatpush.msra.mxu0 0.0
        %2274 = vmatpush.msra.mxu0 0.0
        %2275 = vmatpush.msra.mxu0 0.0
        %2276 = vmatpush.msra.mxu0 0.0
        %2277 = vmatpush.msra.mxu0 0.0
        %2278 = vmatpush.msra.mxu0 0.0
        %2279 = vmatpush.msra.mxu0 %v1947
        %2280 = vmatmul.f32.gmra.mxu0 %v2262
        %v2281 = vpop.f32.mrf.mxu0
        %v2282 = vadd.f32 0.0, %v2281
        %2283 = vdwg.mxu0
        %v2284 = vsel %vm861, %v2213, 0.0
        %v2285 = vsel %vm861, %v2236, 0.0
        %v2286 = vadd.f32 %v2284, %v2285
        %v2287 = vsel %vm861, %v2259, 0.0
        %v2288 = vadd.f32 %v2286, %v2287
        %v2289 = vsel %vm861, %v2282, 0.0
        %v2290 = vadd.f32 %v2288, %v2289
        %v2291 = vadd.f32 %v1630, %v2290
        %v2292 = vld [vmem:[%s17] sm:$0x1]
        %v2293 = vmul.f32 %v2291, %v2291
        %v2294 = vsel %vm861, %v2293, 0.0
        %2295 = vadd.xlane.f32.xlu0 %v2294
        %v2296 = vpop.xlane.xlu0 %2295
        %v2297 = vmul.f32 %v2296, %v871
        %v2298 = vadd.f32 %v2297, 1e-06
        %v2299 = vrsqrt.pop %v2298
        %v2300 = vmul.f32 %v2299, %v2298
        %v2301 = vmul.f32 %v2300, %v2299
        %v2302 = vmul.f32 0.5, %v2301
        %v2303 = vsub.f32 1.5, %v2302
        %v2304 = vmul.f32 %v2299, %v2303
        %vm2305 = vweird.f32 %v2298
        %vm2306 = vweird.f32 %v2299
        %vm2307 = vmor %vm2305, %vm2306
        %v2308 = vsel %vm2307, %v2299, %v2304
        %v2309 = vmul.f32 %v2291, %v2308
        %v2311 = vperm.slane %v2292, 0
        %v2313 = vmul.f32 %v2309, %v2311
        %v2314 = vld [vmem:[%s18] sm:$0xff]
        %v2315 = vld [vmem:[%s18 + $0x8] sm:$0xff]
        %v2316 = vld [vmem:[%s18 + $0x10] sm:$0xff]
        %v2317 = vld [vmem:[%s18 + $0x18] sm:$0xff]
        %v2318 = vld [vmem:[%s18 + $0x20] sm:$0xff]
        %v2319 = vld [vmem:[%s18 + $0x28] sm:$0xff]
        %v2320 = vld [vmem:[%s18 + $0x30] sm:$0xff]
        %v2321 = vld [vmem:[%s18 + $0x38] sm:$0xff]
        %v2322 = vld [vmem:[%s18 + $0x40] sm:$0xff]
        %v2323 = vld [vmem:[%s18 + $0x48] sm:$0xff]
        %v2324 = vld [vmem:[%s18 + $0x50] sm:$0xff]
        %v2325 = vld [vmem:[%s18 + $0x58] sm:$0xff]
        %v2326 = vld [vmem:[%s18 + $0x60] sm:$0xff]
        %v2327 = vld [vmem:[%s18 + $0x68] sm:$0xff]
        %v2328 = vld [vmem:[%s18 + $0x70] sm:$0xff]
        %v2329 = vld [vmem:[%s18 + $0x78] sm:$0xff]
        %v2331 = vsel %vm861, %v2313, 0
        %2333 = vmatpush.msra.mxu0 0.0
        %2334 = vmatpush.msra.mxu0 0.0
        %2335 = vmatpush.msra.mxu0 0.0
        %2336 = vmatpush.msra.mxu0 0.0
        %2337 = vmatpush.msra.mxu0 0.0
        %2338 = vmatpush.msra.mxu0 0.0
        %2339 = vmatpush.msra.mxu0 0.0
        %2340 = vmatpush.msra.mxu0 0.0
        %2341 = vmatpush.msra.mxu0 0.0
        %2342 = vmatpush.msra.mxu0 0.0
        %2343 = vmatpush.msra.mxu0 0.0
        %2344 = vmatpush.msra.mxu0 0.0
        %2345 = vmatpush.msra.mxu0 %v2317
        %2346 = vmatpush.msra.mxu0 %v2316
        %2347 = vmatpush.msra.mxu0 %v2315
        %2348 = vmatpush.msra.mxu0 %v2314
        %2349 = vmatmul.f32.gmra.mxu0 %v2331
        %v2350 = vpop.f32.mrf.mxu0
        %v2351 = vadd.f32 0.0, %v2350
        %2352 = vdwg.mxu0
        %2353 = vmatpush.msra.mxu0 0.0
        %2354 = vmatpush.msra.mxu0 0.0
        %2355 = vmatpush.msra.mxu0 0.0
        %2356 = vmatpush.msra.mxu0 0.0
        %2357 = vmatpush.msra.mxu0 0.0
        %2358 = vmatpush.msra.mxu0 0.0
        %2359 = vmatpush.msra.mxu0 0.0
        %2360 = vmatpush.msra.mxu0 0.0
        %2361 = vmatpush.msra.mxu0 0.0
        %2362 = vmatpush.msra.mxu0 0.0
        %2363 = vmatpush.msra.mxu0 0.0
        %2364 = vmatpush.msra.mxu0 0.0
        %2365 = vmatpush.msra.mxu0 %v2321
        %2366 = vmatpush.msra.mxu0 %v2320
        %2367 = vmatpush.msra.mxu0 %v2319
        %2368 = vmatpush.msra.mxu0 %v2318
        %2369 = vmatmul.f32.gmra.mxu0 %v2331
        %v2370 = vpop.f32.mrf.mxu0
        %v2371 = vadd.f32 0.0, %v2370
        %2372 = vdwg.mxu0
        %2373 = vmatpush.msra.mxu0 0.0
        %2374 = vmatpush.msra.mxu0 0.0
        %2375 = vmatpush.msra.mxu0 0.0
        %2376 = vmatpush.msra.mxu0 0.0
        %2377 = vmatpush.msra.mxu0 0.0
        %2378 = vmatpush.msra.mxu0 0.0
        %2379 = vmatpush.msra.mxu0 0.0
        %2380 = vmatpush.msra.mxu0 0.0
        %2381 = vmatpush.msra.mxu0 0.0
        %2382 = vmatpush.msra.mxu0 0.0
        %2383 = vmatpush.msra.mxu0 0.0
        %2384 = vmatpush.msra.mxu0 0.0
        %2385 = vmatpush.msra.mxu0 %v2325
        %2386 = vmatpush.msra.mxu0 %v2324
        %2387 = vmatpush.msra.mxu0 %v2323
        %2388 = vmatpush.msra.mxu0 %v2322
        %2389 = vmatmul.f32.gmra.mxu0 %v2331
        %v2390 = vpop.f32.mrf.mxu0
        %v2391 = vadd.f32 0.0, %v2390
        %2392 = vdwg.mxu0
        %2393 = vmatpush.msra.mxu0 0.0
        %2394 = vmatpush.msra.mxu0 0.0
        %2395 = vmatpush.msra.mxu0 0.0
        %2396 = vmatpush.msra.mxu0 0.0
        %2397 = vmatpush.msra.mxu0 0.0
        %2398 = vmatpush.msra.mxu0 0.0
        %2399 = vmatpush.msra.mxu0 0.0
        %2400 = vmatpush.msra.mxu0 0.0
        %2401 = vmatpush.msra.mxu0 0.0
        %2402 = vmatpush.msra.mxu0 0.0
        %2403 = vmatpush.msra.mxu0 0.0
        %2404 = vmatpush.msra.mxu0 0.0
        %2405 = vmatpush.msra.mxu0 %v2329
        %2406 = vmatpush.msra.mxu0 %v2328
        %2407 = vmatpush.msra.mxu0 %v2327
        %2408 = vmatpush.msra.mxu0 %v2326
        %2409 = vmatmul.f32.gmra.mxu0 %v2331
        %v2410 = vpop.f32.mrf.mxu0
        %v2411 = vadd.f32 0.0, %v2410
        %2412 = vdwg.mxu0
        %v2413 = vld [vmem:[%s19] sm:$0xff]
        %v2414 = vld [vmem:[%s19 + $0x8] sm:$0xff]
        %v2415 = vld [vmem:[%s19 + $0x10] sm:$0xff]
        %v2416 = vld [vmem:[%s19 + $0x18] sm:$0xff]
        %v2417 = vld [vmem:[%s19 + $0x20] sm:$0xff]
        %v2418 = vld [vmem:[%s19 + $0x28] sm:$0xff]
        %v2419 = vld [vmem:[%s19 + $0x30] sm:$0xff]
        %v2420 = vld [vmem:[%s19 + $0x38] sm:$0xff]
        %v2421 = vld [vmem:[%s19 + $0x40] sm:$0xff]
        %v2422 = vld [vmem:[%s19 + $0x48] sm:$0xff]
        %v2423 = vld [vmem:[%s19 + $0x50] sm:$0xff]
        %v2424 = vld [vmem:[%s19 + $0x58] sm:$0xff]
        %v2425 = vld [vmem:[%s19 + $0x60] sm:$0xff]
        %v2426 = vld [vmem:[%s19 + $0x68] sm:$0xff]
        %v2427 = vld [vmem:[%s19 + $0x70] sm:$0xff]
        %v2428 = vld [vmem:[%s19 + $0x78] sm:$0xff]
        %v2429 = vld [vmem:[%s19 + $0x80] sm:$0xff]
        %v2430 = vld [vmem:[%s19 + $0x88] sm:$0xff]
        %v2431 = vld [vmem:[%s19 + $0x90] sm:$0xff]
        %v2432 = vld [vmem:[%s19 + $0x98] sm:$0xff]
        %v2433 = vld [vmem:[%s19 + $0xa0] sm:$0xff]
        %v2434 = vld [vmem:[%s19 + $0xa8] sm:$0xff]
        %v2435 = vld [vmem:[%s19 + $0xb0] sm:$0xff]
        %v2436 = vld [vmem:[%s19 + $0xb8] sm:$0xff]
        %v2437 = vld [vmem:[%s19 + $0xc0] sm:$0xff]
        %v2438 = vld [vmem:[%s19 + $0xc8] sm:$0xff]
        %v2439 = vld [vmem:[%s19 + $0xd0] sm:$0xff]
        %v2440 = vld [vmem:[%s19 + $0xd8] sm:$0xff]
        %v2441 = vld [vmem:[%s19 + $0xe0] sm:$0xff]
        %v2442 = vld [vmem:[%s19 + $0xe8] sm:$0xff]
        %v2443 = vld [vmem:[%s19 + $0xf0] sm:$0xff]
        %v2444 = vld [vmem:[%s19 + $0xf8] sm:$0xff]
        %v2446 = vsel %vm861, %v1629, 0
        %2448 = vmatpush.msra.mxu0 0.0
        %2449 = vmatpush.msra.mxu0 0.0
        %2450 = vmatpush.msra.mxu0 0.0
        %2451 = vmatpush.msra.mxu0 0.0
        %2452 = vmatpush.msra.mxu0 0.0
        %2453 = vmatpush.msra.mxu0 0.0
        %2454 = vmatpush.msra.mxu0 0.0
        %2455 = vmatpush.msra.mxu0 0.0
        %2456 = vmatpush.msra.mxu0 0.0
        %2457 = vmatpush.msra.mxu0 0.0
        %2458 = vmatpush.msra.mxu0 0.0
        %2459 = vmatpush.msra.mxu0 0.0
        %2460 = vmatpush.msra.mxu0 %v2416
        %2461 = vmatpush.msra.mxu0 %v2415
        %2462 = vmatpush.msra.mxu0 %v2414
        %2463 = vmatpush.msra.mxu0 %v2413
        %2464 = vmatmul.f32.gmra.mxu0 %v2446
        %v2465 = vpop.f32.mrf.mxu0
        %v2466 = vadd.f32 0.0, %v2465
        %2467 = vdwg.mxu0
        %2468 = vmatpush.msra.mxu0 0.0
        %2469 = vmatpush.msra.mxu0 0.0
        %2470 = vmatpush.msra.mxu0 0.0
        %2471 = vmatpush.msra.mxu0 0.0
        %2472 = vmatpush.msra.mxu0 0.0
        %2473 = vmatpush.msra.mxu0 0.0
        %2474 = vmatpush.msra.mxu0 0.0
        %2475 = vmatpush.msra.mxu0 0.0
        %2476 = vmatpush.msra.mxu0 0.0
        %2477 = vmatpush.msra.mxu0 0.0
        %2478 = vmatpush.msra.mxu0 0.0
        %2479 = vmatpush.msra.mxu0 0.0
        %2480 = vmatpush.msra.mxu0 %v2420
        %2481 = vmatpush.msra.mxu0 %v2419
        %2482 = vmatpush.msra.mxu0 %v2418
        %2483 = vmatpush.msra.mxu0 %v2417
        %2484 = vmatmul.f32.gmra.mxu0 %v2446
        %v2485 = vpop.f32.mrf.mxu0
        %v2486 = vadd.f32 0.0, %v2485
        %2487 = vdwg.mxu0
        %2488 = vmatpush.msra.mxu0 0.0
        %2489 = vmatpush.msra.mxu0 0.0
        %2490 = vmatpush.msra.mxu0 0.0
        %2491 = vmatpush.msra.mxu0 0.0
        %2492 = vmatpush.msra.mxu0 0.0
        %2493 = vmatpush.msra.mxu0 0.0
        %2494 = vmatpush.msra.mxu0 0.0
        %2495 = vmatpush.msra.mxu0 0.0
        %2496 = vmatpush.msra.mxu0 0.0
        %2497 = vmatpush.msra.mxu0 0.0
        %2498 = vmatpush.msra.mxu0 0.0
        %2499 = vmatpush.msra.mxu0 0.0
        %2500 = vmatpush.msra.mxu0 %v2424
        %2501 = vmatpush.msra.mxu0 %v2423
        %2502 = vmatpush.msra.mxu0 %v2422
        %2503 = vmatpush.msra.mxu0 %v2421
        %2504 = vmatmul.f32.gmra.mxu0 %v2446
        %v2505 = vpop.f32.mrf.mxu0
        %v2506 = vadd.f32 0.0, %v2505
        %2507 = vdwg.mxu0
        %2508 = vmatpush.msra.mxu0 0.0
        %2509 = vmatpush.msra.mxu0 0.0
        %2510 = vmatpush.msra.mxu0 0.0
        %2511 = vmatpush.msra.mxu0 0.0
        %2512 = vmatpush.msra.mxu0 0.0
        %2513 = vmatpush.msra.mxu0 0.0
        %2514 = vmatpush.msra.mxu0 0.0
        %2515 = vmatpush.msra.mxu0 0.0
        %2516 = vmatpush.msra.mxu0 0.0
        %2517 = vmatpush.msra.mxu0 0.0
        %2518 = vmatpush.msra.mxu0 0.0
        %2519 = vmatpush.msra.mxu0 0.0
        %2520 = vmatpush.msra.mxu0 %v2428
        %2521 = vmatpush.msra.mxu0 %v2427
        %2522 = vmatpush.msra.mxu0 %v2426
        %2523 = vmatpush.msra.mxu0 %v2425
        %2524 = vmatmul.f32.gmra.mxu0 %v2446
        %v2525 = vpop.f32.mrf.mxu0
        %v2526 = vadd.f32 0.0, %v2525
        %2527 = vdwg.mxu0
        %2528 = vmatpush.msra.mxu0 0.0
        %2529 = vmatpush.msra.mxu0 0.0
        %2530 = vmatpush.msra.mxu0 0.0
        %2531 = vmatpush.msra.mxu0 0.0
        %2532 = vmatpush.msra.mxu0 0.0
        %2533 = vmatpush.msra.mxu0 0.0
        %2534 = vmatpush.msra.mxu0 0.0
        %2535 = vmatpush.msra.mxu0 0.0
        %2536 = vmatpush.msra.mxu0 0.0
        %2537 = vmatpush.msra.mxu0 0.0
        %2538 = vmatpush.msra.mxu0 0.0
        %2539 = vmatpush.msra.mxu0 0.0
        %2540 = vmatpush.msra.mxu0 %v2432
        %2541 = vmatpush.msra.mxu0 %v2431
        %2542 = vmatpush.msra.mxu0 %v2430
        %2543 = vmatpush.msra.mxu0 %v2429
        %2544 = vmatmul.f32.gmra.mxu0 %v2446
        %v2545 = vpop.f32.mrf.mxu0
        %v2546 = vadd.f32 0.0, %v2545
        %2547 = vdwg.mxu0
        %2548 = vmatpush.msra.mxu0 0.0
        %2549 = vmatpush.msra.mxu0 0.0
        %2550 = vmatpush.msra.mxu0 0.0
        %2551 = vmatpush.msra.mxu0 0.0
        %2552 = vmatpush.msra.mxu0 0.0
        %2553 = vmatpush.msra.mxu0 0.0
        %2554 = vmatpush.msra.mxu0 0.0
        %2555 = vmatpush.msra.mxu0 0.0
        %2556 = vmatpush.msra.mxu0 0.0
        %2557 = vmatpush.msra.mxu0 0.0
        %2558 = vmatpush.msra.mxu0 0.0
        %2559 = vmatpush.msra.mxu0 0.0
        %2560 = vmatpush.msra.mxu0 %v2436
        %2561 = vmatpush.msra.mxu0 %v2435
        %2562 = vmatpush.msra.mxu0 %v2434
        %2563 = vmatpush.msra.mxu0 %v2433
        %2564 = vmatmul.f32.gmra.mxu0 %v2446
        %v2565 = vpop.f32.mrf.mxu0
        %v2566 = vadd.f32 0.0, %v2565
        %2567 = vdwg.mxu0
        %2568 = vmatpush.msra.mxu0 0.0
        %2569 = vmatpush.msra.mxu0 0.0
        %2570 = vmatpush.msra.mxu0 0.0
        %2571 = vmatpush.msra.mxu0 0.0
        %2572 = vmatpush.msra.mxu0 0.0
        %2573 = vmatpush.msra.mxu0 0.0
        %2574 = vmatpush.msra.mxu0 0.0
        %2575 = vmatpush.msra.mxu0 0.0
        %2576 = vmatpush.msra.mxu0 0.0
        %2577 = vmatpush.msra.mxu0 0.0
        %2578 = vmatpush.msra.mxu0 0.0
        %2579 = vmatpush.msra.mxu0 0.0
        %2580 = vmatpush.msra.mxu0 %v2440
        %2581 = vmatpush.msra.mxu0 %v2439
        %2582 = vmatpush.msra.mxu0 %v2438
        %2583 = vmatpush.msra.mxu0 %v2437
        %2584 = vmatmul.f32.gmra.mxu0 %v2446
        %v2585 = vpop.f32.mrf.mxu0
        %v2586 = vadd.f32 0.0, %v2585
        %2587 = vdwg.mxu0
        %2588 = vmatpush.msra.mxu0 0.0
        %2589 = vmatpush.msra.mxu0 0.0
        %2590 = vmatpush.msra.mxu0 0.0
        %2591 = vmatpush.msra.mxu0 0.0
        %2592 = vmatpush.msra.mxu0 0.0
        %2593 = vmatpush.msra.mxu0 0.0
        %2594 = vmatpush.msra.mxu0 0.0
        %2595 = vmatpush.msra.mxu0 0.0
        %2596 = vmatpush.msra.mxu0 0.0
        %2597 = vmatpush.msra.mxu0 0.0
        %2598 = vmatpush.msra.mxu0 0.0
        %2599 = vmatpush.msra.mxu0 0.0
        %2600 = vmatpush.msra.mxu0 %v2444
        %2601 = vmatpush.msra.mxu0 %v2443
        %2602 = vmatpush.msra.mxu0 %v2442
        %2603 = vmatpush.msra.mxu0 %v2441
        %2604 = vmatmul.f32.gmra.mxu0 %v2446
        %v2605 = vpop.f32.mrf.mxu0
        %v2606 = vadd.f32 0.0, %v2605
        %2607 = vdwg.mxu0
        %v2608 = vld [vmem:[%s20] sm:$0xff]
        %v2609 = vld [vmem:[%s20 + $0x8] sm:$0xff]
        %v2610 = vld [vmem:[%s20 + $0x10] sm:$0xff]
        %v2611 = vld [vmem:[%s20 + $0x18] sm:$0xff]
        %v2613 = vsel %vm1184, %v2351, 0
        %v2616 = vsel %vm1184, %v2466, 0
        %2618 = vmatpush.xpose.msra.mxu0 0.0
        %2619 = vmatpush.xpose.msra.mxu0 0.0
        %2620 = vmatpush.xpose.msra.mxu0 0.0
        %2621 = vmatpush.xpose.msra.mxu0 0.0
        %2622 = vmatpush.xpose.msra.mxu0 0.0
        %2623 = vmatpush.xpose.msra.mxu0 0.0
        %2624 = vmatpush.xpose.msra.mxu0 0.0
        %2625 = vmatpush.xpose.msra.mxu0 0.0
        %2626 = vmatpush.xpose.msra.mxu0 0.0
        %2627 = vmatpush.xpose.msra.mxu0 0.0
        %2628 = vmatpush.xpose.msra.mxu0 0.0
        %2629 = vmatpush.xpose.msra.mxu0 0.0
        %2630 = vmatpush.xpose.msra.mxu0 0.0
        %2631 = vmatpush.xpose.msra.mxu0 0.0
        %2632 = vmatpush.xpose.msra.mxu0 0.0
        %2633 = vmatpush.xpose.msra.mxu0 %v2616
        %2634 = vmatmul.f32.gmra.mxu0 %v2613
        %v2635 = vpop.f32.mrf.mxu0
        %v2636 = vadd.f32 %v853, %v2635
        %2637 = vdwg.mxu0
        %v2639 = vsel %vm1184, %v2371, 0
        %v2642 = vsel %vm1184, %v2486, 0
        %2644 = vmatpush.xpose.msra.mxu0 0.0
        %2645 = vmatpush.xpose.msra.mxu0 0.0
        %2646 = vmatpush.xpose.msra.mxu0 0.0
        %2647 = vmatpush.xpose.msra.mxu0 0.0
        %2648 = vmatpush.xpose.msra.mxu0 0.0
        %2649 = vmatpush.xpose.msra.mxu0 0.0
        %2650 = vmatpush.xpose.msra.mxu0 0.0
        %2651 = vmatpush.xpose.msra.mxu0 0.0
        %2652 = vmatpush.xpose.msra.mxu0 0.0
        %2653 = vmatpush.xpose.msra.mxu0 0.0
        %2654 = vmatpush.xpose.msra.mxu0 0.0
        %2655 = vmatpush.xpose.msra.mxu0 0.0
        %2656 = vmatpush.xpose.msra.mxu0 0.0
        %2657 = vmatpush.xpose.msra.mxu0 0.0
        %2658 = vmatpush.xpose.msra.mxu0 0.0
        %2659 = vmatpush.xpose.msra.mxu0 %v2642
        %2660 = vmatmul.f32.gmra.mxu0 %v2639
        %v2661 = vpop.f32.mrf.mxu0
        %v2662 = vadd.f32 %v853, %v2661
        %2663 = vdwg.mxu0
        %v2665 = vsel %vm1184, %v2391, 0
        %v2668 = vsel %vm1184, %v2506, 0
        %2670 = vmatpush.xpose.msra.mxu0 0.0
        %2671 = vmatpush.xpose.msra.mxu0 0.0
        %2672 = vmatpush.xpose.msra.mxu0 0.0
        %2673 = vmatpush.xpose.msra.mxu0 0.0
        %2674 = vmatpush.xpose.msra.mxu0 0.0
        %2675 = vmatpush.xpose.msra.mxu0 0.0
        %2676 = vmatpush.xpose.msra.mxu0 0.0
        %2677 = vmatpush.xpose.msra.mxu0 0.0
        %2678 = vmatpush.xpose.msra.mxu0 0.0
        %2679 = vmatpush.xpose.msra.mxu0 0.0
        %2680 = vmatpush.xpose.msra.mxu0 0.0
        %2681 = vmatpush.xpose.msra.mxu0 0.0
        %2682 = vmatpush.xpose.msra.mxu0 0.0
        %2683 = vmatpush.xpose.msra.mxu0 0.0
        %2684 = vmatpush.xpose.msra.mxu0 0.0
        %2685 = vmatpush.xpose.msra.mxu0 %v2668
        %2686 = vmatmul.f32.gmra.mxu0 %v2665
        %v2687 = vpop.f32.mrf.mxu0
        %v2688 = vadd.f32 %v853, %v2687
        %2689 = vdwg.mxu0
        %v2691 = vsel %vm1184, %v2411, 0
        %v2694 = vsel %vm1184, %v2526, 0
        %2696 = vmatpush.xpose.msra.mxu0 0.0
        %2697 = vmatpush.xpose.msra.mxu0 0.0
        %2698 = vmatpush.xpose.msra.mxu0 0.0
        %2699 = vmatpush.xpose.msra.mxu0 0.0
        %2700 = vmatpush.xpose.msra.mxu0 0.0
        %2701 = vmatpush.xpose.msra.mxu0 0.0
        %2702 = vmatpush.xpose.msra.mxu0 0.0
        %2703 = vmatpush.xpose.msra.mxu0 0.0
        %2704 = vmatpush.xpose.msra.mxu0 0.0
        %2705 = vmatpush.xpose.msra.mxu0 0.0
        %2706 = vmatpush.xpose.msra.mxu0 0.0
        %2707 = vmatpush.xpose.msra.mxu0 0.0
        %2708 = vmatpush.xpose.msra.mxu0 0.0
        %2709 = vmatpush.xpose.msra.mxu0 0.0
        %2710 = vmatpush.xpose.msra.mxu0 0.0
        %2711 = vmatpush.xpose.msra.mxu0 %v2694
        %2712 = vmatmul.f32.gmra.mxu0 %v2691
        %v2713 = vpop.f32.mrf.mxu0
        %v2714 = vadd.f32 %v853, %v2713
        %2715 = vdwg.mxu0
        %v2716 = vsel %vm1184, %v2636, -inf
        %2717 = vmax.xlane.f32.xlu0 %v2716
        %v2718 = vpop.xlane.xlu0 %2717
        %v2719 = vsel %vm1184, %v2662, -inf
        %2720 = vmax.xlane.f32.xlu0 %v2719
        %v2721 = vpop.xlane.xlu0 %2720
        %v2722 = vsel %vm1184, %v2688, -inf
        %2723 = vmax.xlane.f32.xlu0 %v2722
        %v2724 = vpop.xlane.xlu0 %2723
        %v2725 = vsel %vm1184, %v2714, -inf
        %2726 = vmax.xlane.f32.xlu0 %v2725
        %v2727 = vpop.xlane.xlu0 %2726
        %v2728 = vsub.f32 %v2636, %v2718
        %v2729 = vsub.f32 %v2662, %v2721
        %v2730 = vsub.f32 %v2688, %v2724
        %v2731 = vsub.f32 %v2714, %v2727
        %v2732 = vmul.f32 %v2728, 1.442695
        %v2733 = vpow.pop %v2732
        %v2734 = vmul.f32 %v2729, 1.442695
        %v2735 = vpow.pop %v2734
        %v2736 = vmul.f32 %v2730, 1.442695
        %v2737 = vpow.pop %v2736
        %v2738 = vmul.f32 %v2731, 1.442695
        %v2739 = vpow.pop %v2738
        %v2740 = vsel %vm1184, %v2733, 0.0
        %2741 = vadd.xlane.f32.xlu0 %v2740
        %v2742 = vpop.xlane.xlu0 %2741
        %v2743 = vsel %vm1184, %v2735, 0.0
        %2744 = vadd.xlane.f32.xlu0 %v2743
        %v2745 = vpop.xlane.xlu0 %2744
        %v2746 = vsel %vm1184, %v2737, 0.0
        %2747 = vadd.xlane.f32.xlu0 %v2746
        %v2748 = vpop.xlane.xlu0 %2747
        %v2749 = vsel %vm1184, %v2739, 0.0
        %2750 = vadd.xlane.f32.xlu0 %v2749
        %v2751 = vpop.xlane.xlu0 %2750
        %v2752 = vrcp.pop %v2742
        %v2753 = vrcp.pop %v2745
        %v2754 = vrcp.pop %v2748
        %v2755 = vrcp.pop %v2751
        %v2756 = vmul.f32 %v2733, %v2752
        %v2757 = vmul.f32 %v2735, %v2753
        %v2758 = vmul.f32 %v2737, %v2754
        %v2759 = vmul.f32 %v2739, %v2755
        %v2761 = vsel %vm1184, %v2756, 0
        %2763 = vmatpush.msra.mxu0 0.0
        %2764 = vmatpush.msra.mxu0 0.0
        %2765 = vmatpush.msra.mxu0 0.0
        %2766 = vmatpush.msra.mxu0 0.0
        %2767 = vmatpush.msra.mxu0 0.0
        %2768 = vmatpush.msra.mxu0 0.0
        %2769 = vmatpush.msra.mxu0 0.0
        %2770 = vmatpush.msra.mxu0 0.0
        %2771 = vmatpush.msra.mxu0 0.0
        %2772 = vmatpush.msra.mxu0 0.0
        %2773 = vmatpush.msra.mxu0 0.0
        %2774 = vmatpush.msra.mxu0 0.0
        %2775 = vmatpush.msra.mxu0 0.0
        %2776 = vmatpush.msra.mxu0 0.0
        %2777 = vmatpush.msra.mxu0 0.0
        %2778 = vmatpush.msra.mxu0 %v2546
        %2779 = vmatmul.f32.gmra.mxu0 %v2761
        %v2780 = vpop.f32.mrf.mxu0
        %v2781 = vadd.f32 0.0, %v2780
        %2782 = vdwg.mxu0
        %v2784 = vsel %vm1184, %v2757, 0
        %2786 = vmatpush.msra.mxu0 0.0
        %2787 = vmatpush.msra.mxu0 0.0
        %2788 = vmatpush.msra.mxu0 0.0
        %2789 = vmatpush.msra.mxu0 0.0
        %2790 = vmatpush.msra.mxu0 0.0
        %2791 = vmatpush.msra.mxu0 0.0
        %2792 = vmatpush.msra.mxu0 0.0
        %2793 = vmatpush.msra.mxu0 0.0
        %2794 = vmatpush.msra.mxu0 0.0
        %2795 = vmatpush.msra.mxu0 0.0
        %2796 = vmatpush.msra.mxu0 0.0
        %2797 = vmatpush.msra.mxu0 0.0
        %2798 = vmatpush.msra.mxu0 0.0
        %2799 = vmatpush.msra.mxu0 0.0
        %2800 = vmatpush.msra.mxu0 0.0
        %2801 = vmatpush.msra.mxu0 %v2566
        %2802 = vmatmul.f32.gmra.mxu0 %v2784
        %v2803 = vpop.f32.mrf.mxu0
        %v2804 = vadd.f32 0.0, %v2803
        %2805 = vdwg.mxu0
        %v2807 = vsel %vm1184, %v2758, 0
        %2809 = vmatpush.msra.mxu0 0.0
        %2810 = vmatpush.msra.mxu0 0.0
        %2811 = vmatpush.msra.mxu0 0.0
        %2812 = vmatpush.msra.mxu0 0.0
        %2813 = vmatpush.msra.mxu0 0.0
        %2814 = vmatpush.msra.mxu0 0.0
        %2815 = vmatpush.msra.mxu0 0.0
        %2816 = vmatpush.msra.mxu0 0.0
        %2817 = vmatpush.msra.mxu0 0.0
        %2818 = vmatpush.msra.mxu0 0.0
        %2819 = vmatpush.msra.mxu0 0.0
        %2820 = vmatpush.msra.mxu0 0.0
        %2821 = vmatpush.msra.mxu0 0.0
        %2822 = vmatpush.msra.mxu0 0.0
        %2823 = vmatpush.msra.mxu0 0.0
        %2824 = vmatpush.msra.mxu0 %v2586
        %2825 = vmatmul.f32.gmra.mxu0 %v2807
        %v2826 = vpop.f32.mrf.mxu0
        %v2827 = vadd.f32 0.0, %v2826
        %2828 = vdwg.mxu0
        %v2830 = vsel %vm1184, %v2759, 0
        %2832 = vmatpush.msra.mxu0 0.0
        %2833 = vmatpush.msra.mxu0 0.0
        %2834 = vmatpush.msra.mxu0 0.0
        %2835 = vmatpush.msra.mxu0 0.0
        %2836 = vmatpush.msra.mxu0 0.0
        %2837 = vmatpush.msra.mxu0 0.0
        %2838 = vmatpush.msra.mxu0 0.0
        %2839 = vmatpush.msra.mxu0 0.0
        %2840 = vmatpush.msra.mxu0 0.0
        %2841 = vmatpush.msra.mxu0 0.0
        %2842 = vmatpush.msra.mxu0 0.0
        %2843 = vmatpush.msra.mxu0 0.0
        %2844 = vmatpush.msra.mxu0 0.0
        %2845 = vmatpush.msra.mxu0 0.0
        %2846 = vmatpush.msra.mxu0 0.0
        %2847 = vmatpush.msra.mxu0 %v2606
        %2848 = vmatmul.f32.gmra.mxu0 %v2830
        %v2849 = vpop.f32.mrf.mxu0
        %v2850 = vadd.f32 0.0, %v2849
        %2851 = vdwg.mxu0
        %v2853 = vsel %vm1184, %v2781, 0
        %2855 = vmatpush.msra.mxu0 0.0
        %2856 = vmatpush.msra.mxu0 0.0
        %2857 = vmatpush.msra.mxu0 0.0
        %2858 = vmatpush.msra.mxu0 0.0
        %2859 = vmatpush.msra.mxu0 0.0
        %2860 = vmatpush.msra.mxu0 0.0
        %2861 = vmatpush.msra.mxu0 0.0
        %2862 = vmatpush.msra.mxu0 0.0
        %2863 = vmatpush.msra.mxu0 0.0
        %2864 = vmatpush.msra.mxu0 0.0
        %2865 = vmatpush.msra.mxu0 0.0
        %2866 = vmatpush.msra.mxu0 0.0
        %2867 = vmatpush.msra.mxu0 0.0
        %2868 = vmatpush.msra.mxu0 0.0
        %2869 = vmatpush.msra.mxu0 0.0
        %2870 = vmatpush.msra.mxu0 %v2608
        %2871 = vmatmul.f32.gmra.mxu0 %v2853
        %v2872 = vpop.f32.mrf.mxu0
        %v2873 = vadd.f32 0.0, %v2872
        %2874 = vdwg.mxu0
        %v2876 = vsel %vm1184, %v2804, 0
        %2878 = vmatpush.msra.mxu0 0.0
        %2879 = vmatpush.msra.mxu0 0.0
        %2880 = vmatpush.msra.mxu0 0.0
        %2881 = vmatpush.msra.mxu0 0.0
        %2882 = vmatpush.msra.mxu0 0.0
        %2883 = vmatpush.msra.mxu0 0.0
        %2884 = vmatpush.msra.mxu0 0.0
        %2885 = vmatpush.msra.mxu0 0.0
        %2886 = vmatpush.msra.mxu0 0.0
        %2887 = vmatpush.msra.mxu0 0.0
        %2888 = vmatpush.msra.mxu0 0.0
        %2889 = vmatpush.msra.mxu0 0.0
        %2890 = vmatpush.msra.mxu0 0.0
        %2891 = vmatpush.msra.mxu0 0.0
        %2892 = vmatpush.msra.mxu0 0.0
        %2893 = vmatpush.msra.mxu0 %v2609
        %2894 = vmatmul.f32.gmra.mxu0 %v2876
        %v2895 = vpop.f32.mrf.mxu0
        %v2896 = vadd.f32 0.0, %v2895
        %2897 = vdwg.mxu0
        %v2899 = vsel %vm1184, %v2827, 0
        %2901 = vmatpush.msra.mxu0 0.0
        %2902 = vmatpush.msra.mxu0 0.0
        %2903 = vmatpush.msra.mxu0 0.0
        %2904 = vmatpush.msra.mxu0 0.0
        %2905 = vmatpush.msra.mxu0 0.0
        %2906 = vmatpush.msra.mxu0 0.0
        %2907 = vmatpush.msra.mxu0 0.0
        %2908 = vmatpush.msra.mxu0 0.0
        %2909 = vmatpush.msra.mxu0 0.0
        %2910 = vmatpush.msra.mxu0 0.0
        %2911 = vmatpush.msra.mxu0 0.0
        %2912 = vmatpush.msra.mxu0 0.0
        %2913 = vmatpush.msra.mxu0 0.0
        %2914 = vmatpush.msra.mxu0 0.0
        %2915 = vmatpush.msra.mxu0 0.0
        %2916 = vmatpush.msra.mxu0 %v2610
        %2917 = vmatmul.f32.gmra.mxu0 %v2899
        %v2918 = vpop.f32.mrf.mxu0
        %v2919 = vadd.f32 0.0, %v2918
        %2920 = vdwg.mxu0
        %v2922 = vsel %vm1184, %v2850, 0
        %2924 = vmatpush.msra.mxu0 0.0
        %2925 = vmatpush.msra.mxu0 0.0
        %2926 = vmatpush.msra.mxu0 0.0
        %2927 = vmatpush.msra.mxu0 0.0
        %2928 = vmatpush.msra.mxu0 0.0
        %2929 = vmatpush.msra.mxu0 0.0
        %2930 = vmatpush.msra.mxu0 0.0
        %2931 = vmatpush.msra.mxu0 0.0
        %2932 = vmatpush.msra.mxu0 0.0
        %2933 = vmatpush.msra.mxu0 0.0
        %2934 = vmatpush.msra.mxu0 0.0
        %2935 = vmatpush.msra.mxu0 0.0
        %2936 = vmatpush.msra.mxu0 0.0
        %2937 = vmatpush.msra.mxu0 0.0
        %2938 = vmatpush.msra.mxu0 0.0
        %2939 = vmatpush.msra.mxu0 %v2611
        %2940 = vmatmul.f32.gmra.mxu0 %v2922
        %v2941 = vpop.f32.mrf.mxu0
        %v2942 = vadd.f32 0.0, %v2941
        %2943 = vdwg.mxu0
        %v2944 = vsel %vm861, %v2873, 0.0
        %v2945 = vsel %vm861, %v2896, 0.0
        %v2946 = vadd.f32 %v2944, %v2945
        %v2947 = vsel %vm861, %v2919, 0.0
        %v2948 = vadd.f32 %v2946, %v2947
        %v2949 = vsel %vm861, %v2942, 0.0
        %v2950 = vadd.f32 %v2948, %v2949
        %v2951 = vadd.f32 %v2291, %v2950
        %v2952 = vld [vmem:[%s21] sm:$0x1]
        %v2953 = vmul.f32 %v2951, %v2951
        %v2954 = vsel %vm861, %v2953, 0.0
        %2955 = vadd.xlane.f32.xlu0 %v2954
        %v2956 = vpop.xlane.xlu0 %2955
        %v2957 = vmul.f32 %v2956, %v871
        %v2958 = vadd.f32 %v2957, 1e-06
        %v2959 = vrsqrt.pop %v2958
        %v2960 = vmul.f32 %v2959, %v2958
        %v2961 = vmul.f32 %v2960, %v2959
        %v2962 = vmul.f32 0.5, %v2961
        %v2963 = vsub.f32 1.5, %v2962
        %v2964 = vmul.f32 %v2959, %v2963
        %vm2965 = vweird.f32 %v2958
        %vm2966 = vweird.f32 %v2959
        %vm2967 = vmor %vm2965, %vm2966
        %v2968 = vsel %vm2967, %v2959, %v2964
        %v2969 = vmul.f32 %v2951, %v2968
        %v2971 = vperm.slane %v2952, 0
        %v2973 = vmul.f32 %v2969, %v2971
        %v2974 = vld [vmem:[%s22] sm:$0xff]
        %v2975 = vld [vmem:[%s22 + $0x8] sm:$0xff]
        %v2976 = vld [vmem:[%s22 + $0x10] sm:$0xff]
        %v2977 = vld [vmem:[%s22 + $0x18] sm:$0xff]
        %v2979 = vsel %vm861, %v2973, 0
        %2981 = vmatpush.msra.mxu0 0.0
        %2982 = vmatpush.msra.mxu0 0.0
        %2983 = vmatpush.msra.mxu0 0.0
        %2984 = vmatpush.msra.mxu0 0.0
        %2985 = vmatpush.msra.mxu0 0.0
        %2986 = vmatpush.msra.mxu0 0.0
        %2987 = vmatpush.msra.mxu0 0.0
        %2988 = vmatpush.msra.mxu0 0.0
        %2989 = vmatpush.msra.mxu0 0.0
        %2990 = vmatpush.msra.mxu0 0.0
        %2991 = vmatpush.msra.mxu0 0.0
        %2992 = vmatpush.msra.mxu0 0.0
        %2993 = vmatpush.msra.mxu0 %v2977
        %2994 = vmatpush.msra.mxu0 %v2976
        %2995 = vmatpush.msra.mxu0 %v2975
        %2996 = vmatpush.msra.mxu0 %v2974
        %2997 = vmatmul.f32.gmra.mxu0 %v2979
        %v2998 = vpop.f32.mrf.mxu0
        %v2999 = vadd.f32 0.0, %v2998
        %3000 = vdwg.mxu0
        %v3001 = vmax.f32 %v2999, 0.0
        %v3002 = vld [vmem:[%s23] sm:$0xff]
        %v3003 = vld [vmem:[%s23 + $0x8] sm:$0xff]
        %v3004 = vld [vmem:[%s23 + $0x10] sm:$0xff]
        %v3005 = vld [vmem:[%s23 + $0x18] sm:$0xff]
        %v3006 = vld [vmem:[%s23 + $0x20] sm:$0xff]
        %v3007 = vld [vmem:[%s23 + $0x28] sm:$0xff]
        %v3008 = vld [vmem:[%s23 + $0x30] sm:$0xff]
        %v3009 = vld [vmem:[%s23 + $0x38] sm:$0xff]
        %v3011 = vsel %vm1583, %v3001, 0
        %3013 = vmatpush.msra.mxu0 0.0
        %3014 = vmatpush.msra.mxu0 0.0
        %3015 = vmatpush.msra.mxu0 0.0
        %3016 = vmatpush.msra.mxu0 0.0
        %3017 = vmatpush.msra.mxu0 0.0
        %3018 = vmatpush.msra.mxu0 0.0
        %3019 = vmatpush.msra.mxu0 0.0
        %3020 = vmatpush.msra.mxu0 0.0
        %3021 = vmatpush.msra.mxu0 %v3009
        %3022 = vmatpush.msra.mxu0 %v3008
        %3023 = vmatpush.msra.mxu0 %v3007
        %3024 = vmatpush.msra.mxu0 %v3006
        %3025 = vmatpush.msra.mxu0 %v3005
        %3026 = vmatpush.msra.mxu0 %v3004
        %3027 = vmatpush.msra.mxu0 %v3003
        %3028 = vmatpush.msra.mxu0 %v3002
        %3029 = vmatmul.f32.gmra.mxu0 %v3011
        %v3030 = vpop.f32.mrf.mxu0
        %v3031 = vadd.f32 0.0, %v3030
        %3032 = vdwg.mxu0
        %v3033 = vadd.f32 %v2951, %v3031
        %v3034 = vld [vmem:[%s24] sm:$0x1]
        %v3035 = vmul.f32 %v3033, %v3033
        %v3036 = vsel %vm861, %v3035, 0.0
        %3037 = vadd.xlane.f32.xlu0 %v3036
        %v3038 = vpop.xlane.xlu0 %3037
        %v3039 = vmul.f32 %v3038, %v871
        %v3040 = vadd.f32 %v3039, 1e-06
        %v3041 = vrsqrt.pop %v3040
        %v3042 = vmul.f32 %v3041, %v3040
        %v3043 = vmul.f32 %v3042, %v3041
        %v3044 = vmul.f32 0.5, %v3043
        %v3045 = vsub.f32 1.5, %v3044
        %v3046 = vmul.f32 %v3041, %v3045
        %vm3047 = vweird.f32 %v3040
        %vm3048 = vweird.f32 %v3041
        %vm3049 = vmor %vm3047, %vm3048
        %v3050 = vsel %vm3049, %v3041, %v3046
        %v3051 = vmul.f32 %v3033, %v3050
        %v3053 = vperm.slane %v3034, 0
        %v3055 = vmul.f32 %v3051, %v3053
        %v3056 = vld [vmem:[%s6] sm:$0xff]
        %v3057 = vld [vmem:[%s6 + $0x8] sm:$0xff]
        %v3058 = vld [vmem:[%s6 + $0x10] sm:$0xff]
        %v3059 = vld [vmem:[%s6 + $0x18] sm:$0xff]
        %v3060 = vld [vmem:[%s6 + $0x20] sm:$0xff]
        %v3061 = vld [vmem:[%s6 + $0x28] sm:$0xff]
        %v3062 = vld [vmem:[%s6 + $0x30] sm:$0xff]
        %v3063 = vld [vmem:[%s6 + $0x38] sm:$0xff]
        %v3065 = vsel %vm861, %v3055, 0
        %v3068 = vsel %vm861, %v3056, 0
        %v3071 = vsel %vm861, %v3057, 0
        %v3074 = vsel %vm861, %v3058, 0
        %v3077 = vsel %vm861, %v3059, 0
        %v3080 = vsel %vm861, %v3060, 0
        %v3083 = vsel %vm861, %v3061, 0
        %v3086 = vsel %vm861, %v3062, 0
        %v3089 = vsel %vm861, %v3063, 0
        %3091 = vmatpush.xpose.msra.mxu0 0.0
        %3092 = vmatpush.xpose.msra.mxu0 0.0
        %3093 = vmatpush.xpose.msra.mxu0 0.0
        %3094 = vmatpush.xpose.msra.mxu0 0.0
        %3095 = vmatpush.xpose.msra.mxu0 0.0
        %3096 = vmatpush.xpose.msra.mxu0 0.0
        %3097 = vmatpush.xpose.msra.mxu0 0.0
        %3098 = vmatpush.xpose.msra.mxu0 0.0
        %3099 = vmatpush.xpose.msra.mxu0 %v3089
        %3100 = vmatpush.xpose.msra.mxu0 %v3086
        %3101 = vmatpush.xpose.msra.mxu0 %v3083
        %3102 = vmatpush.xpose.msra.mxu0 %v3080
        %3103 = vmatpush.xpose.msra.mxu0 %v3077
        %3104 = vmatpush.xpose.msra.mxu0 %v3074
        %3105 = vmatpush.xpose.msra.mxu0 %v3071
        %3106 = vmatpush.xpose.msra.mxu0 %v3068
        %3107 = vmatmul.f32.gmra.mxu0 %v3065
        %v3108 = vpop.f32.mrf.mxu0
        %v3109 = vadd.f32 0.0, %v3108
        %3110 = vdwg.mxu0
        %v3111 = vmul.f32 %v3109, 0.17677669
        %v3112 = vsel %vm1583, %v3111, -inf
        %3113 = vmax.xlane.f32.xlu0 %v3112
        %v3114 = vpop.xlane.xlu0 %3113
        %v3115 = vsub.f32 %v3111, %v3114
        %v3116 = vmul.f32 %v3115, 1.442695
        %v3117 = vpow.pop %v3116
        %v3118 = vsel %vm1583, %v3117, 0.0
        %3119 = vadd.xlane.f32.xlu0 %v3118
        %v3120 = vpop.xlane.xlu0 %3119
        %v3121 = vlog2.pop %v3120
        %v3122 = vmul.f32 %v3121, 0.6931472
        %v3123 = vadd.f32 %v3122, %v3114
        %v3124 = vld [vmem:[%s841] sm:$0xff]
        %v3125 = vlaneseq
        %v3126 = vand.u32 %v3125, 127
        %3127 = vset.pattern.permute.xlu0 0
        %3128 = vperm.xlu0 %3127, %v3124
        %v3129 = vpop.permute.xlu0 %3128
        %vm3130 = vcmp.eq.s32.totalorder %v3126, %v3129
        %v3131 = vsel %vm3130, %v3111, 0.0
        %v3132 = vsel %vm1583, %v3131, 0.0
        %3133 = vadd.xlane.f32.xlu0 %v3132
        %v3134 = vpop.xlane.xlu0 %3133
        %vm3135 = vcmp.ne.s32.totalorder %v3124, 4294967196
        %3136 = vst.msk [vmem:[%s820] sm:$0xff] %vm1583, %v3111
        %v3137 = vsub.f32 %v3123, %v3134
        %v3138 = vsel %vm3135, %v3137, 0.0
        %vm3139 = vcmask 7168
        %3140 = vst.msk [vmem:[%s845] sm:$0xff] %vm3139, %v3138
        %s3141 = sand.u32 %s594, 1
        %s3142 = scalar_lea.sflag [#allocation3], %s3141
        %s3143 = sand.u32 %s594, 1
        %s3144 = smul.addr %s3143, 8
        %s3145 = scalar_lea.vmem [#allocation2], %s3144
        %p3146 = scmp.lt.s32.totalorder %s41, 1
        %s3147 = scalar_select %p3146, %s41, 1
        %s3148 = smul.addr %s3147, 8
        %s3149 = scalar_lea.vmem %s26, %s3148
        // Predicated region
        $region121: #{fld_forward.1} parent=119 // pred_check
          %p3150 = pneg %p604
        $region122: #{fld_forward.1} parent=119 // pred_check_branch
          %3152 = sbr.rel (%p3150) target = $region124
        $region123: #{fld_forward.1} parent=119 // pred_region
          %3154 = vsyncadd %s3142, 0
          %s3155 = smul.addr %s41, 8
          %s3156 = scalar_lea.hbm %s25, %s3155
          %s3158 = sshll.u32 %s3145, 4
          %s3159 = int_to_ptr.vmem [resolvable:$true] %s3158
          %s3160 = sshll.u32 %s3156, 4
          %s3161 = int_to_ptr.hbm [resolvable:$true] %s3160
          %3163 = dma.vmem_to_hbm [thread:$0]  %s3159, 128, %s3161, %s3142
        $region124: #{fld_forward.1} parent=119 // pred_fallthru
          _
        // Predicated region
        $region125: #{fld_forward.1} parent=119 // pred_check
          %p3164 = pneg %p630
        $region126: #{fld_forward.1} parent=119 // pred_check_branch
          %3166 = sbr.rel (%p3164) target = $region128
        $region127: #{fld_forward.1} parent=119 // pred_region
          _
        $region128: #{fld_forward.1} parent=119 // pred_fallthru
          _
      $region120: #{fld_forward.1} parent=5 // pred_fallthru
        _
      %p3167 = scmp.le.s32.totalorder 2, %s36
      // Predicated region
      $region129: #{fld_forward.1} parent=5 // pred_check
        %p3168 = pneg %p3167
      $region130: #{fld_forward.1} parent=5 // pred_check_branch
        %3170 = sbr.rel (%p3168) target = $region132
      $region131: #{fld_forward.1} parent=5 // pred_region
        %s3171 = ssub.s32 %s36, 2
        // Predicated region
        $region133: #{fld_forward.1} parent=131 // pred_check
          %p3172 = pneg %p610
        $region134: #{fld_forward.1} parent=131 // pred_check_branch
          %3174 = sbr.rel (%p3172) target = $region136
        $region135: #{fld_forward.1} parent=131 // pred_region
          %s3175 = sand.u32 %s595, 1
          %s3176 = scalar_lea.sflag [#allocation3], %s3175
          %s3177 = sand.u32 %s595, 1
          %s3178 = smul.addr %s3177, 8
          %s3179 = scalar_lea.vmem [#allocation2], %s3178
          %3181 = dma.done %s3176, 128
        $region136: #{fld_forward.1} parent=131 // pred_fallthru
          _
        // Predicated region
        $region137: #{fld_forward.1} parent=131 // pred_check
          %p3182 = pneg %p636
        $region138: #{fld_forward.1} parent=131 // pred_check_branch
          %3184 = sbr.rel (%p3182) target = $region140
        $region139: #{fld_forward.1} parent=131 // pred_region
          %p3185 = scmp.lt.s32.totalorder %s42, 1
          %s3186 = scalar_select %p3185, %s42, 1
          %s3187 = smul.addr %s3186, 8
          %s3188 = scalar_lea.vmem %s26, %s3187
        $region140: #{fld_forward.1} parent=131 // pred_fallthru
          _
      $region132: #{fld_forward.1} parent=5 // pred_fallthru
        _
    $region6: #{fld_forward.1} parent=1 // loop_footer
      %s40 = sadd.s32 1, %s36
    $region7: #{fld_forward.1} parent=1 // loop_footer_branch
      %35 = sbr.rel target = $region3
    $region8: #{fld_forward.1} parent=1 // loop_exit
      _
    %3189 = vsyncpa [#allocation3], 1
    %s3190 = scalar_lea.sflag [#allocation3], 1
    %3191 = vsyncpa %s3190, 1

</llo_original>
